<compile_context>
chip_gen: v5e
topology: v5e:2x2
jax: 0.10.0
libtpu: 0.0.40
codegen_flags: <defaults>
</compile_context>

<pallas_src>
import jax
import jax.numpy as jnp
from jax.experimental import pallas as pl
from jax.experimental.pallas import tpu as pltpu

# ---------------- hyper-parameters (small, deterministic) ----------------
EMB_DIM = 128
N_FRAMES_PER_SEQ = 2
N_HID_CP = 256
N_HIDDEN = 512
CP_OUT = N_FRAMES_PER_SEQ * 42          # 84
CP_PAD = 128                            # lane-aligned cp width
FC1_K = EMB_DIM + CP_PAD                # 256: merged [x | cp_pad] contraction dim
PRED_IN = EMB_DIM + CP_OUT              # 212 (master fc1 weight rows, PyTorch order)
BATCH = 4
TILE_M = 128                            # rows per grid step (MXU-filling tile)


# ---------------- fused Pallas kernel: whole forward pass, one grid step = TILE_M rows ----
def _fused_kernel(x_ref, wcp_ref, wcp2_ref, wfc_ref, bias_ref, y_ref, cp_ref):
    f32, bf16 = jnp.float32, jnp.bfloat16

    x = x_ref[...]                                           # (TILE_M, 128) bf16

    # Static views into the coalesced parameter blobs (offsets are multiples of 8/128).
    w_cp0 = wcp_ref[0:EMB_DIM, :]                            # (128, 256)
    w_cp1 = wcp_ref[EMB_DIM:EMB_DIM + N_HID_CP, :]           # (256, 256)
    w_cp2 = wcp2_ref[...]                                    # (256, 128)
    w_fc1 = wfc_ref[0:FC1_K, :]                              # (256, 512) merged [x|cp]
    w_fc2 = wfc_ref[FC1_K:FC1_K + N_HIDDEN, :]               # (512, 512)
    w_fc3 = wfc_ref[FC1_K + N_HIDDEN:FC1_K + 2 * N_HIDDEN, :]  # (512, 512)

    b_cp0 = bias_ref[0:1, 0:N_HID_CP]
    b_cp1 = bias_ref[1:2, 0:N_HID_CP]
    b_cp2 = bias_ref[2:3, 0:CP_PAD]
    b_fc1 = bias_ref[3:4, :]
    b_fc2 = bias_ref[4:5, :]
    b_fc3 = bias_ref[5:6, :]

    # ---- cp branch: Linear+ReLU, Linear+ReLU, Linear ----
    h = jnp.dot(x, w_cp0, preferred_element_type=f32) + b_cp0
    h = jnp.maximum(h, 0.0).astype(bf16)
    h = jnp.dot(h, w_cp1, preferred_element_type=f32) + b_cp1
    h = jnp.maximum(h, 0.0).astype(bf16)
    cp = jnp.dot(h, w_cp2, preferred_element_type=f32) + b_cp2
    cp_ref[...] = cp                                         # (TILE_M, CP_PAD) f32

    # ---- trunk: concat(x, cp) @ W_fc1 as ONE K=256 contraction (lane-concat) ----
    xc = jnp.concatenate([x, cp.astype(bf16)], axis=1)       # (TILE_M, 256) bf16
    z = jnp.dot(xc, w_fc1, preferred_element_type=f32) + b_fc1
    z = jnp.maximum(z, 0.0).astype(bf16)
    z = jnp.dot(z, w_fc2, preferred_element_type=f32) + b_fc2
    z = jnp.maximum(z, 0.0).astype(bf16)
    y = jnp.dot(z, w_fc3, preferred_element_type=f32) + b_fc3
    y_ref[...] = y                                           # (TILE_M, N_HIDDEN) f32


def _fused_call(x_pad, packed):
    wcp, wcp2, wfc, bias = packed
    m = x_pad.shape[0]
    num_chunks = m // TILE_M

    flops = 2 * m * (EMB_DIM * N_HID_CP + N_HID_CP * N_HID_CP + N_HID_CP * CP_PAD
                     + FC1_K * N_HIDDEN + 2 * N_HIDDEN * N_HIDDEN)
    bytes_accessed = ((wcp.size + wcp2.size + wfc.size) * 2 + bias.size * 4
                      + x_pad.size * 2 + m * (N_HIDDEN + CP_PAD) * 4)

    return pl.pallas_call(
        _fused_kernel,
        out_shape=(jax.ShapeDtypeStruct((m, N_HIDDEN), jnp.float32),
                   jax.ShapeDtypeStruct((m, CP_PAD), jnp.float32)),
        grid=(num_chunks,),
        in_specs=[
            pl.BlockSpec((TILE_M, EMB_DIM), lambda i: (i, 0)),   # x: per-step block
            pl.BlockSpec(wcp.shape, lambda i: (0, 0)),           # weights: resident
            pl.BlockSpec(wcp2.shape, lambda i: (0, 0)),
            pl.BlockSpec(wfc.shape, lambda i: (0, 0)),
            pl.BlockSpec(bias.shape, lambda i: (0, 0)),
        ],
        out_specs=(pl.BlockSpec((TILE_M, N_HIDDEN), lambda i: (i, 0)),
                   pl.BlockSpec((TILE_M, CP_PAD), lambda i: (i, 0))),
        compiler_params=pltpu.CompilerParams(
            dimension_semantics=("parallel",)),
        cost_estimate=pl.CostEstimate(flops=flops, transcendentals=0,
                                      bytes_accessed=bytes_accessed),
    )(x_pad, wcp, wcp2, wfc, bias)


# ---------------- parameter construction (deterministic, synthetic) ----------------
def _init_linear(key, fan_in, fan_out):
    kw, kb = jax.random.split(key)
    w = jax.random.normal(kw, (fan_in, fan_out), jnp.float32) * 0.02
    b = jax.random.normal(kb, (1, fan_out), jnp.float32) * 0.02
    return w, b


def init_params(key):
    keys = jax.random.split(key, 6)
    return {
        "cp0": _init_linear(keys[0], EMB_DIM, N_HID_CP),
        "cp1": _init_linear(keys[1], N_HID_CP, N_HID_CP),
        "cp2": _init_linear(keys[2], N_HID_CP, CP_OUT),
        "fc1": _init_linear(keys[3], PRED_IN, N_HIDDEN),
        "fc2": _init_linear(keys[4], N_HIDDEN, N_HIDDEN),
        "fc3": _init_linear(keys[5], N_HIDDEN, N_HIDDEN),
    }


def pack_params(params):
    """Coalesce the 13 parameter tensors into 4 contiguous buffers:
       - wcp  (384, 256) bf16 : [w_cp0 ; w_cp1]
       - wcp2 (256, 128) bf16 : w_cp2, output dim padded 84 -> 128 with zeros
       - wfc (1280, 512) bf16 : [merged fc1 (256,512) ; w_fc2 ; w_fc3]
       - bias   (8, 512) f32  : one row per layer, zero-padded
    """
    bf16, f32 = jnp.bfloat16, jnp.float32
    w_cp0, b_cp0 = params["cp0"]
    w_cp1, b_cp1 = params["cp1"]
    w_cp2, b_cp2 = params["cp2"]
    w_fc1, b_fc1 = params["fc1"]
    w_fc2, b_fc2 = params["fc2"]
    w_fc3, b_fc3 = params["fc3"]

    wcp = jnp.concatenate([w_cp0, w_cp1], axis=0).astype(bf16)

    wcp2 = jnp.zeros((N_HID_CP, CP_PAD), f32).at[:, :CP_OUT].set(w_cp2).astype(bf16)

    # Merged fc1: rows 0..127 multiply x, rows 128..211 multiply cp, rows 212..255 zero.
    w_fc1_m = jnp.zeros((FC1_K, N_HIDDEN), f32)
    w_fc1_m = w_fc1_m.at[:EMB_DIM, :].set(w_fc1[:EMB_DIM, :])
    w_fc1_m = w_fc1_m.at[EMB_DIM:EMB_DIM + CP_OUT, :].set(w_fc1[EMB_DIM:, :])
    wfc = jnp.concatenate([w_fc1_m, w_fc2, w_fc3], axis=0).astype(bf16)

    bias = jnp.zeros((8, N_HIDDEN), f32)
    bias = bias.at[0, :N_HID_CP].set(b_cp0[0])
    bias = bias.at[1, :N_HID_CP].set(b_cp1[0])
    bias = bias.at[2, :CP_OUT].set(b_cp2[0])
    bias = bias.at[3, :].set(b_fc1[0])
    bias = bias.at[4, :].set(b_fc2[0])
    bias = bias.at[5, :].set(b_fc3[0])

    return (wcp, wcp2, wfc, bias)


# ---------------- forward pass (padding handled in the wrapper) ----------------
def action_predictor_forward(packed, x):
    b = x.shape[0]
    m = ((b + TILE_M - 1) // TILE_M) * TILE_M
    x_pad = jnp.zeros((m, EMB_DIM), jnp.bfloat16).at[:b, :].set(x.astype(jnp.bfloat16))
    y_pad, cp_pad = _fused_call(x_pad, packed)
    return y_pad[:b, :], cp_pad[:b, :CP_OUT]


# ---------------- pure-JAX reference (same bf16-weight / f32-accum path) ----------------
def reference_forward(params, x):
    bf16 = jnp.bfloat16

    def lin(a, w, b, relu):
        y = jnp.dot(a.astype(bf16), w.astype(bf16),
                    preferred_element_type=jnp.float32) + b
        return jnp.maximum(y, 0.0) if relu else y

    h = lin(x, *params["cp0"], True)
    h = lin(h, *params["cp1"], True)
    cp = lin(h, *params["cp2"], False)
    xc = jnp.concatenate([x, cp], axis=1)
    z = lin(xc, *params["fc1"], True)
    z = lin(z, *params["fc2"], True)
    y = lin(z, *params["fc3"], False)
    return y, cp


if __name__ == "__main__":
    key = jax.random.PRNGKey(0)
    pkey, xkey = jax.random.split(key)

    params = init_params(pkey)
    packed = pack_params(params)                      # weights resident as bf16, coalesced
    fwd = jax.jit(action_predictor_forward)

    # batch=4: single grid step; batch=389: multi-step grid exercising weight residency.
    for batch in (BATCH, 3 * TILE_M + 5):
        x = jax.random.normal(jax.random.fold_in(xkey, batch), (batch, EMB_DIM), jnp.float32)
        y, cp = fwd(packed, x)
        jax.block_until_ready((y, cp))

        assert y.shape == (batch, N_HIDDEN), y.shape
        assert cp.shape == (batch, CP_OUT), cp.shape
        assert y.dtype == jnp.float32 and cp.dtype == jnp.float32

        y_ref, cp_ref = reference_forward(params, x)
        assert jnp.allclose(cp, cp_ref, rtol=1e-2, atol=1e-2), float(jnp.max(jnp.abs(cp - cp_ref)))
        assert jnp.allclose(y, y_ref, rtol=1e-2, atol=1e-2), float(jnp.max(jnp.abs(y - y_ref)))

    print("KERNEL_OK")
</pallas_src>

<mosaic_0001>
module attributes {stable_mosaic.version = 11 : i64} {
  func.func @_fused_kernel(%arg0: i32, %arg1: memref<128x128xbf16, #tpu.memory_space<vmem>>, %arg2: memref<384x256xbf16, #tpu.memory_space<vmem>>, %arg3: memref<256x128xbf16, #tpu.memory_space<vmem>>, %arg4: memref<1280x512xbf16, #tpu.memory_space<vmem>>, %arg5: memref<8x512xf32, #tpu.memory_space<vmem>>, %arg6: memref<128x512xf32, #tpu.memory_space<vmem>>, %arg7: memref<128x128xf32, #tpu.memory_space<vmem>>) attributes {dimension_semantics = [#tpu.dimension_semantics<parallel>], iteration_bounds = array<i64: 1>, scalar_prefetch = 0 : i64, scratch_operands = 0 : i64, tpu.core_type = #tpu.core_type<tc>, window_params = [{transform_indices = @transform_0, window_bounds = array<i64: 128, 128>}, {pipeline_mode = #tpu.pipeline_mode<synchronous>, transform_indices = @transform_1, window_bounds = array<i64: 384, 256>}, {pipeline_mode = #tpu.pipeline_mode<synchronous>, transform_indices = @transform_2, window_bounds = array<i64: 256, 128>}, {pipeline_mode = #tpu.pipeline_mode<synchronous>, transform_indices = @transform_3, window_bounds = array<i64: 1280, 512>}, {pipeline_mode = #tpu.pipeline_mode<synchronous>, transform_indices = @transform_4, window_bounds = array<i64: 8, 512>}, {transform_indices = @transform_5, window_bounds = array<i64: 128, 512>}, {transform_indices = @transform_6, window_bounds = array<i64: 128, 128>}]} {
    %c0 = arith.constant 0 : index
    %c0_0 = arith.constant 0 : index
    %0 = vector.load %arg1[%c0, %c0_0] : memref<128x128xbf16, #tpu.memory_space<vmem>>, vector<128x128xbf16>
    %c0_1 = arith.constant 0 : index
    %c0_2 = arith.constant 0 : index
    %1 = vector.load %arg2[%c0_1, %c0_2] : memref<384x256xbf16, #tpu.memory_space<vmem>>, vector<128x256xbf16>
    %c128 = arith.constant 128 : index
    %c0_3 = arith.constant 0 : index
    %2 = vector.load %arg2[%c128, %c0_3] : memref<384x256xbf16, #tpu.memory_space<vmem>>, vector<256x256xbf16>
    %c0_4 = arith.constant 0 : index
    %c0_5 = arith.constant 0 : index
    %3 = vector.load %arg3[%c0_4, %c0_5] : memref<256x128xbf16, #tpu.memory_space<vmem>>, vector<256x128xbf16>
    %c0_6 = arith.constant 0 : index
    %c0_7 = arith.constant 0 : index
    %4 = vector.load %arg4[%c0_6, %c0_7] : memref<1280x512xbf16, #tpu.memory_space<vmem>>, vector<256x512xbf16>
    %c256 = arith.constant 256 : index
    %c0_8 = arith.constant 0 : index
    %5 = vector.load %arg4[%c256, %c0_8] : memref<1280x512xbf16, #tpu.memory_space<vmem>>, vector<512x512xbf16>
    %c768 = arith.constant 768 : index
    %c0_9 = arith.constant 0 : index
    %6 = vector.load %arg4[%c768, %c0_9] : memref<1280x512xbf16, #tpu.memory_space<vmem>>, vector<512x512xbf16>
    %c0_10 = arith.constant 0 : index
    %c0_11 = arith.constant 0 : index
    %7 = vector.load %arg5[%c0_10, %c0_11] : memref<8x512xf32, #tpu.memory_space<vmem>>, vector<1x256xf32>
    %c1 = arith.constant 1 : index
    %c0_12 = arith.constant 0 : index
    %8 = vector.load %arg5[%c1, %c0_12] : memref<8x512xf32, #tpu.memory_space<vmem>>, vector<1x256xf32>
    %c2 = arith.constant 2 : index
    %c0_13 = arith.constant 0 : index
    %9 = vector.load %arg5[%c2, %c0_13] : memref<8x512xf32, #tpu.memory_space<vmem>>, vector<1x128xf32>
    %c3 = arith.constant 3 : index
    %c0_14 = arith.constant 0 : index
    %10 = vector.load %arg5[%c3, %c0_14] : memref<8x512xf32, #tpu.memory_space<vmem>>, vector<1x512xf32>
    %c4 = arith.constant 4 : index
    %c0_15 = arith.constant 0 : index
    %11 = vector.load %arg5[%c4, %c0_15] : memref<8x512xf32, #tpu.memory_space<vmem>>, vector<1x512xf32>
    %c5 = arith.constant 5 : index
    %c0_16 = arith.constant 0 : index
    %12 = vector.load %arg5[%c5, %c0_16] : memref<8x512xf32, #tpu.memory_space<vmem>>, vector<1x512xf32>
    %cst = arith.constant dense<0.000000e+00> : vector<128x256xf32>
    %13 = tpu.matmul %0, %1, %cst {dimension_numbers = #tpu.dot_dimension_numbers<[1], [0], [0], [1], [0, 0, 1, 1], [], []>} : vector<128x128xbf16>, vector<128x256xbf16>, vector<128x256xf32> -> vector<128x256xf32>
    %14 = vector.broadcast %7 : vector<1x256xf32> to vector<128x256xf32>
    %15 = arith.addf %13, %14 : vector<128x256xf32>
    %cst_17 = arith.constant 0.000000e+00 : f32
    %16 = vector.broadcast %cst_17 : f32 to vector<128x256xf32>
    %17 = arith.maximumf %15, %16 : vector<128x256xf32>
    %18 = arith.truncf %17 : vector<128x256xf32> to vector<128x256xbf16>
    %cst_18 = arith.constant dense<0.000000e+00> : vector<128x256xf32>
    %19 = tpu.matmul %18, %2, %cst_18 {dimension_numbers = #tpu.dot_dimension_numbers<[1], [0], [0], [1], [0, 0, 1, 1], [], []>} : vector<128x256xbf16>, vector<256x256xbf16>, vector<128x256xf32> -> vector<128x256xf32>
    %20 = vector.broadcast %8 : vector<1x256xf32> to vector<128x256xf32>
    %21 = arith.addf %19, %20 : vector<128x256xf32>
    %cst_19 = arith.constant 0.000000e+00 : f32
    %22 = vector.broadcast %cst_19 : f32 to vector<128x256xf32>
    %23 = arith.maximumf %21, %22 : vector<128x256xf32>
    %24 = arith.truncf %23 : vector<128x256xf32> to vector<128x256xbf16>
    %cst_20 = arith.constant dense<0.000000e+00> : vector<128x128xf32>
    %25 = tpu.matmul %24, %3, %cst_20 {dimension_numbers = #tpu.dot_dimension_numbers<[1], [0], [0], [1], [0, 0, 1, 1], [], []>} : vector<128x256xbf16>, vector<256x128xbf16>, vector<128x128xf32> -> vector<128x128xf32>
    %26 = vector.broadcast %9 : vector<1x128xf32> to vector<128x128xf32>
    %27 = arith.addf %25, %26 : vector<128x128xf32>
    %c0_21 = arith.constant 0 : index
    %c0_22 = arith.constant 0 : index
    %28 = vector.load %arg7[%c0_21, %c0_22] : memref<128x128xf32, #tpu.memory_space<vmem>>, vector<128x128xf32>
    tpu.vector_store %arg7[%c0_21, %c0_22], %27 {strides = array<i32>} : memref<128x128xf32, #tpu.memory_space<vmem>>, vector<128x128xf32>,
    %29 = arith.truncf %27 : vector<128x128xf32> to vector<128x128xbf16>
    %30 = tpu.concatenate %0, %29 in 1 : vector<128x128xbf16>, vector<128x128xbf16> -> vector<128x256xbf16>
    %cst_23 = arith.constant dense<0.000000e+00> : vector<128x512xf32>
    %31 = tpu.matmul %30, %4, %cst_23 {dimension_numbers = #tpu.dot_dimension_numbers<[1], [0], [0], [1], [0, 0, 1, 1], [], []>} : vector<128x256xbf16>, vector<256x512xbf16>, vector<128x512xf32> -> vector<128x512xf32>
    %32 = vector.broadcast %10 : vector<1x512xf32> to vector<128x512xf32>
    %33 = arith.addf %31, %32 : vector<128x512xf32>
    %cst_24 = arith.constant 0.000000e+00 : f32
    %34 = vector.broadcast %cst_24 : f32 to vector<128x512xf32>
    %35 = arith.maximumf %33, %34 : vector<128x512xf32>
    %36 = arith.truncf %35 : vector<128x512xf32> to vector<128x512xbf16>
    %cst_25 = arith.constant dense<0.000000e+00> : vector<128x512xf32>
    %37 = tpu.matmul %36, %5, %cst_25 {dimension_numbers = #tpu.dot_dimension_numbers<[1], [0], [0], [1], [0, 0, 1, 1], [], []>} : vector<128x512xbf16>, vector<512x512xbf16>, vector<128x512xf32> -> vector<128x512xf32>
    %38 = vector.broadcast %11 : vector<1x512xf32> to vector<128x512xf32>
    %39 = arith.addf %37, %38 : vector<128x512xf32>
    %cst_26 = arith.constant 0.000000e+00 : f32
    %40 = vector.broadcast %cst_26 : f32 to vector<128x512xf32>
    %41 = arith.maximumf %39, %40 : vector<128x512xf32>
    %42 = arith.truncf %41 : vector<128x512xf32> to vector<128x512xbf16>
    %cst_27 = arith.constant dense<0.000000e+00> : vector<128x512xf32>
    %43 = tpu.matmul %42, %6, %cst_27 {dimension_numbers = #tpu.dot_dimension_numbers<[1], [0], [0], [1], [0, 0, 1, 1], [], []>} : vector<128x512xbf16>, vector<512x512xbf16>, vector<128x512xf32> -> vector<128x512xf32>
    %44 = vector.broadcast %12 : vector<1x512xf32> to vector<128x512xf32>
    %45 = arith.addf %43, %44 : vector<128x512xf32>
    %c0_28 = arith.constant 0 : index
    %c0_29 = arith.constant 0 : index
    %46 = vector.load %arg6[%c0_28, %c0_29] : memref<128x512xf32, #tpu.memory_space<vmem>>, vector<128x512xf32>
    tpu.vector_store %arg6[%c0_28, %c0_29], %45 {strides = array<i32>} : memref<128x512xf32, #tpu.memory_space<vmem>>, vector<128x512xf32>,
    return
  }
  func.func @transform_0(%arg0: i32) -> (i32, i32) {
    %c0_i32 = arith.constant 0 : i32
    %c0_i32_0 = arith.constant 0 : i32
    return %arg0, %c0_i32 : i32, i32
  }
  func.func @transform_1(%arg0: i32) -> (i32, i32) {
    %c0_i32 = arith.constant 0 : i32
    %c0_i32_0 = arith.constant 0 : i32
    %c0_i32_1 = arith.constant 0 : i32
    return %c0_i32, %c0_i32_0 : i32, i32
  }
  func.func @transform_2(%arg0: i32) -> (i32, i32) {
    %c0_i32 = arith.constant 0 : i32
    %c0_i32_0 = arith.constant 0 : i32
    %c0_i32_1 = arith.constant 0 : i32
    return %c0_i32, %c0_i32_0 : i32, i32
  }
  func.func @transform_3(%arg0: i32) -> (i32, i32) {
    %c0_i32 = arith.constant 0 : i32
    %c0_i32_0 = arith.constant 0 : i32
    %c0_i32_1 = arith.constant 0 : i32
    return %c0_i32, %c0_i32_0 : i32, i32
  }
  func.func @transform_4(%arg0: i32) -> (i32, i32) {
    %c0_i32 = arith.constant 0 : i32
    %c0_i32_0 = arith.constant 0 : i32
    %c0_i32_1 = arith.constant 0 : i32
    return %c0_i32, %c0_i32_0 : i32, i32
  }
  func.func @transform_5(%arg0: i32) -> (i32, i32) {
    %c0_i32 = arith.constant 0 : i32
    %c0_i32_0 = arith.constant 0 : i32
    return %arg0, %c0_i32 : i32, i32
  }
  func.func @transform_6(%arg0: i32) -> (i32, i32) {
    %c0_i32 = arith.constant 0 : i32
    %c0_i32_0 = arith.constant 0 : i32
    return %arg0, %c0_i32 : i32, i32
  }
}

</mosaic_0001>

<llo_original>
// kernel: action_predictor_forward.1
$region0: #{action_predictor_forward.1}
  #allocation0 [shape = 'u32[]', space=smem, size = 0x4, offset = 0x4, fixed_abs, tag = 'smem constant byte address 0x4 - core index']
  #allocation1 [shape = 'u32[72,128]{1,0:T(1,128)}', space=vmem, size = 0x9000, scoped, tag = 'internal scratch']
  %s0 = inlined_call_operand.vmem [shape: bf16[128,128], index: 0, kind: input, shape index: {}]
  %s1 = inlined_call_operand.hbm [shape: bf16[384,256], index: 1, kind: input, shape index: {}]
  %s2 = inlined_call_operand.hbm [shape: bf16[256,128], index: 2, kind: input, shape index: {}]
  %s3 = inlined_call_operand.hbm [shape: bf16[1280,512], index: 3, kind: input, shape index: {}]
  %s4 = inlined_call_operand.hbm [shape: f32[8,512], index: 4, kind: input, shape index: {}]
  %s5 = inlined_call_operand.vmem [shape: f32[128,512], index: 5, kind: output, shape index: {0}]
  %s6 = inlined_call_operand.vmem [shape: f32[128,128], index: 6, kind: output, shape index: {1}]
  %7 = xla_tuple %s5, %s6
  %s8 = sld [smem:[#allocation0]]
  $region54: #{action_predictor_forward.1} parent=0
    _
  %s10 = ssub.s32 1, %s8
  %s11 = scalar_select 0, %s10, %s8
  $region1: #{action_predictor_forward.1} parent=0
    #allocation2 [shape = 'u8[196608]{0}', space=vmem, size = 0x30000, scoped, tag = 'input window, operand 1, single buffered']
    #allocation3 [shape = 's32[1]{0}', space=sflag, size = 0x4, scoped, tag = 'scoped memory for action_predictor_forward.1']
    #allocation4 [shape = 'u8[65536]{0}', space=vmem, size = 0x10000, scoped, tag = 'input window, operand 2, single buffered']
    #allocation5 [shape = 's32[1]{0}', space=sflag, size = 0x4, scoped, tag = 'scoped memory for action_predictor_forward.1']
    #allocation6 [shape = 'u8[1310720]{0}', space=vmem, size = 0x140000, scoped, tag = 'input window, operand 3, single buffered']
    #allocation7 [shape = 'u8[16384]{0}', space=vmem, size = 0x4000, scoped, tag = 'input window, operand 4, single buffered']
    #allocation8 [shape = 's32[1]{0}', space=sflag, size = 0x4, scoped, tag = 'scoped memory for action_predictor_forward.1']
    %12 = vsyncpa [#allocation3], 0
    %13 = vsyncpa [#allocation5], 0
    %14 = vsyncpa [#allocation8], 0
    // Predicated region
    $region2: #{action_predictor_forward.1} parent=1 // pred_check
      _
    $region3: #{action_predictor_forward.1} parent=1 // pred_check_branch
      %16 = sbr.rel (0) target = $region5
    $region4: #{action_predictor_forward.1} parent=1 // pred_region
      _
    $region5: #{action_predictor_forward.1} parent=1 // pred_fallthru
      _
    // Predicated region
    $region6: #{action_predictor_forward.1} parent=1 // pred_check
      _
    $region7: #{action_predictor_forward.1} parent=1 // pred_check_branch
      %18 = sbr.rel (0) target = $region9
    $region8: #{action_predictor_forward.1} parent=1 // pred_region
      %20 = vsyncadd [#allocation3], 0
      %s21 = sshll.u32 %s1, 4
      %s22 = int_to_ptr.hbm [resolvable:$true] %s21
      %s23 = sshll.u32 [#allocation2], 4
      %s24 = int_to_ptr.vmem [resolvable:$true] %s23
      %29 = dma.hbm_to_vmem [thread:$0]  %s22, 6144, %s24, [#allocation3], 128, 128, 8
    $region9: #{action_predictor_forward.1} parent=1 // pred_fallthru
      _
    // Predicated region
    $region10: #{action_predictor_forward.1} parent=1 // pred_check
      _
    $region11: #{action_predictor_forward.1} parent=1 // pred_check_branch
      %31 = sbr.rel (0) target = $region13
    $region12: #{action_predictor_forward.1} parent=1 // pred_region
      %33 = vsyncadd [#allocation5], 0
      %s34 = sshll.u32 %s2, 4
      %s35 = int_to_ptr.hbm [resolvable:$true] %s34
      %s36 = sshll.u32 [#allocation4], 4
      %s37 = int_to_ptr.vmem [resolvable:$true] %s36
      %42 = dma.hbm_to_vmem [thread:$0]  %s35, 2048, %s37, [#allocation5], 64, 64, 4
    $region13: #{action_predictor_forward.1} parent=1 // pred_fallthru
      _
    // Predicated region
    $region14: #{action_predictor_forward.1} parent=1 // pred_check
      _
    $region15: #{action_predictor_forward.1} parent=1 // pred_check_branch
      %44 = sbr.rel (0) target = $region17
    $region16: #{action_predictor_forward.1} parent=1 // pred_region
      %46 = vsyncadd [#allocation5], 0
      %s47 = sshll.u32 %s3, 4
      %s48 = int_to_ptr.hbm [resolvable:$true] %s47
      %s49 = sshll.u32 [#allocation6], 4
      %s50 = int_to_ptr.vmem [resolvable:$true] %s49
      %55 = dma.hbm_to_vmem [thread:$0]  %s48, 40960, %s50, [#allocation5], 256, 256, 16
    $region17: #{action_predictor_forward.1} parent=1 // pred_fallthru
      _
    // Predicated region
    $region18: #{action_predictor_forward.1} parent=1 // pred_check
      _
    $region19: #{action_predictor_forward.1} parent=1 // pred_check_branch
      %57 = sbr.rel (0) target = $region21
    $region20: #{action_predictor_forward.1} parent=1 // pred_region
      %59 = vsyncadd [#allocation8], 0
      %s61 = sshll.u32 %s4, 4
      %s62 = int_to_ptr.hbm [resolvable:$true] %s61
      %s63 = sshll.u32 [#allocation7], 4
      %s64 = int_to_ptr.vmem [resolvable:$true] %s63
      %66 = dma.hbm_to_vmem [thread:$0]  %s62, 512, %s64, [#allocation8]
    $region21: #{action_predictor_forward.1} parent=1 // pred_fallthru
      _
    // Predicated region
    $region22: #{action_predictor_forward.1} parent=1 // pred_check
      _
    $region23: #{action_predictor_forward.1} parent=1 // pred_check_branch
      %68 = sbr.rel (0) target = $region25
    $region24: #{action_predictor_forward.1} parent=1 // pred_region
      %70 = dma.done [#allocation3], 6144
    $region25: #{action_predictor_forward.1} parent=1 // pred_fallthru
      _
    // Predicated region
    $region26: #{action_predictor_forward.1} parent=1 // pred_check
      _
    $region27: #{action_predictor_forward.1} parent=1 // pred_check_branch
      %72 = sbr.rel (0) target = $region29
    $region28: #{action_predictor_forward.1} parent=1 // pred_region
      %74 = dma.done [#allocation5], 2048
    $region29: #{action_predictor_forward.1} parent=1 // pred_fallthru
      _
    // Predicated region
    $region30: #{action_predictor_forward.1} parent=1 // pred_check
      _
    $region31: #{action_predictor_forward.1} parent=1 // pred_check_branch
      %76 = sbr.rel (0) target = $region33
    $region32: #{action_predictor_forward.1} parent=1 // pred_region
      %78 = dma.done [#allocation5], 40960
    $region33: #{action_predictor_forward.1} parent=1 // pred_fallthru
      _
    // Predicated region
    $region34: #{action_predictor_forward.1} parent=1 // pred_check
      _
    $region35: #{action_predictor_forward.1} parent=1 // pred_check_branch
      %80 = sbr.rel (0) target = $region37
    $region36: #{action_predictor_forward.1} parent=1 // pred_region
      %82 = dma.done [#allocation8], 512
    $region37: #{action_predictor_forward.1} parent=1 // pred_fallthru
      _
    %v83 = vld [vmem:[%s0] sm:$0xf]
    %v84 = vld [vmem:[%s0 + $0x4] sm:$0xf]
    %v85 = vld [vmem:[%s0 + $0x8] sm:$0xf]
    %v86 = vld [vmem:[%s0 + $0xc] sm:$0xf]
    %v87 = vld [vmem:[%s0 + $0x10] sm:$0xf]
    %v88 = vld [vmem:[%s0 + $0x14] sm:$0xf]
    %v89 = vld [vmem:[%s0 + $0x18] sm:$0xf]
    %v90 = vld [vmem:[%s0 + $0x1c] sm:$0xf]
    %v91 = vld [vmem:[%s0 + $0x20] sm:$0xf]
    %v92 = vld [vmem:[%s0 + $0x24] sm:$0xf]
    %v93 = vld [vmem:[%s0 + $0x28] sm:$0xf]
    %v94 = vld [vmem:[%s0 + $0x2c] sm:$0xf]
    %v95 = vld [vmem:[%s0 + $0x30] sm:$0xf]
    %v96 = vld [vmem:[%s0 + $0x34] sm:$0xf]
    %v97 = vld [vmem:[%s0 + $0x38] sm:$0xf]
    %v98 = vld [vmem:[%s0 + $0x3c] sm:$0xf]
    %v99 = vld [vmem:[#allocation2] sm:$0xff]
    %v100 = vld [vmem:[#allocation2 + $0x8] sm:$0xff]
    %v101 = vld [vmem:[#allocation2 + $0x10] sm:$0xff]
    %v102 = vld [vmem:[#allocation2 + $0x18] sm:$0xff]
    %v103 = vld [vmem:[#allocation2 + $0x20] sm:$0xff]
    %v104 = vld [vmem:[#allocation2 + $0x28] sm:$0xff]
    %v105 = vld [vmem:[#allocation2 + $0x30] sm:$0xff]
    %v106 = vld [vmem:[#allocation2 + $0x38] sm:$0xff]
    %v107 = vld [vmem:[#allocation2 + $0x40] sm:$0xff]
    %v108 = vld [vmem:[#allocation2 + $0x48] sm:$0xff]
    %v109 = vld [vmem:[#allocation2 + $0x50] sm:$0xff]
    %v110 = vld [vmem:[#allocation2 + $0x58] sm:$0xff]
    %v111 = vld [vmem:[#allocation2 + $0x60] sm:$0xff]
    %v112 = vld [vmem:[#allocation2 + $0x68] sm:$0xff]
    %v113 = vld [vmem:[#allocation2 + $0x70] sm:$0xff]
    %v114 = vld [vmem:[#allocation2 + $0x78] sm:$0xff]
    %v115 = vld [vmem:[#allocation2 + $0x80] sm:$0xff]
    %v116 = vld [vmem:[#allocation2 + $0x88] sm:$0xff]
    %v117 = vld [vmem:[#allocation2 + $0x90] sm:$0xff]
    %v118 = vld [vmem:[#allocation2 + $0x98] sm:$0xff]
    %v119 = vld [vmem:[#allocation2 + $0xa0] sm:$0xff]
    %v120 = vld [vmem:[#allocation2 + $0xa8] sm:$0xff]
    %v121 = vld [vmem:[#allocation2 + $0xb0] sm:$0xff]
    %v122 = vld [vmem:[#allocation2 + $0xb8] sm:$0xff]
    %v123 = vld [vmem:[#allocation2 + $0xc0] sm:$0xff]
    %v124 = vld [vmem:[#allocation2 + $0xc8] sm:$0xff]
    %v125 = vld [vmem:[#allocation2 + $0xd0] sm:$0xff]
    %v126 = vld [vmem:[#allocation2 + $0xd8] sm:$0xff]
    %v127 = vld [vmem:[#allocation2 + $0xe0] sm:$0xff]
    %v128 = vld [vmem:[#allocation2 + $0xe8] sm:$0xff]
    %v129 = vld [vmem:[#allocation2 + $0xf0] sm:$0xff]
    %v130 = vld [vmem:[#allocation2 + $0xf8] sm:$0xff]
    %v131 = vld [vmem:[#allocation2 + $0x100] sm:$0xff]
    %v132 = vld [vmem:[#allocation2 + $0x108] sm:$0xff]
    %v133 = vld [vmem:[#allocation2 + $0x110] sm:$0xff]
    %v134 = vld [vmem:[#allocation2 + $0x118] sm:$0xff]
    %v135 = vld [vmem:[#allocation2 + $0x120] sm:$0xff]
    %v136 = vld [vmem:[#allocation2 + $0x128] sm:$0xff]
    %v137 = vld [vmem:[#allocation2 + $0x130] sm:$0xff]
    %v138 = vld [vmem:[#allocation2 + $0x138] sm:$0xff]
    %v139 = vld [vmem:[#allocation2 + $0x140] sm:$0xff]
    %v140 = vld [vmem:[#allocation2 + $0x148] sm:$0xff]
    %v141 = vld [vmem:[#allocation2 + $0x150] sm:$0xff]
    %v142 = vld [vmem:[#allocation2 + $0x158] sm:$0xff]
    %v143 = vld [vmem:[#allocation2 + $0x160] sm:$0xff]
    %v144 = vld [vmem:[#allocation2 + $0x168] sm:$0xff]
    %v145 = vld [vmem:[#allocation2 + $0x170] sm:$0xff]
    %v146 = vld [vmem:[#allocation2 + $0x178] sm:$0xff]
    %v147 = vld [vmem:[#allocation4] sm:$0xf]
    %v148 = vld [vmem:[#allocation4 + $0x4] sm:$0xf]
    %v149 = vld [vmem:[#allocation4 + $0x8] sm:$0xf]
    %v150 = vld [vmem:[#allocation4 + $0xc] sm:$0xf]
    %v151 = vld [vmem:[#allocation4 + $0x10] sm:$0xf]
    %v152 = vld [vmem:[#allocation4 + $0x14] sm:$0xf]
    %v153 = vld [vmem:[#allocation4 + $0x18] sm:$0xf]
    %v154 = vld [vmem:[#allocation4 + $0x1c] sm:$0xf]
    %v155 = vld [vmem:[#allocation4 + $0x20] sm:$0xf]
    %v156 = vld [vmem:[#allocation4 + $0x24] sm:$0xf]
    %v157 = vld [vmem:[#allocation4 + $0x28] sm:$0xf]
    %v158 = vld [vmem:[#allocation4 + $0x2c] sm:$0xf]
    %v159 = vld [vmem:[#allocation4 + $0x30] sm:$0xf]
    %v160 = vld [vmem:[#allocation4 + $0x34] sm:$0xf]
    %v161 = vld [vmem:[#allocation4 + $0x38] sm:$0xf]
    %v162 = vld [vmem:[#allocation4 + $0x3c] sm:$0xf]
    %v163 = vld [vmem:[#allocation4 + $0x40] sm:$0xf]
    %v164 = vld [vmem:[#allocation4 + $0x44] sm:$0xf]
    %v165 = vld [vmem:[#allocation4 + $0x48] sm:$0xf]
    %v166 = vld [vmem:[#allocation4 + $0x4c] sm:$0xf]
    %v167 = vld [vmem:[#allocation4 + $0x50] sm:$0xf]
    %v168 = vld [vmem:[#allocation4 + $0x54] sm:$0xf]
    %v169 = vld [vmem:[#allocation4 + $0x58] sm:$0xf]
    %v170 = vld [vmem:[#allocation4 + $0x5c] sm:$0xf]
    %v171 = vld [vmem:[#allocation4 + $0x60] sm:$0xf]
    %v172 = vld [vmem:[#allocation4 + $0x64] sm:$0xf]
    %v173 = vld [vmem:[#allocation4 + $0x68] sm:$0xf]
    %v174 = vld [vmem:[#allocation4 + $0x6c] sm:$0xf]
    %v175 = vld [vmem:[#allocation4 + $0x70] sm:$0xf]
    %v176 = vld [vmem:[#allocation4 + $0x74] sm:$0xf]
    %v177 = vld [vmem:[#allocation4 + $0x78] sm:$0xf]
    %v178 = vld [vmem:[#allocation4 + $0x7c] sm:$0xf]
    %v179 = vld [vmem:[#allocation6] sm:$0xff]
    %v180 = vld [vmem:[#allocation6 + $0x8] sm:$0xff]
    %v181 = vld [vmem:[#allocation6 + $0x10] sm:$0xff]
    %v182 = vld [vmem:[#allocation6 + $0x18] sm:$0xff]
    %v183 = vld [vmem:[#allocation6 + $0x20] sm:$0xff]
    %v184 = vld [vmem:[#allocation6 + $0x28] sm:$0xff]
    %v185 = vld [vmem:[#allocation6 + $0x30] sm:$0xff]
    %v186 = vld [vmem:[#allocation6 + $0x38] sm:$0xff]
    %v187 = vld [vmem:[#allocation6 + $0x40] sm:$0xff]
    %v188 = vld [vmem:[#allocation6 + $0x48] sm:$0xff]
    %v189 = vld [vmem:[#allocation6 + $0x50] sm:$0xff]
    %v190 = vld [vmem:[#allocation6 + $0x58] sm:$0xff]
    %v191 = vld [vmem:[#allocation6 + $0x60] sm:$0xff]
    %v192 = vld [vmem:[#allocation6 + $0x68] sm:$0xff]
    %v193 = vld [vmem:[#allocation6 + $0x70] sm:$0xff]
    %v194 = vld [vmem:[#allocation6 + $0x78] sm:$0xff]
    %v195 = vld [vmem:[#allocation6 + $0x80] sm:$0xff]
    %v196 = vld [vmem:[#allocation6 + $0x88] sm:$0xff]
    %v197 = vld [vmem:[#allocation6 + $0x90] sm:$0xff]
    %v198 = vld [vmem:[#allocation6 + $0x98] sm:$0xff]
    %v199 = vld [vmem:[#allocation6 + $0xa0] sm:$0xff]
    %v200 = vld [vmem:[#allocation6 + $0xa8] sm:$0xff]
    %v201 = vld [vmem:[#allocation6 + $0xb0] sm:$0xff]
    %v202 = vld [vmem:[#allocation6 + $0xb8] sm:$0xff]
    %v203 = vld [vmem:[#allocation6 + $0xc0] sm:$0xff]
    %v204 = vld [vmem:[#allocation6 + $0xc8] sm:$0xff]
    %v205 = vld [vmem:[#allocation6 + $0xd0] sm:$0xff]
    %v206 = vld [vmem:[#allocation6 + $0xd8] sm:$0xff]
    %v207 = vld [vmem:[#allocation6 + $0xe0] sm:$0xff]
    %v208 = vld [vmem:[#allocation6 + $0xe8] sm:$0xff]
    %v209 = vld [vmem:[#allocation6 + $0xf0] sm:$0xff]
    %v210 = vld [vmem:[#allocation6 + $0xf8] sm:$0xff]
    %v211 = vld [vmem:[#allocation6 + $0x100] sm:$0xff]
    %v212 = vld [vmem:[#allocation6 + $0x108] sm:$0xff]
    %v213 = vld [vmem:[#allocation6 + $0x110] sm:$0xff]
    %v214 = vld [vmem:[#allocation6 + $0x118] sm:$0xff]
    %v215 = vld [vmem:[#allocation6 + $0x120] sm:$0xff]
    %v216 = vld [vmem:[#allocation6 + $0x128] sm:$0xff]
    %v217 = vld [vmem:[#allocation6 + $0x130] sm:$0xff]
    %v218 = vld [vmem:[#allocation6 + $0x138] sm:$0xff]
    %v219 = vld [vmem:[#allocation6 + $0x140] sm:$0xff]
    %v220 = vld [vmem:[#allocation6 + $0x148] sm:$0xff]
    %v221 = vld [vmem:[#allocation6 + $0x150] sm:$0xff]
    %v222 = vld [vmem:[#allocation6 + $0x158] sm:$0xff]
    %v223 = vld [vmem:[#allocation6 + $0x160] sm:$0xff]
    %v224 = vld [vmem:[#allocation6 + $0x168] sm:$0xff]
    %v225 = vld [vmem:[#allocation6 + $0x170] sm:$0xff]
    %v226 = vld [vmem:[#allocation6 + $0x178] sm:$0xff]
    %v227 = vld [vmem:[#allocation6 + $0x180] sm:$0xff]
    %v228 = vld [vmem:[#allocation6 + $0x188] sm:$0xff]
    %v229 = vld [vmem:[#allocation6 + $0x190] sm:$0xff]
    %v230 = vld [vmem:[#allocation6 + $0x198] sm:$0xff]
    %v231 = vld [vmem:[#allocation6 + $0x1a0] sm:$0xff]
    %v232 = vld [vmem:[#allocation6 + $0x1a8] sm:$0xff]
    %v233 = vld [vmem:[#allocation6 + $0x1b0] sm:$0xff]
    %v234 = vld [vmem:[#allocation6 + $0x1b8] sm:$0xff]
    %v235 = vld [vmem:[#allocation6 + $0x1c0] sm:$0xff]
    %v236 = vld [vmem:[#allocation6 + $0x1c8] sm:$0xff]
    %v237 = vld [vmem:[#allocation6 + $0x1d0] sm:$0xff]
    %v238 = vld [vmem:[#allocation6 + $0x1d8] sm:$0xff]
    %v239 = vld [vmem:[#allocation6 + $0x1e0] sm:$0xff]
    %v240 = vld [vmem:[#allocation6 + $0x1e8] sm:$0xff]
    %v241 = vld [vmem:[#allocation6 + $0x1f0] sm:$0xff]
    %v242 = vld [vmem:[#allocation6 + $0x1f8] sm:$0xff]
    %v243 = vld [vmem:[#allocation6 + $0x200] sm:$0xff]
    %v244 = vld [vmem:[#allocation6 + $0x208] sm:$0xff]
    %v245 = vld [vmem:[#allocation6 + $0x210] sm:$0xff]
    %v246 = vld [vmem:[#allocation6 + $0x218] sm:$0xff]
    %v247 = vld [vmem:[#allocation6 + $0x220] sm:$0xff]
    %v248 = vld [vmem:[#allocation6 + $0x228] sm:$0xff]
    %v249 = vld [vmem:[#allocation6 + $0x230] sm:$0xff]
    %v250 = vld [vmem:[#allocation6 + $0x238] sm:$0xff]
    %v251 = vld [vmem:[#allocation6 + $0x240] sm:$0xff]
    %v252 = vld [vmem:[#allocation6 + $0x248] sm:$0xff]
    %v253 = vld [vmem:[#allocation6 + $0x250] sm:$0xff]
    %v254 = vld [vmem:[#allocation6 + $0x258] sm:$0xff]
    %v255 = vld [vmem:[#allocation6 + $0x260] sm:$0xff]
    %v256 = vld [vmem:[#allocation6 + $0x268] sm:$0xff]
    %v257 = vld [vmem:[#allocation6 + $0x270] sm:$0xff]
    %v258 = vld [vmem:[#allocation6 + $0x278] sm:$0xff]
    %v259 = vld [vmem:[#allocation6 + $0x280] sm:$0xff]
    %v260 = vld [vmem:[#allocation6 + $0x288] sm:$0xff]
    %v261 = vld [vmem:[#allocation6 + $0x290] sm:$0xff]
    %v262 = vld [vmem:[#allocation6 + $0x298] sm:$0xff]
    %v263 = vld [vmem:[#allocation6 + $0x2a0] sm:$0xff]
    %v264 = vld [vmem:[#allocation6 + $0x2a8] sm:$0xff]
    %v265 = vld [vmem:[#allocation6 + $0x2b0] sm:$0xff]
    %v266 = vld [vmem:[#allocation6 + $0x2b8] sm:$0xff]
    %v267 = vld [vmem:[#allocation6 + $0x2c0] sm:$0xff]
    %v268 = vld [vmem:[#allocation6 + $0x2c8] sm:$0xff]
    %v269 = vld [vmem:[#allocation6 + $0x2d0] sm:$0xff]
    %v270 = vld [vmem:[#allocation6 + $0x2d8] sm:$0xff]
    %v271 = vld [vmem:[#allocation6 + $0x2e0] sm:$0xff]
    %v272 = vld [vmem:[#allocation6 + $0x2e8] sm:$0xff]
    %v273 = vld [vmem:[#allocation6 + $0x2f0] sm:$0xff]
    %v274 = vld [vmem:[#allocation6 + $0x2f8] sm:$0xff]
    %v275 = vld [vmem:[#allocation6 + $0x300] sm:$0xff]
    %v276 = vld [vmem:[#allocation6 + $0x308] sm:$0xff]
    %v277 = vld [vmem:[#allocation6 + $0x310] sm:$0xff]
    %v278 = vld [vmem:[#allocation6 + $0x318] sm:$0xff]
    %v279 = vld [vmem:[#allocation6 + $0x320] sm:$0xff]
    %v280 = vld [vmem:[#allocation6 + $0x328] sm:$0xff]
    %v281 = vld [vmem:[#allocation6 + $0x330] sm:$0xff]
    %v282 = vld [vmem:[#allocation6 + $0x338] sm:$0xff]
    %v283 = vld [vmem:[#allocation6 + $0x340] sm:$0xff]
    %v284 = vld [vmem:[#allocation6 + $0x348] sm:$0xff]
    %v285 = vld [vmem:[#allocation6 + $0x350] sm:$0xff]
    %v286 = vld [vmem:[#allocation6 + $0x358] sm:$0xff]
    %v287 = vld [vmem:[#allocation6 + $0x360] sm:$0xff]
    %v288 = vld [vmem:[#allocation6 + $0x368] sm:$0xff]
    %v289 = vld [vmem:[#allocation6 + $0x370] sm:$0xff]
    %v290 = vld [vmem:[#allocation6 + $0x378] sm:$0xff]
    %v291 = vld [vmem:[#allocation6 + $0x380] sm:$0xff]
    %v292 = vld [vmem:[#allocation6 + $0x388] sm:$0xff]
    %v293 = vld [vmem:[#allocation6 + $0x390] sm:$0xff]
    %v294 = vld [vmem:[#allocation6 + $0x398] sm:$0xff]
    %v295 = vld [vmem:[#allocation6 + $0x3a0] sm:$0xff]
    %v296 = vld [vmem:[#allocation6 + $0x3a8] sm:$0xff]
    %v297 = vld [vmem:[#allocation6 + $0x3b0] sm:$0xff]
    %v298 = vld [vmem:[#allocation6 + $0x3b8] sm:$0xff]
    %v299 = vld [vmem:[#allocation6 + $0x3c0] sm:$0xff]
    %v300 = vld [vmem:[#allocation6 + $0x3c8] sm:$0xff]
    %v301 = vld [vmem:[#allocation6 + $0x3d0] sm:$0xff]
    %v302 = vld [vmem:[#allocation6 + $0x3d8] sm:$0xff]
    %v303 = vld [vmem:[#allocation6 + $0x3e0] sm:$0xff]
    %v304 = vld [vmem:[#allocation6 + $0x3e8] sm:$0xff]
    %v305 = vld [vmem:[#allocation6 + $0x3f0] sm:$0xff]
    %v306 = vld [vmem:[#allocation6 + $0x3f8] sm:$0xff]
    %v307 = vld [vmem:[#allocation6 + $0x400] sm:$0xff]
    %v308 = vld [vmem:[#allocation6 + $0x408] sm:$0xff]
    %v309 = vld [vmem:[#allocation6 + $0x410] sm:$0xff]
    %v310 = vld [vmem:[#allocation6 + $0x418] sm:$0xff]
    %v311 = vld [vmem:[#allocation6 + $0x420] sm:$0xff]
    %v312 = vld [vmem:[#allocation6 + $0x428] sm:$0xff]
    %v313 = vld [vmem:[#allocation6 + $0x430] sm:$0xff]
    %v314 = vld [vmem:[#allocation6 + $0x438] sm:$0xff]
    %v315 = vld [vmem:[#allocation6 + $0x440] sm:$0xff]
    %v316 = vld [vmem:[#allocation6 + $0x448] sm:$0xff]
    %v317 = vld [vmem:[#allocation6 + $0x450] sm:$0xff]
    %v318 = vld [vmem:[#allocation6 + $0x458] sm:$0xff]
    %v319 = vld [vmem:[#allocation6 + $0x460] sm:$0xff]
    %v320 = vld [vmem:[#allocation6 + $0x468] sm:$0xff]
    %v321 = vld [vmem:[#allocation6 + $0x470] sm:$0xff]
    %v322 = vld [vmem:[#allocation6 + $0x478] sm:$0xff]
    %v323 = vld [vmem:[#allocation6 + $0x480] sm:$0xff]
    %v324 = vld [vmem:[#allocation6 + $0x488] sm:$0xff]
    %v325 = vld [vmem:[#allocation6 + $0x490] sm:$0xff]
    %v326 = vld [vmem:[#allocation6 + $0x498] sm:$0xff]
    %v327 = vld [vmem:[#allocation6 + $0x4a0] sm:$0xff]
    %v328 = vld [vmem:[#allocation6 + $0x4a8] sm:$0xff]
    %v329 = vld [vmem:[#allocation6 + $0x4b0] sm:$0xff]
    %v330 = vld [vmem:[#allocation6 + $0x4b8] sm:$0xff]
    %v331 = vld [vmem:[#allocation6 + $0x4c0] sm:$0xff]
    %v332 = vld [vmem:[#allocation6 + $0x4c8] sm:$0xff]
    %v333 = vld [vmem:[#allocation6 + $0x4d0] sm:$0xff]
    %v334 = vld [vmem:[#allocation6 + $0x4d8] sm:$0xff]
    %v335 = vld [vmem:[#allocation6 + $0x4e0] sm:$0xff]
    %v336 = vld [vmem:[#allocation6 + $0x4e8] sm:$0xff]
    %v337 = vld [vmem:[#allocation6 + $0x4f0] sm:$0xff]
    %v338 = vld [vmem:[#allocation6 + $0x4f8] sm:$0xff]
    %v339 = vld [vmem:[#allocation6 + $0x500] sm:$0xff]
    %v340 = vld [vmem:[#allocation6 + $0x508] sm:$0xff]
    %v341 = vld [vmem:[#allocation6 + $0x510] sm:$0xff]
    %v342 = vld [vmem:[#allocation6 + $0x518] sm:$0xff]
    %v343 = vld [vmem:[#allocation6 + $0x520] sm:$0xff]
    %v344 = vld [vmem:[#allocation6 + $0x528] sm:$0xff]
    %v345 = vld [vmem:[#allocation6 + $0x530] sm:$0xff]
    %v346 = vld [vmem:[#allocation6 + $0x538] sm:$0xff]
    %v347 = vld [vmem:[#allocation6 + $0x540] sm:$0xff]
    %v348 = vld [vmem:[#allocation6 + $0x548] sm:$0xff]
    %v349 = vld [vmem:[#allocation6 + $0x550] sm:$0xff]
    %v350 = vld [vmem:[#allocation6 + $0x558] sm:$0xff]
    %v351 = vld [vmem:[#allocation6 + $0x560] sm:$0xff]
    %v352 = vld [vmem:[#allocation6 + $0x568] sm:$0xff]
    %v353 = vld [vmem:[#allocation6 + $0x570] sm:$0xff]
    %v354 = vld [vmem:[#allocation6 + $0x578] sm:$0xff]
    %v355 = vld [vmem:[#allocation6 + $0x580] sm:$0xff]
    %v356 = vld [vmem:[#allocation6 + $0x588] sm:$0xff]
    %v357 = vld [vmem:[#allocation6 + $0x590] sm:$0xff]
    %v358 = vld [vmem:[#allocation6 + $0x598] sm:$0xff]
    %v359 = vld [vmem:[#allocation6 + $0x5a0] sm:$0xff]
    %v360 = vld [vmem:[#allocation6 + $0x5a8] sm:$0xff]
    %v361 = vld [vmem:[#allocation6 + $0x5b0] sm:$0xff]
    %v362 = vld [vmem:[#allocation6 + $0x5b8] sm:$0xff]
    %v363 = vld [vmem:[#allocation6 + $0x5c0] sm:$0xff]
    %v364 = vld [vmem:[#allocation6 + $0x5c8] sm:$0xff]
    %v365 = vld [vmem:[#allocation6 + $0x5d0] sm:$0xff]
    %v366 = vld [vmem:[#allocation6 + $0x5d8] sm:$0xff]
    %v367 = vld [vmem:[#allocation6 + $0x5e0] sm:$0xff]
    %v368 = vld [vmem:[#allocation6 + $0x5e8] sm:$0xff]
    %v369 = vld [vmem:[#allocation6 + $0x5f0] sm:$0xff]
    %v370 = vld [vmem:[#allocation6 + $0x5f8] sm:$0xff]
    %v371 = vld [vmem:[#allocation6 + $0x600] sm:$0xff]
    %v372 = vld [vmem:[#allocation6 + $0x608] sm:$0xff]
    %v373 = vld [vmem:[#allocation6 + $0x610] sm:$0xff]
    %v374 = vld [vmem:[#allocation6 + $0x618] sm:$0xff]
    %v375 = vld [vmem:[#allocation6 + $0x620] sm:$0xff]
    %v376 = vld [vmem:[#allocation6 + $0x628] sm:$0xff]
    %v377 = vld [vmem:[#allocation6 + $0x630] sm:$0xff]
    %v378 = vld [vmem:[#allocation6 + $0x638] sm:$0xff]
    %v379 = vld [vmem:[#allocation6 + $0x640] sm:$0xff]
    %v380 = vld [vmem:[#allocation6 + $0x648] sm:$0xff]
    %v381 = vld [vmem:[#allocation6 + $0x650] sm:$0xff]
    %v382 = vld [vmem:[#allocation6 + $0x658] sm:$0xff]
    %v383 = vld [vmem:[#allocation6 + $0x660] sm:$0xff]
    %v384 = vld [vmem:[#allocation6 + $0x668] sm:$0xff]
    %v385 = vld [vmem:[#allocation6 + $0x670] sm:$0xff]
    %v386 = vld [vmem:[#allocation6 + $0x678] sm:$0xff]
    %v387 = vld [vmem:[#allocation6 + $0x680] sm:$0xff]
    %v388 = vld [vmem:[#allocation6 + $0x688] sm:$0xff]
    %v389 = vld [vmem:[#allocation6 + $0x690] sm:$0xff]
    %v390 = vld [vmem:[#allocation6 + $0x698] sm:$0xff]
    %v391 = vld [vmem:[#allocation6 + $0x6a0] sm:$0xff]
    %v392 = vld [vmem:[#allocation6 + $0x6a8] sm:$0xff]
    %v393 = vld [vmem:[#allocation6 + $0x6b0] sm:$0xff]
    %v394 = vld [vmem:[#allocation6 + $0x6b8] sm:$0xff]
    %v395 = vld [vmem:[#allocation6 + $0x6c0] sm:$0xff]
    %v396 = vld [vmem:[#allocation6 + $0x6c8] sm:$0xff]
    %v397 = vld [vmem:[#allocation6 + $0x6d0] sm:$0xff]
    %v398 = vld [vmem:[#allocation6 + $0x6d8] sm:$0xff]
    %v399 = vld [vmem:[#allocation6 + $0x6e0] sm:$0xff]
    %v400 = vld [vmem:[#allocation6 + $0x6e8] sm:$0xff]
    %v401 = vld [vmem:[#allocation6 + $0x6f0] sm:$0xff]
    %v402 = vld [vmem:[#allocation6 + $0x6f8] sm:$0xff]
    %v403 = vld [vmem:[#allocation6 + $0x700] sm:$0xff]
    %v404 = vld [vmem:[#allocation6 + $0x708] sm:$0xff]
    %v405 = vld [vmem:[#allocation6 + $0x710] sm:$0xff]
    %v406 = vld [vmem:[#allocation6 + $0x718] sm:$0xff]
    %v407 = vld [vmem:[#allocation6 + $0x720] sm:$0xff]
    %v408 = vld [vmem:[#allocation6 + $0x728] sm:$0xff]
    %v409 = vld [vmem:[#allocation6 + $0x730] sm:$0xff]
    %v410 = vld [vmem:[#allocation6 + $0x738] sm:$0xff]
    %v411 = vld [vmem:[#allocation6 + $0x740] sm:$0xff]
    %v412 = vld [vmem:[#allocation6 + $0x748] sm:$0xff]
    %v413 = vld [vmem:[#allocation6 + $0x750] sm:$0xff]
    %v414 = vld [vmem:[#allocation6 + $0x758] sm:$0xff]
    %v415 = vld [vmem:[#allocation6 + $0x760] sm:$0xff]
    %v416 = vld [vmem:[#allocation6 + $0x768] sm:$0xff]
    %v417 = vld [vmem:[#allocation6 + $0x770] sm:$0xff]
    %v418 = vld [vmem:[#allocation6 + $0x778] sm:$0xff]
    %v419 = vld [vmem:[#allocation6 + $0x780] sm:$0xff]
    %v420 = vld [vmem:[#allocation6 + $0x788] sm:$0xff]
    %v421 = vld [vmem:[#allocation6 + $0x790] sm:$0xff]
    %v422 = vld [vmem:[#allocation6 + $0x798] sm:$0xff]
    %v423 = vld [vmem:[#allocation6 + $0x7a0] sm:$0xff]
    %v424 = vld [vmem:[#allocation6 + $0x7a8] sm:$0xff]
    %v425 = vld [vmem:[#allocation6 + $0x7b0] sm:$0xff]
    %v426 = vld [vmem:[#allocation6 + $0x7b8] sm:$0xff]
    %v427 = vld [vmem:[#allocation6 + $0x7c0] sm:$0xff]
    %v428 = vld [vmem:[#allocation6 + $0x7c8] sm:$0xff]
    %v429 = vld [vmem:[#allocation6 + $0x7d0] sm:$0xff]
    %v430 = vld [vmem:[#allocation6 + $0x7d8] sm:$0xff]
    %v431 = vld [vmem:[#allocation6 + $0x7e0] sm:$0xff]
    %v432 = vld [vmem:[#allocation6 + $0x7e8] sm:$0xff]
    %v433 = vld [vmem:[#allocation6 + $0x7f0] sm:$0xff]
    %v434 = vld [vmem:[#allocation6 + $0x7f8] sm:$0xff]
    %v435 = vld [vmem:[#allocation6 + $0x800] sm:$0xff]
    %v436 = vld [vmem:[#allocation6 + $0x808] sm:$0xff]
    %v437 = vld [vmem:[#allocation6 + $0x810] sm:$0xff]
    %v438 = vld [vmem:[#allocation6 + $0x818] sm:$0xff]
    %v439 = vld [vmem:[#allocation6 + $0x820] sm:$0xff]
    %v440 = vld [vmem:[#allocation6 + $0x828] sm:$0xff]
    %v441 = vld [vmem:[#allocation6 + $0x830] sm:$0xff]
    %v442 = vld [vmem:[#allocation6 + $0x838] sm:$0xff]
    %v443 = vld [vmem:[#allocation6 + $0x840] sm:$0xff]
    %v444 = vld [vmem:[#allocation6 + $0x848] sm:$0xff]
    %v445 = vld [vmem:[#allocation6 + $0x850] sm:$0xff]
    %v446 = vld [vmem:[#allocation6 + $0x858] sm:$0xff]
    %v447 = vld [vmem:[#allocation6 + $0x860] sm:$0xff]
    %v448 = vld [vmem:[#allocation6 + $0x868] sm:$0xff]
    %v449 = vld [vmem:[#allocation6 + $0x870] sm:$0xff]
    %v450 = vld [vmem:[#allocation6 + $0x878] sm:$0xff]
    %v451 = vld [vmem:[#allocation6 + $0x880] sm:$0xff]
    %v452 = vld [vmem:[#allocation6 + $0x888] sm:$0xff]
    %v453 = vld [vmem:[#allocation6 + $0x890] sm:$0xff]
    %v454 = vld [vmem:[#allocation6 + $0x898] sm:$0xff]
    %v455 = vld [vmem:[#allocation6 + $0x8a0] sm:$0xff]
    %v456 = vld [vmem:[#allocation6 + $0x8a8] sm:$0xff]
    %v457 = vld [vmem:[#allocation6 + $0x8b0] sm:$0xff]
    %v458 = vld [vmem:[#allocation6 + $0x8b8] sm:$0xff]
    %v459 = vld [vmem:[#allocation6 + $0x8c0] sm:$0xff]
    %v460 = vld [vmem:[#allocation6 + $0x8c8] sm:$0xff]
    %v461 = vld [vmem:[#allocation6 + $0x8d0] sm:$0xff]
    %v462 = vld [vmem:[#allocation6 + $0x8d8] sm:$0xff]
    %v463 = vld [vmem:[#allocation6 + $0x8e0] sm:$0xff]
    %v464 = vld [vmem:[#allocation6 + $0x8e8] sm:$0xff]
    %v465 = vld [vmem:[#allocation6 + $0x8f0] sm:$0xff]
    %v466 = vld [vmem:[#allocation6 + $0x8f8] sm:$0xff]
    %v467 = vld [vmem:[#allocation6 + $0x900] sm:$0xff]
    %v468 = vld [vmem:[#allocation6 + $0x908] sm:$0xff]
    %v469 = vld [vmem:[#allocation6 + $0x910] sm:$0xff]
    %v470 = vld [vmem:[#allocation6 + $0x918] sm:$0xff]
    %v471 = vld [vmem:[#allocation6 + $0x920] sm:$0xff]
    %v472 = vld [vmem:[#allocation6 + $0x928] sm:$0xff]
    %v473 = vld [vmem:[#allocation6 + $0x930] sm:$0xff]
    %v474 = vld [vmem:[#allocation6 + $0x938] sm:$0xff]
    %v475 = vld [vmem:[#allocation6 + $0x940] sm:$0xff]
    %v476 = vld [vmem:[#allocation6 + $0x948] sm:$0xff]
    %v477 = vld [vmem:[#allocation6 + $0x950] sm:$0xff]
    %v478 = vld [vmem:[#allocation6 + $0x958] sm:$0xff]
    %v479 = vld [vmem:[#allocation6 + $0x960] sm:$0xff]
    %v480 = vld [vmem:[#allocation6 + $0x968] sm:$0xff]
    %v481 = vld [vmem:[#allocation6 + $0x970] sm:$0xff]
    %v482 = vld [vmem:[#allocation6 + $0x978] sm:$0xff]
    %v483 = vld [vmem:[#allocation6 + $0x980] sm:$0xff]
    %v484 = vld [vmem:[#allocation6 + $0x988] sm:$0xff]
    %v485 = vld [vmem:[#allocation6 + $0x990] sm:$0xff]
    %v486 = vld [vmem:[#allocation6 + $0x998] sm:$0xff]
    %v487 = vld [vmem:[#allocation6 + $0x9a0] sm:$0xff]
    %v488 = vld [vmem:[#allocation6 + $0x9a8] sm:$0xff]
    %v489 = vld [vmem:[#allocation6 + $0x9b0] sm:$0xff]
    %v490 = vld [vmem:[#allocation6 + $0x9b8] sm:$0xff]
    %v491 = vld [vmem:[#allocation6 + $0x9c0] sm:$0xff]
    %v492 = vld [vmem:[#allocation6 + $0x9c8] sm:$0xff]
    %v493 = vld [vmem:[#allocation6 + $0x9d0] sm:$0xff]
    %v494 = vld [vmem:[#allocation6 + $0x9d8] sm:$0xff]
    %v495 = vld [vmem:[#allocation6 + $0x9e0] sm:$0xff]
    %v496 = vld [vmem:[#allocation6 + $0x9e8] sm:$0xff]
    %v497 = vld [vmem:[#allocation6 + $0x9f0] sm:$0xff]
    %v498 = vld [vmem:[#allocation6 + $0x9f8] sm:$0xff]
    %v499 = vld [vmem:[#allocation7] ss:$8 sm:$0x3]
    %s500 = scalar_lea.vmem [#allocation7], 1
    %v501 = vld [vmem:[%s500] ss:$8 sm:$0x3]
    %v502 = vld [vmem:[#allocation7 + $0x2] ss:$0 sm:$0xff]
    %s503 = scalar_lea.vmem [#allocation7], 3
    %v504 = vld [vmem:[%s503] ss:$8 sm:$0xf]
    %s505 = scalar_lea.vmem [#allocation7], 4
    %v506 = vld [vmem:[%s505] ss:$8 sm:$0xf]
    %s507 = scalar_lea.vmem [#allocation7], 5
    %v508 = vld [vmem:[%s507] ss:$8 sm:$0xf]
    %v510 = vperm.slane %v499, 0
    %v511 = vperm.slane %v499, 1
    %v530 = vunpack.c.l.b16 %v83
    %v531 = vunpack.c.l.b16 %v84
    %v532 = vunpack.c.l.b16 %v85
    %v533 = vunpack.c.l.b16 %v86
    %v534 = vunpack.c.l.b16 %v87
    %v535 = vunpack.c.l.b16 %v88
    %v536 = vunpack.c.l.b16 %v89
    %v537 = vunpack.c.l.b16 %v90
    %v538 = vunpack.c.l.b16 %v91
    %v539 = vunpack.c.l.b16 %v92
    %v540 = vunpack.c.l.b16 %v93
    %v541 = vunpack.c.l.b16 %v94
    %v542 = vunpack.c.l.b16 %v95
    %v543 = vunpack.c.l.b16 %v96
    %v544 = vunpack.c.l.b16 %v97
    %v545 = vunpack.c.l.b16 %v98
    %v546 = vpack.c.b16 %v531, %v530
    %v547 = vpack.c.b16 %v533, %v532
    %v548 = vpack.c.b16 %v535, %v534
    %v549 = vpack.c.b16 %v537, %v536
    %v550 = vpack.c.b16 %v539, %v538
    %v551 = vpack.c.b16 %v541, %v540
    %v552 = vpack.c.b16 %v543, %v542
    %v553 = vpack.c.b16 %v545, %v544
    %v578 = vunpack.c.l.b16 %v99
    %v579 = vunpack.c.h.b16 %v99
    %v580 = vunpack.c.l.b16 %v100
    %v581 = vunpack.c.h.b16 %v100
    %v582 = vunpack.c.l.b16 %v101
    %v583 = vunpack.c.h.b16 %v101
    %v584 = vunpack.c.l.b16 %v102
    %v585 = vunpack.c.h.b16 %v102
    %v586 = vunpack.c.l.b16 %v103
    %v587 = vunpack.c.h.b16 %v103
    %v588 = vunpack.c.l.b16 %v104
    %v589 = vunpack.c.h.b16 %v104
    %v590 = vunpack.c.l.b16 %v105
    %v591 = vunpack.c.h.b16 %v105
    %v592 = vunpack.c.l.b16 %v106
    %v593 = vunpack.c.h.b16 %v106
    %v594 = vunpack.c.l.b16 %v107
    %v595 = vunpack.c.h.b16 %v107
    %v596 = vunpack.c.l.b16 %v108
    %v597 = vunpack.c.h.b16 %v108
    %v598 = vunpack.c.l.b16 %v109
    %v599 = vunpack.c.h.b16 %v109
    %v600 = vunpack.c.l.b16 %v110
    %v601 = vunpack.c.h.b16 %v110
    %v602 = vunpack.c.l.b16 %v111
    %v603 = vunpack.c.h.b16 %v111
    %v604 = vunpack.c.l.b16 %v112
    %v605 = vunpack.c.h.b16 %v112
    %v606 = vunpack.c.l.b16 %v113
    %v607 = vunpack.c.h.b16 %v113
    %v608 = vunpack.c.l.b16 %v114
    %v609 = vunpack.c.h.b16 %v114
    %v610 = vpack.c.b16 %v580, %v578
    %v611 = vpack.c.b16 %v581, %v579
    %v612 = vpack.c.b16 %v584, %v582
    %v613 = vpack.c.b16 %v585, %v583
    %v614 = vpack.c.b16 %v588, %v586
    %v615 = vpack.c.b16 %v589, %v587
    %v616 = vpack.c.b16 %v592, %v590
    %v617 = vpack.c.b16 %v593, %v591
    %v618 = vpack.c.b16 %v596, %v594
    %v619 = vpack.c.b16 %v597, %v595
    %v620 = vpack.c.b16 %v600, %v598
    %v621 = vpack.c.b16 %v601, %v599
    %v622 = vpack.c.b16 %v604, %v602
    %v623 = vpack.c.b16 %v605, %v603
    %v624 = vpack.c.b16 %v608, %v606
    %v625 = vpack.c.b16 %v609, %v607
    %642 = vmatpush.bf16.msra.mxu0 %v624
    %643 = vmatpush.bf16.msra.mxu0 %v622
    %644 = vmatpush.bf16.msra.mxu0 %v620
    %645 = vmatpush.bf16.msra.mxu0 %v618
    %646 = vmatpush.bf16.msra.mxu0 %v616
    %647 = vmatpush.bf16.msra.mxu0 %v614
    %648 = vmatpush.bf16.msra.mxu0 %v612
    %649 = vmatpush.bf16.msra.mxu0 %v610
    %650 = vmatmul.bf16.gmra.mxu0 %v546
    %v651 = vpop.f32.mrf.mxu0
    %v652 = vadd.f32 %v510, %v651
    %v653 = vpop.f32.mrf.mxu0
    %v654 = vadd.f32 %v510, %v653
    %655 = vmatmul.bf16.gmra.mxu0 %v547
    %v656 = vpop.f32.mrf.mxu0
    %v657 = vadd.f32 %v510, %v656
    %v658 = vpop.f32.mrf.mxu0
    %v659 = vadd.f32 %v510, %v658
    %660 = vmatmul.bf16.gmra.mxu0 %v548
    %v661 = vpop.f32.mrf.mxu0
    %v662 = vadd.f32 %v510, %v661
    %v663 = vpop.f32.mrf.mxu0
    %v664 = vadd.f32 %v510, %v663
    %665 = vmatmul.bf16.gmra.mxu0 %v549
    %v666 = vpop.f32.mrf.mxu0
    %v667 = vadd.f32 %v510, %v666
    %v668 = vpop.f32.mrf.mxu0
    %v669 = vadd.f32 %v510, %v668
    %670 = vmatmul.bf16.gmra.mxu0 %v550
    %v671 = vpop.f32.mrf.mxu0
    %v672 = vadd.f32 %v510, %v671
    %v673 = vpop.f32.mrf.mxu0
    %v674 = vadd.f32 %v510, %v673
    %675 = vmatmul.bf16.gmra.mxu0 %v551
    %v676 = vpop.f32.mrf.mxu0
    %v677 = vadd.f32 %v510, %v676
    %v678 = vpop.f32.mrf.mxu0
    %v679 = vadd.f32 %v510, %v678
    %680 = vmatmul.bf16.gmra.mxu0 %v552
    %v681 = vpop.f32.mrf.mxu0
    %v682 = vadd.f32 %v510, %v681
    %v683 = vpop.f32.mrf.mxu0
    %v684 = vadd.f32 %v510, %v683
    %685 = vmatmul.bf16.gmra.mxu0 %v553
    %v686 = vpop.f32.mrf.mxu0
    %v687 = vadd.f32 %v510, %v686
    %v688 = vpop.f32.mrf.mxu0
    %v689 = vadd.f32 %v510, %v688
    %690 = vdwg.mxu0
    %691 = vmatpush.bf16.msra.mxu0 %v625
    %692 = vmatpush.bf16.msra.mxu0 %v623
    %693 = vmatpush.bf16.msra.mxu0 %v621
    %694 = vmatpush.bf16.msra.mxu0 %v619
    %695 = vmatpush.bf16.msra.mxu0 %v617
    %696 = vmatpush.bf16.msra.mxu0 %v615
    %697 = vmatpush.bf16.msra.mxu0 %v613
    %698 = vmatpush.bf16.msra.mxu0 %v611
    %699 = vmatmul.bf16.gmra.mxu0 %v546
    %v700 = vpop.f32.mrf.mxu0
    %v701 = vadd.f32 %v511, %v700
    %v702 = vpop.f32.mrf.mxu0
    %v703 = vadd.f32 %v511, %v702
    %704 = vmatmul.bf16.gmra.mxu0 %v547
    %v705 = vpop.f32.mrf.mxu0
    %v706 = vadd.f32 %v511, %v705
    %v707 = vpop.f32.mrf.mxu0
    %v708 = vadd.f32 %v511, %v707
    %709 = vmatmul.bf16.gmra.mxu0 %v548
    %v710 = vpop.f32.mrf.mxu0
    %v711 = vadd.f32 %v511, %v710
    %v712 = vpop.f32.mrf.mxu0
    %v713 = vadd.f32 %v511, %v712
    %714 = vmatmul.bf16.gmra.mxu0 %v549
    %v715 = vpop.f32.mrf.mxu0
    %v716 = vadd.f32 %v511, %v715
    %v717 = vpop.f32.mrf.mxu0
    %v718 = vadd.f32 %v511, %v717
    %719 = vmatmul.bf16.gmra.mxu0 %v550
    %v720 = vpop.f32.mrf.mxu0
    %v721 = vadd.f32 %v511, %v720
    %v722 = vpop.f32.mrf.mxu0
    %v723 = vadd.f32 %v511, %v722
    %724 = vmatmul.bf16.gmra.mxu0 %v551
    %v725 = vpop.f32.mrf.mxu0
    %v726 = vadd.f32 %v511, %v725
    %v727 = vpop.f32.mrf.mxu0
    %v728 = vadd.f32 %v511, %v727
    %729 = vmatmul.bf16.gmra.mxu0 %v552
    %v730 = vpop.f32.mrf.mxu0
    %v731 = vadd.f32 %v511, %v730
    %v732 = vpop.f32.mrf.mxu0
    %v733 = vadd.f32 %v511, %v732
    %734 = vmatmul.bf16.gmra.mxu0 %v553
    %v735 = vpop.f32.mrf.mxu0
    %v736 = vadd.f32 %v511, %v735
    %v737 = vpop.f32.mrf.mxu0
    %v738 = vadd.f32 %v511, %v737
    %739 = vdwg.mxu0
    %v740 = vmax.f32 %v652, 0.0
    %v741 = vmax.f32 %v701, 0.0
    %v742 = vmax.f32 %v654, 0.0
    %v743 = vmax.f32 %v703, 0.0
    %v744 = vmax.f32 %v657, 0.0
    %v745 = vmax.f32 %v706, 0.0
    %v746 = vmax.f32 %v659, 0.0
    %v747 = vmax.f32 %v708, 0.0
    %v748 = vmax.f32 %v662, 0.0
    %v749 = vmax.f32 %v711, 0.0
    %v750 = vmax.f32 %v664, 0.0
    %v751 = vmax.f32 %v713, 0.0
    %v752 = vmax.f32 %v667, 0.0
    %v753 = vmax.f32 %v716, 0.0
    %v754 = vmax.f32 %v669, 0.0
    %v755 = vmax.f32 %v718, 0.0
    %v756 = vmax.f32 %v672, 0.0
    %v757 = vmax.f32 %v721, 0.0
    %v758 = vmax.f32 %v674, 0.0
    %v759 = vmax.f32 %v723, 0.0
    %v760 = vmax.f32 %v677, 0.0
    %v761 = vmax.f32 %v726, 0.0
    %v762 = vmax.f32 %v679, 0.0
    %v763 = vmax.f32 %v728, 0.0
    %v764 = vmax.f32 %v682, 0.0
    %v765 = vmax.f32 %v731, 0.0
    %v766 = vmax.f32 %v684, 0.0
    %v767 = vmax.f32 %v733, 0.0
    %v768 = vmax.f32 %v687, 0.0
    %v769 = vmax.f32 %v736, 0.0
    %v770 = vmax.f32 %v689, 0.0
    %v771 = vmax.f32 %v738, 0.0
    %v772 = vpack.c.bf16 %v742, %v740
    %v773 = vpack.c.bf16 %v743, %v741
    %v774 = vpack.c.bf16 %v746, %v744
    %v775 = vpack.c.bf16 %v747, %v745
    %v776 = vpack.c.bf16 %v750, %v748
    %v777 = vpack.c.bf16 %v751, %v749
    %v778 = vpack.c.bf16 %v754, %v752
    %v779 = vpack.c.bf16 %v755, %v753
    %v780 = vpack.c.bf16 %v758, %v756
    %v781 = vpack.c.bf16 %v759, %v757
    %v782 = vpack.c.bf16 %v762, %v760
    %v783 = vpack.c.bf16 %v763, %v761
    %v784 = vpack.c.bf16 %v766, %v764
    %v785 = vpack.c.bf16 %v767, %v765
    %v786 = vpack.c.bf16 %v770, %v768
    %v787 = vpack.c.bf16 %v771, %v769
    %v789 = vperm.slane %v501, 0
    %v790 = vperm.slane %v501, 1
    %v825 = vunpack.c.l.b16 %v115
    %v826 = vunpack.c.h.b16 %v115
    %v827 = vunpack.c.l.b16 %v116
    %v828 = vunpack.c.h.b16 %v116
    %v829 = vunpack.c.l.b16 %v117
    %v830 = vunpack.c.h.b16 %v117
    %v831 = vunpack.c.l.b16 %v118
    %v832 = vunpack.c.h.b16 %v118
    %v833 = vunpack.c.l.b16 %v119
    %v834 = vunpack.c.h.b16 %v119
    %v835 = vunpack.c.l.b16 %v120
    %v836 = vunpack.c.h.b16 %v120
    %v837 = vunpack.c.l.b16 %v121
    %v838 = vunpack.c.h.b16 %v121
    %v839 = vunpack.c.l.b16 %v122
    %v840 = vunpack.c.h.b16 %v122
    %v841 = vunpack.c.l.b16 %v123
    %v842 = vunpack.c.h.b16 %v123
    %v843 = vunpack.c.l.b16 %v124
    %v844 = vunpack.c.h.b16 %v124
    %v845 = vunpack.c.l.b16 %v125
    %v846 = vunpack.c.h.b16 %v125
    %v847 = vunpack.c.l.b16 %v126
    %v848 = vunpack.c.h.b16 %v126
    %v849 = vunpack.c.l.b16 %v127
    %v850 = vunpack.c.h.b16 %v127
    %v851 = vunpack.c.l.b16 %v128
    %v852 = vunpack.c.h.b16 %v128
    %v853 = vunpack.c.l.b16 %v129
    %v854 = vunpack.c.h.b16 %v129
    %v855 = vunpack.c.l.b16 %v130
    %v856 = vunpack.c.h.b16 %v130
    %v857 = vunpack.c.l.b16 %v131
    %v858 = vunpack.c.h.b16 %v131
    %v859 = vunpack.c.l.b16 %v132
    %v860 = vunpack.c.h.b16 %v132
    %v861 = vunpack.c.l.b16 %v133
    %v862 = vunpack.c.h.b16 %v133
    %v863 = vunpack.c.l.b16 %v134
    %v864 = vunpack.c.h.b16 %v134
    %v865 = vunpack.c.l.b16 %v135
    %v866 = vunpack.c.h.b16 %v135
    %v867 = vunpack.c.l.b16 %v136
    %v868 = vunpack.c.h.b16 %v136
    %v869 = vunpack.c.l.b16 %v137
    %v870 = vunpack.c.h.b16 %v137
    %v871 = vunpack.c.l.b16 %v138
    %v872 = vunpack.c.h.b16 %v138
    %v873 = vunpack.c.l.b16 %v139
    %v874 = vunpack.c.h.b16 %v139
    %v875 = vunpack.c.l.b16 %v140
    %v876 = vunpack.c.h.b16 %v140
    %v877 = vunpack.c.l.b16 %v141
    %v878 = vunpack.c.h.b16 %v141
    %v879 = vunpack.c.l.b16 %v142
    %v880 = vunpack.c.h.b16 %v142
    %v881 = vunpack.c.l.b16 %v143
    %v882 = vunpack.c.h.b16 %v143
    %v883 = vunpack.c.l.b16 %v144
    %v884 = vunpack.c.h.b16 %v144
    %v885 = vunpack.c.l.b16 %v145
    %v886 = vunpack.c.h.b16 %v145
    %v887 = vunpack.c.l.b16 %v146
    %v888 = vunpack.c.h.b16 %v146
    %v889 = vpack.c.b16 %v827, %v825
    %v890 = vpack.c.b16 %v828, %v826
    %v891 = vpack.c.b16 %v831, %v829
    %v892 = vpack.c.b16 %v832, %v830
    %v893 = vpack.c.b16 %v835, %v833
    %v894 = vpack.c.b16 %v836, %v834
    %v895 = vpack.c.b16 %v839, %v837
    %v896 = vpack.c.b16 %v840, %v838
    %v897 = vpack.c.b16 %v843, %v841
    %v898 = vpack.c.b16 %v844, %v842
    %v899 = vpack.c.b16 %v847, %v845
    %v900 = vpack.c.b16 %v848, %v846
    %v901 = vpack.c.b16 %v851, %v849
    %v902 = vpack.c.b16 %v852, %v850
    %v903 = vpack.c.b16 %v855, %v853
    %v904 = vpack.c.b16 %v856, %v854
    %v905 = vpack.c.b16 %v859, %v857
    %v906 = vpack.c.b16 %v860, %v858
    %v907 = vpack.c.b16 %v863, %v861
    %v908 = vpack.c.b16 %v864, %v862
    %v909 = vpack.c.b16 %v867, %v865
    %v910 = vpack.c.b16 %v868, %v866
    %v911 = vpack.c.b16 %v871, %v869
    %v912 = vpack.c.b16 %v872, %v870
    %v913 = vpack.c.b16 %v875, %v873
    %v914 = vpack.c.b16 %v876, %v874
    %v915 = vpack.c.b16 %v879, %v877
    %v916 = vpack.c.b16 %v880, %v878
    %v917 = vpack.c.b16 %v883, %v881
    %v918 = vpack.c.b16 %v884, %v882
    %v919 = vpack.c.b16 %v887, %v885
    %v920 = vpack.c.b16 %v888, %v886
    %953 = vmatpush.bf16.msra.mxu0 %v903
    %954 = vmatpush.bf16.msra.mxu0 %v901
    %955 = vmatpush.bf16.msra.mxu0 %v899
    %956 = vmatpush.bf16.msra.mxu0 %v897
    %957 = vmatpush.bf16.msra.mxu0 %v895
    %958 = vmatpush.bf16.msra.mxu0 %v893
    %959 = vmatpush.bf16.msra.mxu0 %v891
    %960 = vmatpush.bf16.msra.mxu0 %v889
    %961 = vmatmul.bf16.gmra.mxu0 %v772
    %v962 = vpop.f32.mrf.mxu0
    %v963 = vadd.f32 %v789, %v962
    %v964 = vpop.f32.mrf.mxu0
    %v965 = vadd.f32 %v789, %v964
    %966 = vmatmul.bf16.gmra.mxu0 %v774
    %v967 = vpop.f32.mrf.mxu0
    %v968 = vadd.f32 %v789, %v967
    %v969 = vpop.f32.mrf.mxu0
    %v970 = vadd.f32 %v789, %v969
    %971 = vmatmul.bf16.gmra.mxu0 %v776
    %v972 = vpop.f32.mrf.mxu0
    %v973 = vadd.f32 %v789, %v972
    %v974 = vpop.f32.mrf.mxu0
    %v975 = vadd.f32 %v789, %v974
    %976 = vmatmul.bf16.gmra.mxu0 %v778
    %v977 = vpop.f32.mrf.mxu0
    %v978 = vadd.f32 %v789, %v977
    %v979 = vpop.f32.mrf.mxu0
    %v980 = vadd.f32 %v789, %v979
    %981 = vmatmul.bf16.gmra.mxu0 %v780
    %v982 = vpop.f32.mrf.mxu0
    %v983 = vadd.f32 %v789, %v982
    %v984 = vpop.f32.mrf.mxu0
    %v985 = vadd.f32 %v789, %v984
    %986 = vmatmul.bf16.gmra.mxu0 %v782
    %v987 = vpop.f32.mrf.mxu0
    %v988 = vadd.f32 %v789, %v987
    %v989 = vpop.f32.mrf.mxu0
    %v990 = vadd.f32 %v789, %v989
    %991 = vmatmul.bf16.gmra.mxu0 %v784
    %v992 = vpop.f32.mrf.mxu0
    %v993 = vadd.f32 %v789, %v992
    %v994 = vpop.f32.mrf.mxu0
    %v995 = vadd.f32 %v789, %v994
    %996 = vmatmul.bf16.gmra.mxu0 %v786
    %v997 = vpop.f32.mrf.mxu0
    %v998 = vadd.f32 %v789, %v997
    %v999 = vpop.f32.mrf.mxu0
    %v1000 = vadd.f32 %v789, %v999
    %1001 = vdwg.mxu0
    %1002 = vmatpush.bf16.msra.mxu0 %v919
    %1003 = vmatpush.bf16.msra.mxu0 %v917
    %1004 = vmatpush.bf16.msra.mxu0 %v915
    %1005 = vmatpush.bf16.msra.mxu0 %v913
    %1006 = vmatpush.bf16.msra.mxu0 %v911
    %1007 = vmatpush.bf16.msra.mxu0 %v909
    %1008 = vmatpush.bf16.msra.mxu0 %v907
    %1009 = vmatpush.bf16.msra.mxu0 %v905
    %1010 = vmatmul.bf16.gmra.mxu0 %v773
    %v1011 = vpop.f32.mrf.mxu0
    %v1012 = vadd.f32 %v963, %v1011
    %v1013 = vpop.f32.mrf.mxu0
    %v1014 = vadd.f32 %v965, %v1013
    %1015 = vmatmul.bf16.gmra.mxu0 %v775
    %v1016 = vpop.f32.mrf.mxu0
    %v1017 = vadd.f32 %v968, %v1016
    %v1018 = vpop.f32.mrf.mxu0
    %v1019 = vadd.f32 %v970, %v1018
    %1020 = vmatmul.bf16.gmra.mxu0 %v777
    %v1021 = vpop.f32.mrf.mxu0
    %v1022 = vadd.f32 %v973, %v1021
    %v1023 = vpop.f32.mrf.mxu0
    %v1024 = vadd.f32 %v975, %v1023
    %1025 = vmatmul.bf16.gmra.mxu0 %v779
    %v1026 = vpop.f32.mrf.mxu0
    %v1027 = vadd.f32 %v978, %v1026
    %v1028 = vpop.f32.mrf.mxu0
    %v1029 = vadd.f32 %v980, %v1028
    %1030 = vmatmul.bf16.gmra.mxu0 %v781
    %v1031 = vpop.f32.mrf.mxu0
    %v1032 = vadd.f32 %v983, %v1031
    %v1033 = vpop.f32.mrf.mxu0
    %v1034 = vadd.f32 %v985, %v1033
    %1035 = vmatmul.bf16.gmra.mxu0 %v783
    %v1036 = vpop.f32.mrf.mxu0
    %v1037 = vadd.f32 %v988, %v1036
    %v1038 = vpop.f32.mrf.mxu0
    %v1039 = vadd.f32 %v990, %v1038
    %1040 = vmatmul.bf16.gmra.mxu0 %v785
    %v1041 = vpop.f32.mrf.mxu0
    %v1042 = vadd.f32 %v993, %v1041
    %v1043 = vpop.f32.mrf.mxu0
    %v1044 = vadd.f32 %v995, %v1043
    %1045 = vmatmul.bf16.gmra.mxu0 %v787
    %v1046 = vpop.f32.mrf.mxu0
    %v1047 = vadd.f32 %v998, %v1046
    %v1048 = vpop.f32.mrf.mxu0
    %v1049 = vadd.f32 %v1000, %v1048
    %1050 = vdwg.mxu0
    %1051 = vmatpush.bf16.msra.mxu0 %v904
    %1052 = vmatpush.bf16.msra.mxu0 %v902
    %1053 = vmatpush.bf16.msra.mxu0 %v900
    %1054 = vmatpush.bf16.msra.mxu0 %v898
    %1055 = vmatpush.bf16.msra.mxu0 %v896
    %1056 = vmatpush.bf16.msra.mxu0 %v894
    %1057 = vmatpush.bf16.msra.mxu0 %v892
    %1058 = vmatpush.bf16.msra.mxu0 %v890
    %1059 = vmatmul.bf16.gmra.mxu0 %v772
    %v1060 = vpop.f32.mrf.mxu0
    %v1061 = vadd.f32 %v790, %v1060
    %v1062 = vpop.f32.mrf.mxu0
    %v1063 = vadd.f32 %v790, %v1062
    %1064 = vmatmul.bf16.gmra.mxu0 %v774
    %v1065 = vpop.f32.mrf.mxu0
    %v1066 = vadd.f32 %v790, %v1065
    %v1067 = vpop.f32.mrf.mxu0
    %v1068 = vadd.f32 %v790, %v1067
    %1069 = vmatmul.bf16.gmra.mxu0 %v776
    %v1070 = vpop.f32.mrf.mxu0
    %v1071 = vadd.f32 %v790, %v1070
    %v1072 = vpop.f32.mrf.mxu0
    %v1073 = vadd.f32 %v790, %v1072
    %1074 = vmatmul.bf16.gmra.mxu0 %v778
    %v1075 = vpop.f32.mrf.mxu0
    %v1076 = vadd.f32 %v790, %v1075
    %v1077 = vpop.f32.mrf.mxu0
    %v1078 = vadd.f32 %v790, %v1077
    %1079 = vmatmul.bf16.gmra.mxu0 %v780
    %v1080 = vpop.f32.mrf.mxu0
    %v1081 = vadd.f32 %v790, %v1080
    %v1082 = vpop.f32.mrf.mxu0
    %v1083 = vadd.f32 %v790, %v1082
    %1084 = vmatmul.bf16.gmra.mxu0 %v782
    %v1085 = vpop.f32.mrf.mxu0
    %v1086 = vadd.f32 %v790, %v1085
    %v1087 = vpop.f32.mrf.mxu0
    %v1088 = vadd.f32 %v790, %v1087
    %1089 = vmatmul.bf16.gmra.mxu0 %v784
    %v1090 = vpop.f32.mrf.mxu0
    %v1091 = vadd.f32 %v790, %v1090
    %v1092 = vpop.f32.mrf.mxu0
    %v1093 = vadd.f32 %v790, %v1092
    %1094 = vmatmul.bf16.gmra.mxu0 %v786
    %v1095 = vpop.f32.mrf.mxu0
    %v1096 = vadd.f32 %v790, %v1095
    %v1097 = vpop.f32.mrf.mxu0
    %v1098 = vadd.f32 %v790, %v1097
    %1099 = vdwg.mxu0
    %1100 = vmatpush.bf16.msra.mxu0 %v920
    %1101 = vmatpush.bf16.msra.mxu0 %v918
    %1102 = vmatpush.bf16.msra.mxu0 %v916
    %1103 = vmatpush.bf16.msra.mxu0 %v914
    %1104 = vmatpush.bf16.msra.mxu0 %v912
    %1105 = vmatpush.bf16.msra.mxu0 %v910
    %1106 = vmatpush.bf16.msra.mxu0 %v908
    %1107 = vmatpush.bf16.msra.mxu0 %v906
    %1108 = vmatmul.bf16.gmra.mxu0 %v773
    %v1109 = vpop.f32.mrf.mxu0
    %v1110 = vadd.f32 %v1061, %v1109
    %v1111 = vpop.f32.mrf.mxu0
    %v1112 = vadd.f32 %v1063, %v1111
    %1113 = vmatmul.bf16.gmra.mxu0 %v775
    %v1114 = vpop.f32.mrf.mxu0
    %v1115 = vadd.f32 %v1066, %v1114
    %v1116 = vpop.f32.mrf.mxu0
    %v1117 = vadd.f32 %v1068, %v1116
    %1118 = vmatmul.bf16.gmra.mxu0 %v777
    %v1119 = vpop.f32.mrf.mxu0
    %v1120 = vadd.f32 %v1071, %v1119
    %v1121 = vpop.f32.mrf.mxu0
    %v1122 = vadd.f32 %v1073, %v1121
    %1123 = vmatmul.bf16.gmra.mxu0 %v779
    %v1124 = vpop.f32.mrf.mxu0
    %v1125 = vadd.f32 %v1076, %v1124
    %v1126 = vpop.f32.mrf.mxu0
    %v1127 = vadd.f32 %v1078, %v1126
    %1128 = vmatmul.bf16.gmra.mxu0 %v781
    %v1129 = vpop.f32.mrf.mxu0
    %v1130 = vadd.f32 %v1081, %v1129
    %v1131 = vpop.f32.mrf.mxu0
    %v1132 = vadd.f32 %v1083, %v1131
    %1133 = vmatmul.bf16.gmra.mxu0 %v783
    %v1134 = vpop.f32.mrf.mxu0
    %v1135 = vadd.f32 %v1086, %v1134
    %v1136 = vpop.f32.mrf.mxu0
    %v1137 = vadd.f32 %v1088, %v1136
    %1138 = vmatmul.bf16.gmra.mxu0 %v785
    %v1139 = vpop.f32.mrf.mxu0
    %v1140 = vadd.f32 %v1091, %v1139
    %v1141 = vpop.f32.mrf.mxu0
    %v1142 = vadd.f32 %v1093, %v1141
    %1143 = vmatmul.bf16.gmra.mxu0 %v787
    %v1144 = vpop.f32.mrf.mxu0
    %v1145 = vadd.f32 %v1096, %v1144
    %v1146 = vpop.f32.mrf.mxu0
    %v1147 = vadd.f32 %v1098, %v1146
    %1148 = vdwg.mxu0
    %v1149 = vmax.f32 %v1012, 0.0
    %v1150 = vmax.f32 %v1110, 0.0
    %v1151 = vmax.f32 %v1014, 0.0
    %v1152 = vmax.f32 %v1112, 0.0
    %v1153 = vmax.f32 %v1017, 0.0
    %v1154 = vmax.f32 %v1115, 0.0
    %v1155 = vmax.f32 %v1019, 0.0
    %v1156 = vmax.f32 %v1117, 0.0
    %v1157 = vmax.f32 %v1022, 0.0
    %v1158 = vmax.f32 %v1120, 0.0
    %v1159 = vmax.f32 %v1024, 0.0
    %v1160 = vmax.f32 %v1122, 0.0
    %v1161 = vmax.f32 %v1027, 0.0
    %v1162 = vmax.f32 %v1125, 0.0
    %v1163 = vmax.f32 %v1029, 0.0
    %v1164 = vmax.f32 %v1127, 0.0
    %v1165 = vmax.f32 %v1032, 0.0
    %v1166 = vmax.f32 %v1130, 0.0
    %v1167 = vmax.f32 %v1034, 0.0
    %v1168 = vmax.f32 %v1132, 0.0
    %v1169 = vmax.f32 %v1037, 0.0
    %v1170 = vmax.f32 %v1135, 0.0
    %v1171 = vmax.f32 %v1039, 0.0
    %v1172 = vmax.f32 %v1137, 0.0
    %v1173 = vmax.f32 %v1042, 0.0
    %v1174 = vmax.f32 %v1140, 0.0
    %v1175 = vmax.f32 %v1044, 0.0
    %v1176 = vmax.f32 %v1142, 0.0
    %v1177 = vmax.f32 %v1047, 0.0
    %v1178 = vmax.f32 %v1145, 0.0
    %v1179 = vmax.f32 %v1049, 0.0
    %v1180 = vmax.f32 %v1147, 0.0
    %v1181 = vpack.c.bf16 %v1151, %v1149
    %v1182 = vpack.c.bf16 %v1152, %v1150
    %v1183 = vpack.c.bf16 %v1155, %v1153
    %v1184 = vpack.c.bf16 %v1156, %v1154
    %v1185 = vpack.c.bf16 %v1159, %v1157
    %v1186 = vpack.c.bf16 %v1160, %v1158
    %v1187 = vpack.c.bf16 %v1163, %v1161
    %v1188 = vpack.c.bf16 %v1164, %v1162
    %v1189 = vpack.c.bf16 %v1167, %v1165
    %v1190 = vpack.c.bf16 %v1168, %v1166
    %v1191 = vpack.c.bf16 %v1171, %v1169
    %v1192 = vpack.c.bf16 %v1172, %v1170
    %v1193 = vpack.c.bf16 %v1175, %v1173
    %v1194 = vpack.c.bf16 %v1176, %v1174
    %v1195 = vpack.c.bf16 %v1179, %v1177
    %v1196 = vpack.c.bf16 %v1180, %v1178
    %v1229 = vunpack.c.l.b16 %v147
    %v1230 = vunpack.c.l.b16 %v148
    %v1231 = vunpack.c.l.b16 %v149
    %v1232 = vunpack.c.l.b16 %v150
    %v1233 = vunpack.c.l.b16 %v151
    %v1234 = vunpack.c.l.b16 %v152
    %v1235 = vunpack.c.l.b16 %v153
    %v1236 = vunpack.c.l.b16 %v154
    %v1237 = vunpack.c.l.b16 %v155
    %v1238 = vunpack.c.l.b16 %v156
    %v1239 = vunpack.c.l.b16 %v157
    %v1240 = vunpack.c.l.b16 %v158
    %v1241 = vunpack.c.l.b16 %v159
    %v1242 = vunpack.c.l.b16 %v160
    %v1243 = vunpack.c.l.b16 %v161
    %v1244 = vunpack.c.l.b16 %v162
    %v1245 = vunpack.c.l.b16 %v163
    %v1246 = vunpack.c.l.b16 %v164
    %v1247 = vunpack.c.l.b16 %v165
    %v1248 = vunpack.c.l.b16 %v166
    %v1249 = vunpack.c.l.b16 %v167
    %v1250 = vunpack.c.l.b16 %v168
    %v1251 = vunpack.c.l.b16 %v169
    %v1252 = vunpack.c.l.b16 %v170
    %v1253 = vunpack.c.l.b16 %v171
    %v1254 = vunpack.c.l.b16 %v172
    %v1255 = vunpack.c.l.b16 %v173
    %v1256 = vunpack.c.l.b16 %v174
    %v1257 = vunpack.c.l.b16 %v175
    %v1258 = vunpack.c.l.b16 %v176
    %v1259 = vunpack.c.l.b16 %v177
    %v1260 = vunpack.c.l.b16 %v178
    %v1261 = vpack.c.b16 %v1230, %v1229
    %v1262 = vpack.c.b16 %v1232, %v1231
    %v1263 = vpack.c.b16 %v1234, %v1233
    %v1264 = vpack.c.b16 %v1236, %v1235
    %v1265 = vpack.c.b16 %v1238, %v1237
    %v1266 = vpack.c.b16 %v1240, %v1239
    %v1267 = vpack.c.b16 %v1242, %v1241
    %v1268 = vpack.c.b16 %v1244, %v1243
    %v1269 = vpack.c.b16 %v1246, %v1245
    %v1270 = vpack.c.b16 %v1248, %v1247
    %v1271 = vpack.c.b16 %v1250, %v1249
    %v1272 = vpack.c.b16 %v1252, %v1251
    %v1273 = vpack.c.b16 %v1254, %v1253
    %v1274 = vpack.c.b16 %v1256, %v1255
    %v1275 = vpack.c.b16 %v1258, %v1257
    %v1276 = vpack.c.b16 %v1260, %v1259
    %1293 = vmatpush.bf16.msra.mxu0 %v1268
    %1294 = vmatpush.bf16.msra.mxu0 %v1267
    %1295 = vmatpush.bf16.msra.mxu0 %v1266
    %1296 = vmatpush.bf16.msra.mxu0 %v1265
    %1297 = vmatpush.bf16.msra.mxu0 %v1264
    %1298 = vmatpush.bf16.msra.mxu0 %v1263
    %1299 = vmatpush.bf16.msra.mxu0 %v1262
    %1300 = vmatpush.bf16.msra.mxu0 %v1261
    %1301 = vmatmul.bf16.gmra.mxu0 %v1181
    %v1302 = vpop.f32.mrf.mxu0
    %v1303 = vadd.f32 %v502, %v1302
    %v1304 = vpop.f32.mrf.mxu0
    %v1305 = vadd.f32 %v502, %v1304
    %1306 = vmatmul.bf16.gmra.mxu0 %v1183
    %v1307 = vpop.f32.mrf.mxu0
    %v1308 = vadd.f32 %v502, %v1307
    %v1309 = vpop.f32.mrf.mxu0
    %v1310 = vadd.f32 %v502, %v1309
    %1311 = vmatmul.bf16.gmra.mxu0 %v1185
    %v1312 = vpop.f32.mrf.mxu0
    %v1313 = vadd.f32 %v502, %v1312
    %v1314 = vpop.f32.mrf.mxu0
    %v1315 = vadd.f32 %v502, %v1314
    %1316 = vmatmul.bf16.gmra.mxu0 %v1187
    %v1317 = vpop.f32.mrf.mxu0
    %v1318 = vadd.f32 %v502, %v1317
    %v1319 = vpop.f32.mrf.mxu0
    %v1320 = vadd.f32 %v502, %v1319
    %1321 = vmatmul.bf16.gmra.mxu0 %v1189
    %v1322 = vpop.f32.mrf.mxu0
    %v1323 = vadd.f32 %v502, %v1322
    %v1324 = vpop.f32.mrf.mxu0
    %v1325 = vadd.f32 %v502, %v1324
    %1326 = vmatmul.bf16.gmra.mxu0 %v1191
    %v1327 = vpop.f32.mrf.mxu0
    %v1328 = vadd.f32 %v502, %v1327
    %v1329 = vpop.f32.mrf.mxu0
    %v1330 = vadd.f32 %v502, %v1329
    %1331 = vmatmul.bf16.gmra.mxu0 %v1193
    %v1332 = vpop.f32.mrf.mxu0
    %v1333 = vadd.f32 %v502, %v1332
    %v1334 = vpop.f32.mrf.mxu0
    %v1335 = vadd.f32 %v502, %v1334
    %1336 = vmatmul.bf16.gmra.mxu0 %v1195
    %v1337 = vpop.f32.mrf.mxu0
    %v1338 = vadd.f32 %v502, %v1337
    %v1339 = vpop.f32.mrf.mxu0
    %v1340 = vadd.f32 %v502, %v1339
    %1341 = vdwg.mxu0
    %1342 = vmatpush.bf16.msra.mxu0 %v1276
    %1343 = vmatpush.bf16.msra.mxu0 %v1275
    %1344 = vmatpush.bf16.msra.mxu0 %v1274
    %1345 = vmatpush.bf16.msra.mxu0 %v1273
    %1346 = vmatpush.bf16.msra.mxu0 %v1272
    %1347 = vmatpush.bf16.msra.mxu0 %v1271
    %1348 = vmatpush.bf16.msra.mxu0 %v1270
    %1349 = vmatpush.bf16.msra.mxu0 %v1269
    %1350 = vmatmul.bf16.gmra.mxu0 %v1182
    %v1351 = vpop.f32.mrf.mxu0
    %v1352 = vadd.f32 %v1303, %v1351
    %v1353 = vpop.f32.mrf.mxu0
    %v1354 = vadd.f32 %v1305, %v1353
    %1355 = vmatmul.bf16.gmra.mxu0 %v1184
    %v1356 = vpop.f32.mrf.mxu0
    %v1357 = vadd.f32 %v1308, %v1356
    %v1358 = vpop.f32.mrf.mxu0
    %v1359 = vadd.f32 %v1310, %v1358
    %1360 = vmatmul.bf16.gmra.mxu0 %v1186
    %v1361 = vpop.f32.mrf.mxu0
    %v1362 = vadd.f32 %v1313, %v1361
    %v1363 = vpop.f32.mrf.mxu0
    %v1364 = vadd.f32 %v1315, %v1363
    %1365 = vmatmul.bf16.gmra.mxu0 %v1188
    %v1366 = vpop.f32.mrf.mxu0
    %v1367 = vadd.f32 %v1318, %v1366
    %v1368 = vpop.f32.mrf.mxu0
    %v1369 = vadd.f32 %v1320, %v1368
    %1370 = vmatmul.bf16.gmra.mxu0 %v1190
    %v1371 = vpop.f32.mrf.mxu0
    %v1372 = vadd.f32 %v1323, %v1371
    %v1373 = vpop.f32.mrf.mxu0
    %v1374 = vadd.f32 %v1325, %v1373
    %1375 = vmatmul.bf16.gmra.mxu0 %v1192
    %v1376 = vpop.f32.mrf.mxu0
    %v1377 = vadd.f32 %v1328, %v1376
    %v1378 = vpop.f32.mrf.mxu0
    %v1379 = vadd.f32 %v1330, %v1378
    %1380 = vmatmul.bf16.gmra.mxu0 %v1194
    %v1381 = vpop.f32.mrf.mxu0
    %v1382 = vadd.f32 %v1333, %v1381
    %v1383 = vpop.f32.mrf.mxu0
    %v1384 = vadd.f32 %v1335, %v1383
    %1385 = vmatmul.bf16.gmra.mxu0 %v1196
    %v1386 = vpop.f32.mrf.mxu0
    %v1387 = vadd.f32 %v1338, %v1386
    %v1388 = vpop.f32.mrf.mxu0
    %v1389 = vadd.f32 %v1340, %v1388
    %1390 = vdwg.mxu0
    %1391 = vst [vmem:[%s6] sm:$0xff] %v1352
    %1392 = vst [vmem:[%s6 + $0x8] sm:$0xff] %v1354
    %1393 = vst [vmem:[%s6 + $0x10] sm:$0xff] %v1357
    %1394 = vst [vmem:[%s6 + $0x18] sm:$0xff] %v1359
    %1395 = vst [vmem:[%s6 + $0x20] sm:$0xff] %v1362
    %1396 = vst [vmem:[%s6 + $0x28] sm:$0xff] %v1364
    %1397 = vst [vmem:[%s6 + $0x30] sm:$0xff] %v1367
    %1398 = vst [vmem:[%s6 + $0x38] sm:$0xff] %v1369
    %1399 = vst [vmem:[%s6 + $0x40] sm:$0xff] %v1372
    %1400 = vst [vmem:[%s6 + $0x48] sm:$0xff] %v1374
    %1401 = vst [vmem:[%s6 + $0x50] sm:$0xff] %v1377
    %1402 = vst [vmem:[%s6 + $0x58] sm:$0xff] %v1379
    %1403 = vst [vmem:[%s6 + $0x60] sm:$0xff] %v1382
    %1404 = vst [vmem:[%s6 + $0x68] sm:$0xff] %v1384
    %1405 = vst [vmem:[%s6 + $0x70] sm:$0xff] %v1387
    %1406 = vst [vmem:[%s6 + $0x78] sm:$0xff] %v1389
    %v1407 = vpack.c.bf16 %v1352, %v1352
    %v1408 = vpack.c.bf16 %v1354, %v1354
    %v1409 = vpack.c.bf16 %v1357, %v1357
    %v1410 = vpack.c.bf16 %v1359, %v1359
    %v1411 = vpack.c.bf16 %v1362, %v1362
    %v1412 = vpack.c.bf16 %v1364, %v1364
    %v1413 = vpack.c.bf16 %v1367, %v1367
    %v1414 = vpack.c.bf16 %v1369, %v1369
    %v1415 = vpack.c.bf16 %v1372, %v1372
    %v1416 = vpack.c.bf16 %v1374, %v1374
    %v1417 = vpack.c.bf16 %v1377, %v1377
    %v1418 = vpack.c.bf16 %v1379, %v1379
    %v1419 = vpack.c.bf16 %v1382, %v1382
    %v1420 = vpack.c.bf16 %v1384, %v1384
    %v1421 = vpack.c.bf16 %v1387, %v1387
    %v1422 = vpack.c.bf16 %v1389, %v1389
    %v1439 = vunpack.c.l.b16 %v1407
    %v1440 = vunpack.c.l.b16 %v1408
    %v1441 = vunpack.c.l.b16 %v1409
    %v1442 = vunpack.c.l.b16 %v1410
    %v1443 = vunpack.c.l.b16 %v1411
    %v1444 = vunpack.c.l.b16 %v1412
    %v1445 = vunpack.c.l.b16 %v1413
    %v1446 = vunpack.c.l.b16 %v1414
    %v1447 = vunpack.c.l.b16 %v1415
    %v1448 = vunpack.c.l.b16 %v1416
    %v1449 = vunpack.c.l.b16 %v1417
    %v1450 = vunpack.c.l.b16 %v1418
    %v1451 = vunpack.c.l.b16 %v1419
    %v1452 = vunpack.c.l.b16 %v1420
    %v1453 = vunpack.c.l.b16 %v1421
    %v1454 = vunpack.c.l.b16 %v1422
    %v1455 = vpack.c.b16 %v1440, %v1439
    %v1456 = vpack.c.b16 %v1442, %v1441
    %v1457 = vpack.c.b16 %v1444, %v1443
    %v1458 = vpack.c.b16 %v1446, %v1445
    %v1459 = vpack.c.b16 %v1448, %v1447
    %v1460 = vpack.c.b16 %v1450, %v1449
    %v1461 = vpack.c.b16 %v1452, %v1451
    %v1462 = vpack.c.b16 %v1454, %v1453
    %v1472 = vperm.slane %v504, 0
    %v1473 = vperm.slane %v504, 1
    %v1474 = vperm.slane %v504, 2
    %v1475 = vperm.slane %v504, 3
    %v1544 = vunpack.c.l.b16 %v179
    %v1545 = vunpack.c.h.b16 %v179
    %v1546 = vunpack.c.l.b16 %v180
    %v1547 = vunpack.c.h.b16 %v180
    %v1548 = vunpack.c.l.b16 %v181
    %v1549 = vunpack.c.h.b16 %v181
    %v1550 = vunpack.c.l.b16 %v182
    %v1551 = vunpack.c.h.b16 %v182
    %v1552 = vunpack.c.l.b16 %v183
    %v1553 = vunpack.c.h.b16 %v183
    %v1554 = vunpack.c.l.b16 %v184
    %v1555 = vunpack.c.h.b16 %v184
    %v1556 = vunpack.c.l.b16 %v185
    %v1557 = vunpack.c.h.b16 %v185
    %v1558 = vunpack.c.l.b16 %v186
    %v1559 = vunpack.c.h.b16 %v186
    %v1560 = vunpack.c.l.b16 %v187
    %v1561 = vunpack.c.h.b16 %v187
    %v1562 = vunpack.c.l.b16 %v188
    %v1563 = vunpack.c.h.b16 %v188
    %v1564 = vunpack.c.l.b16 %v189
    %v1565 = vunpack.c.h.b16 %v189
    %v1566 = vunpack.c.l.b16 %v190
    %v1567 = vunpack.c.h.b16 %v190
    %v1568 = vunpack.c.l.b16 %v191
    %v1569 = vunpack.c.h.b16 %v191
    %v1570 = vunpack.c.l.b16 %v192
    %v1571 = vunpack.c.h.b16 %v192
    %v1572 = vunpack.c.l.b16 %v193
    %v1573 = vunpack.c.h.b16 %v193
    %v1574 = vunpack.c.l.b16 %v194
    %v1575 = vunpack.c.h.b16 %v194
    %v1576 = vunpack.c.l.b16 %v195
    %v1577 = vunpack.c.h.b16 %v195
    %v1578 = vunpack.c.l.b16 %v196
    %v1579 = vunpack.c.h.b16 %v196
    %v1580 = vunpack.c.l.b16 %v197
    %v1581 = vunpack.c.h.b16 %v197
    %v1582 = vunpack.c.l.b16 %v198
    %v1583 = vunpack.c.h.b16 %v198
    %v1584 = vunpack.c.l.b16 %v199
    %v1585 = vunpack.c.h.b16 %v199
    %v1586 = vunpack.c.l.b16 %v200
    %v1587 = vunpack.c.h.b16 %v200
    %v1588 = vunpack.c.l.b16 %v201
    %v1589 = vunpack.c.h.b16 %v201
    %v1590 = vunpack.c.l.b16 %v202
    %v1591 = vunpack.c.h.b16 %v202
    %v1592 = vunpack.c.l.b16 %v203
    %v1593 = vunpack.c.h.b16 %v203
    %v1594 = vunpack.c.l.b16 %v204
    %v1595 = vunpack.c.h.b16 %v204
    %v1596 = vunpack.c.l.b16 %v205
    %v1597 = vunpack.c.h.b16 %v205
    %v1598 = vunpack.c.l.b16 %v206
    %v1599 = vunpack.c.h.b16 %v206
    %v1600 = vunpack.c.l.b16 %v207
    %v1601 = vunpack.c.h.b16 %v207
    %v1602 = vunpack.c.l.b16 %v208
    %v1603 = vunpack.c.h.b16 %v208
    %v1604 = vunpack.c.l.b16 %v209
    %v1605 = vunpack.c.h.b16 %v209
    %v1606 = vunpack.c.l.b16 %v210
    %v1607 = vunpack.c.h.b16 %v210
    %v1608 = vunpack.c.l.b16 %v211
    %v1609 = vunpack.c.h.b16 %v211
    %v1610 = vunpack.c.l.b16 %v212
    %v1611 = vunpack.c.h.b16 %v212
    %v1612 = vunpack.c.l.b16 %v213
    %v1613 = vunpack.c.h.b16 %v213
    %v1614 = vunpack.c.l.b16 %v214
    %v1615 = vunpack.c.h.b16 %v214
    %v1616 = vunpack.c.l.b16 %v215
    %v1617 = vunpack.c.h.b16 %v215
    %v1618 = vunpack.c.l.b16 %v216
    %v1619 = vunpack.c.h.b16 %v216
    %v1620 = vunpack.c.l.b16 %v217
    %v1621 = vunpack.c.h.b16 %v217
    %v1622 = vunpack.c.l.b16 %v218
    %v1623 = vunpack.c.h.b16 %v218
    %v1624 = vunpack.c.l.b16 %v219
    %v1625 = vunpack.c.h.b16 %v219
    %v1626 = vunpack.c.l.b16 %v220
    %v1627 = vunpack.c.h.b16 %v220
    %v1628 = vunpack.c.l.b16 %v221
    %v1629 = vunpack.c.h.b16 %v221
    %v1630 = vunpack.c.l.b16 %v222
    %v1631 = vunpack.c.h.b16 %v222
    %v1632 = vunpack.c.l.b16 %v223
    %v1633 = vunpack.c.h.b16 %v223
    %v1634 = vunpack.c.l.b16 %v224
    %v1635 = vunpack.c.h.b16 %v224
    %v1636 = vunpack.c.l.b16 %v225
    %v1637 = vunpack.c.h.b16 %v225
    %v1638 = vunpack.c.l.b16 %v226
    %v1639 = vunpack.c.h.b16 %v226
    %v1640 = vunpack.c.l.b16 %v227
    %v1641 = vunpack.c.h.b16 %v227
    %v1642 = vunpack.c.l.b16 %v228
    %v1643 = vunpack.c.h.b16 %v228
    %v1644 = vunpack.c.l.b16 %v229
    %v1645 = vunpack.c.h.b16 %v229
    %v1646 = vunpack.c.l.b16 %v230
    %v1647 = vunpack.c.h.b16 %v230
    %v1648 = vunpack.c.l.b16 %v231
    %v1649 = vunpack.c.h.b16 %v231
    %v1650 = vunpack.c.l.b16 %v232
    %v1651 = vunpack.c.h.b16 %v232
    %v1652 = vunpack.c.l.b16 %v233
    %v1653 = vunpack.c.h.b16 %v233
    %v1654 = vunpack.c.l.b16 %v234
    %v1655 = vunpack.c.h.b16 %v234
    %v1656 = vunpack.c.l.b16 %v235
    %v1657 = vunpack.c.h.b16 %v235
    %v1658 = vunpack.c.l.b16 %v236
    %v1659 = vunpack.c.h.b16 %v236
    %v1660 = vunpack.c.l.b16 %v237
    %v1661 = vunpack.c.h.b16 %v237
    %v1662 = vunpack.c.l.b16 %v238
    %v1663 = vunpack.c.h.b16 %v238
    %v1664 = vunpack.c.l.b16 %v239
    %v1665 = vunpack.c.h.b16 %v239
    %v1666 = vunpack.c.l.b16 %v240
    %v1667 = vunpack.c.h.b16 %v240
    %v1668 = vunpack.c.l.b16 %v241
    %v1669 = vunpack.c.h.b16 %v241
    %v1670 = vunpack.c.l.b16 %v242
    %v1671 = vunpack.c.h.b16 %v242
    %v1672 = vpack.c.b16 %v1548, %v1544
    %v1673 = vpack.c.b16 %v1549, %v1545
    %v1674 = vpack.c.b16 %v1550, %v1546
    %v1675 = vpack.c.b16 %v1551, %v1547
    %v1676 = vpack.c.b16 %v1556, %v1552
    %v1677 = vpack.c.b16 %v1557, %v1553
    %v1678 = vpack.c.b16 %v1558, %v1554
    %v1679 = vpack.c.b16 %v1559, %v1555
    %v1680 = vpack.c.b16 %v1564, %v1560
    %v1681 = vpack.c.b16 %v1565, %v1561
    %v1682 = vpack.c.b16 %v1566, %v1562
    %v1683 = vpack.c.b16 %v1567, %v1563
    %v1684 = vpack.c.b16 %v1572, %v1568
    %v1685 = vpack.c.b16 %v1573, %v1569
    %v1686 = vpack.c.b16 %v1574, %v1570
    %v1687 = vpack.c.b16 %v1575, %v1571
    %v1688 = vpack.c.b16 %v1580, %v1576
    %v1689 = vpack.c.b16 %v1581, %v1577
    %v1690 = vpack.c.b16 %v1582, %v1578
    %v1691 = vpack.c.b16 %v1583, %v1579
    %v1692 = vpack.c.b16 %v1588, %v1584
    %v1693 = vpack.c.b16 %v1589, %v1585
    %v1694 = vpack.c.b16 %v1590, %v1586
    %v1695 = vpack.c.b16 %v1591, %v1587
    %v1696 = vpack.c.b16 %v1596, %v1592
    %v1697 = vpack.c.b16 %v1597, %v1593
    %v1698 = vpack.c.b16 %v1598, %v1594
    %v1699 = vpack.c.b16 %v1599, %v1595
    %v1700 = vpack.c.b16 %v1604, %v1600
    %v1701 = vpack.c.b16 %v1605, %v1601
    %v1702 = vpack.c.b16 %v1606, %v1602
    %v1703 = vpack.c.b16 %v1607, %v1603
    %v1704 = vpack.c.b16 %v1612, %v1608
    %v1705 = vpack.c.b16 %v1613, %v1609
    %v1706 = vpack.c.b16 %v1614, %v1610
    %v1707 = vpack.c.b16 %v1615, %v1611
    %v1708 = vpack.c.b16 %v1620, %v1616
    %v1709 = vpack.c.b16 %v1621, %v1617
    %v1710 = vpack.c.b16 %v1622, %v1618
    %v1711 = vpack.c.b16 %v1623, %v1619
    %v1712 = vpack.c.b16 %v1628, %v1624
    %v1713 = vpack.c.b16 %v1629, %v1625
    %v1714 = vpack.c.b16 %v1630, %v1626
    %v1715 = vpack.c.b16 %v1631, %v1627
    %v1716 = vpack.c.b16 %v1636, %v1632
    %v1717 = vpack.c.b16 %v1637, %v1633
    %v1718 = vpack.c.b16 %v1638, %v1634
    %v1719 = vpack.c.b16 %v1639, %v1635
    %v1720 = vpack.c.b16 %v1644, %v1640
    %v1721 = vpack.c.b16 %v1645, %v1641
    %v1722 = vpack.c.b16 %v1646, %v1642
    %v1723 = vpack.c.b16 %v1647, %v1643
    %v1724 = vpack.c.b16 %v1652, %v1648
    %v1725 = vpack.c.b16 %v1653, %v1649
    %v1726 = vpack.c.b16 %v1654, %v1650
    %v1727 = vpack.c.b16 %v1655, %v1651
    %v1728 = vpack.c.b16 %v1660, %v1656
    %v1729 = vpack.c.b16 %v1661, %v1657
    %v1730 = vpack.c.b16 %v1662, %v1658
    %v1731 = vpack.c.b16 %v1663, %v1659
    %v1732 = vpack.c.b16 %v1668, %v1664
    %v1733 = vpack.c.b16 %v1669, %v1665
    %v1734 = vpack.c.b16 %v1670, %v1666
    %v1735 = vpack.c.b16 %v1671, %v1667
    %1800 = vmatpush.bf16.msra.mxu0 %v1700
    %1801 = vmatpush.bf16.msra.mxu0 %v1696
    %1802 = vmatpush.bf16.msra.mxu0 %v1692
    %1803 = vmatpush.bf16.msra.mxu0 %v1688
    %1804 = vmatpush.bf16.msra.mxu0 %v1684
    %1805 = vmatpush.bf16.msra.mxu0 %v1680
    %1806 = vmatpush.bf16.msra.mxu0 %v1676
    %1807 = vmatpush.bf16.msra.mxu0 %v1672
    %1808 = vmatmul.bf16.gmra.mxu0 %v546
    %v1809 = vpop.f32.mrf.mxu0
    %v1810 = vadd.f32 %v1472, %v1809
    %v1811 = vpop.f32.mrf.mxu0
    %v1812 = vadd.f32 %v1472, %v1811
    %1813 = vmatmul.bf16.gmra.mxu0 %v547
    %v1814 = vpop.f32.mrf.mxu0
    %v1815 = vadd.f32 %v1472, %v1814
    %v1816 = vpop.f32.mrf.mxu0
    %v1817 = vadd.f32 %v1472, %v1816
    %1818 = vmatmul.bf16.gmra.mxu0 %v548
    %v1819 = vpop.f32.mrf.mxu0
    %v1820 = vadd.f32 %v1472, %v1819
    %v1821 = vpop.f32.mrf.mxu0
    %v1822 = vadd.f32 %v1472, %v1821
    %1823 = vmatmul.bf16.gmra.mxu0 %v549
    %v1824 = vpop.f32.mrf.mxu0
    %v1825 = vadd.f32 %v1472, %v1824
    %v1826 = vpop.f32.mrf.mxu0
    %v1827 = vadd.f32 %v1472, %v1826
    %1828 = vmatmul.bf16.gmra.mxu0 %v550
    %v1829 = vpop.f32.mrf.mxu0
    %v1830 = vadd.f32 %v1472, %v1829
    %v1831 = vpop.f32.mrf.mxu0
    %v1832 = vadd.f32 %v1472, %v1831
    %1833 = vmatmul.bf16.gmra.mxu0 %v551
    %v1834 = vpop.f32.mrf.mxu0
    %v1835 = vadd.f32 %v1472, %v1834
    %v1836 = vpop.f32.mrf.mxu0
    %v1837 = vadd.f32 %v1472, %v1836
    %1838 = vmatmul.bf16.gmra.mxu0 %v552
    %v1839 = vpop.f32.mrf.mxu0
    %v1840 = vadd.f32 %v1472, %v1839
    %v1841 = vpop.f32.mrf.mxu0
    %v1842 = vadd.f32 %v1472, %v1841
    %1843 = vmatmul.bf16.gmra.mxu0 %v553
    %v1844 = vpop.f32.mrf.mxu0
    %v1845 = vadd.f32 %v1472, %v1844
    %v1846 = vpop.f32.mrf.mxu0
    %v1847 = vadd.f32 %v1472, %v1846
    %1848 = vdwg.mxu0
    %1849 = vmatpush.bf16.msra.mxu0 %v1732
    %1850 = vmatpush.bf16.msra.mxu0 %v1728
    %1851 = vmatpush.bf16.msra.mxu0 %v1724
    %1852 = vmatpush.bf16.msra.mxu0 %v1720
    %1853 = vmatpush.bf16.msra.mxu0 %v1716
    %1854 = vmatpush.bf16.msra.mxu0 %v1712
    %1855 = vmatpush.bf16.msra.mxu0 %v1708
    %1856 = vmatpush.bf16.msra.mxu0 %v1704
    %1857 = vmatmul.bf16.gmra.mxu0 %v1455
    %v1858 = vpop.f32.mrf.mxu0
    %v1859 = vadd.f32 %v1810, %v1858
    %v1860 = vpop.f32.mrf.mxu0
    %v1861 = vadd.f32 %v1812, %v1860
    %1862 = vmatmul.bf16.gmra.mxu0 %v1456
    %v1863 = vpop.f32.mrf.mxu0
    %v1864 = vadd.f32 %v1815, %v1863
    %v1865 = vpop.f32.mrf.mxu0
    %v1866 = vadd.f32 %v1817, %v1865
    %1867 = vmatmul.bf16.gmra.mxu0 %v1457
    %v1868 = vpop.f32.mrf.mxu0
    %v1869 = vadd.f32 %v1820, %v1868
    %v1870 = vpop.f32.mrf.mxu0
    %v1871 = vadd.f32 %v1822, %v1870
    %1872 = vmatmul.bf16.gmra.mxu0 %v1458
    %v1873 = vpop.f32.mrf.mxu0
    %v1874 = vadd.f32 %v1825, %v1873
    %v1875 = vpop.f32.mrf.mxu0
    %v1876 = vadd.f32 %v1827, %v1875
    %1877 = vmatmul.bf16.gmra.mxu0 %v1459
    %v1878 = vpop.f32.mrf.mxu0
    %v1879 = vadd.f32 %v1830, %v1878
    %v1880 = vpop.f32.mrf.mxu0
    %v1881 = vadd.f32 %v1832, %v1880
    %1882 = vmatmul.bf16.gmra.mxu0 %v1460
    %v1883 = vpop.f32.mrf.mxu0
    %v1884 = vadd.f32 %v1835, %v1883
    %v1885 = vpop.f32.mrf.mxu0
    %v1886 = vadd.f32 %v1837, %v1885
    %1887 = vmatmul.bf16.gmra.mxu0 %v1461
    %v1888 = vpop.f32.mrf.mxu0
    %v1889 = vadd.f32 %v1840, %v1888
    %v1890 = vpop.f32.mrf.mxu0
    %v1891 = vadd.f32 %v1842, %v1890
    %1892 = vmatmul.bf16.gmra.mxu0 %v1462
    %v1893 = vpop.f32.mrf.mxu0
    %v1894 = vadd.f32 %v1845, %v1893
    %v1895 = vpop.f32.mrf.mxu0
    %v1896 = vadd.f32 %v1847, %v1895
    %1897 = vdwg.mxu0
    %1898 = vmatpush.bf16.msra.mxu0 %v1701
    %1899 = vmatpush.bf16.msra.mxu0 %v1697
    %1900 = vmatpush.bf16.msra.mxu0 %v1693
    %1901 = vmatpush.bf16.msra.mxu0 %v1689
    %1902 = vmatpush.bf16.msra.mxu0 %v1685
    %1903 = vmatpush.bf16.msra.mxu0 %v1681
    %1904 = vmatpush.bf16.msra.mxu0 %v1677
    %1905 = vmatpush.bf16.msra.mxu0 %v1673
    %1906 = vmatmul.bf16.gmra.mxu0 %v546
    %v1907 = vpop.f32.mrf.mxu0
    %v1908 = vadd.f32 %v1473, %v1907
    %v1909 = vpop.f32.mrf.mxu0
    %v1910 = vadd.f32 %v1473, %v1909
    %1911 = vmatmul.bf16.gmra.mxu0 %v547
    %v1912 = vpop.f32.mrf.mxu0
    %v1913 = vadd.f32 %v1473, %v1912
    %v1914 = vpop.f32.mrf.mxu0
    %v1915 = vadd.f32 %v1473, %v1914
    %1916 = vmatmul.bf16.gmra.mxu0 %v548
    %v1917 = vpop.f32.mrf.mxu0
    %v1918 = vadd.f32 %v1473, %v1917
    %v1919 = vpop.f32.mrf.mxu0
    %v1920 = vadd.f32 %v1473, %v1919
    %1921 = vmatmul.bf16.gmra.mxu0 %v549
    %v1922 = vpop.f32.mrf.mxu0
    %v1923 = vadd.f32 %v1473, %v1922
    %v1924 = vpop.f32.mrf.mxu0
    %v1925 = vadd.f32 %v1473, %v1924
    %1926 = vmatmul.bf16.gmra.mxu0 %v550
    %v1927 = vpop.f32.mrf.mxu0
    %v1928 = vadd.f32 %v1473, %v1927
    %v1929 = vpop.f32.mrf.mxu0
    %v1930 = vadd.f32 %v1473, %v1929
    %1931 = vmatmul.bf16.gmra.mxu0 %v551
    %v1932 = vpop.f32.mrf.mxu0
    %v1933 = vadd.f32 %v1473, %v1932
    %v1934 = vpop.f32.mrf.mxu0
    %v1935 = vadd.f32 %v1473, %v1934
    %1936 = vmatmul.bf16.gmra.mxu0 %v552
    %v1937 = vpop.f32.mrf.mxu0
    %v1938 = vadd.f32 %v1473, %v1937
    %v1939 = vpop.f32.mrf.mxu0
    %v1940 = vadd.f32 %v1473, %v1939
    %1941 = vmatmul.bf16.gmra.mxu0 %v553
    %v1942 = vpop.f32.mrf.mxu0
    %v1943 = vadd.f32 %v1473, %v1942
    %v1944 = vpop.f32.mrf.mxu0
    %v1945 = vadd.f32 %v1473, %v1944
    %1946 = vdwg.mxu0
    %1947 = vmatpush.bf16.msra.mxu0 %v1733
    %1948 = vmatpush.bf16.msra.mxu0 %v1729
    %1949 = vmatpush.bf16.msra.mxu0 %v1725
    %1950 = vmatpush.bf16.msra.mxu0 %v1721
    %1951 = vmatpush.bf16.msra.mxu0 %v1717
    %1952 = vmatpush.bf16.msra.mxu0 %v1713
    %1953 = vmatpush.bf16.msra.mxu0 %v1709
    %1954 = vmatpush.bf16.msra.mxu0 %v1705
    %1955 = vmatmul.bf16.gmra.mxu0 %v1455
    %v1956 = vpop.f32.mrf.mxu0
    %v1957 = vadd.f32 %v1908, %v1956
    %v1958 = vpop.f32.mrf.mxu0
    %v1959 = vadd.f32 %v1910, %v1958
    %1960 = vmatmul.bf16.gmra.mxu0 %v1456
    %v1961 = vpop.f32.mrf.mxu0
    %v1962 = vadd.f32 %v1913, %v1961
    %v1963 = vpop.f32.mrf.mxu0
    %v1964 = vadd.f32 %v1915, %v1963
    %1965 = vmatmul.bf16.gmra.mxu0 %v1457
    %v1966 = vpop.f32.mrf.mxu0
    %v1967 = vadd.f32 %v1918, %v1966
    %v1968 = vpop.f32.mrf.mxu0
    %v1969 = vadd.f32 %v1920, %v1968
    %1970 = vmatmul.bf16.gmra.mxu0 %v1458
    %v1971 = vpop.f32.mrf.mxu0
    %v1972 = vadd.f32 %v1923, %v1971
    %v1973 = vpop.f32.mrf.mxu0
    %v1974 = vadd.f32 %v1925, %v1973
    %1975 = vmatmul.bf16.gmra.mxu0 %v1459
    %v1976 = vpop.f32.mrf.mxu0
    %v1977 = vadd.f32 %v1928, %v1976
    %v1978 = vpop.f32.mrf.mxu0
    %v1979 = vadd.f32 %v1930, %v1978
    %1980 = vmatmul.bf16.gmra.mxu0 %v1460
    %v1981 = vpop.f32.mrf.mxu0
    %v1982 = vadd.f32 %v1933, %v1981
    %v1983 = vpop.f32.mrf.mxu0
    %v1984 = vadd.f32 %v1935, %v1983
    %1985 = vmatmul.bf16.gmra.mxu0 %v1461
    %v1986 = vpop.f32.mrf.mxu0
    %v1987 = vadd.f32 %v1938, %v1986
    %v1988 = vpop.f32.mrf.mxu0
    %v1989 = vadd.f32 %v1940, %v1988
    %1990 = vmatmul.bf16.gmra.mxu0 %v1462
    %v1991 = vpop.f32.mrf.mxu0
    %v1992 = vadd.f32 %v1943, %v1991
    %v1993 = vpop.f32.mrf.mxu0
    %v1994 = vadd.f32 %v1945, %v1993
    %1995 = vdwg.mxu0
    %1996 = vmatpush.bf16.msra.mxu0 %v1702
    %1997 = vmatpush.bf16.msra.mxu0 %v1698
    %1998 = vmatpush.bf16.msra.mxu0 %v1694
    %1999 = vmatpush.bf16.msra.mxu0 %v1690
    %2000 = vmatpush.bf16.msra.mxu0 %v1686
    %2001 = vmatpush.bf16.msra.mxu0 %v1682
    %2002 = vmatpush.bf16.msra.mxu0 %v1678
    %2003 = vmatpush.bf16.msra.mxu0 %v1674
    %2004 = vmatmul.bf16.gmra.mxu0 %v546
    %v2005 = vpop.f32.mrf.mxu0
    %v2006 = vadd.f32 %v1474, %v2005
    %v2007 = vpop.f32.mrf.mxu0
    %v2008 = vadd.f32 %v1474, %v2007
    %2009 = vmatmul.bf16.gmra.mxu0 %v547
    %v2010 = vpop.f32.mrf.mxu0
    %v2011 = vadd.f32 %v1474, %v2010
    %v2012 = vpop.f32.mrf.mxu0
    %v2013 = vadd.f32 %v1474, %v2012
    %2014 = vmatmul.bf16.gmra.mxu0 %v548
    %v2015 = vpop.f32.mrf.mxu0
    %v2016 = vadd.f32 %v1474, %v2015
    %v2017 = vpop.f32.mrf.mxu0
    %v2018 = vadd.f32 %v1474, %v2017
    %2019 = vmatmul.bf16.gmra.mxu0 %v549
    %v2020 = vpop.f32.mrf.mxu0
    %v2021 = vadd.f32 %v1474, %v2020
    %v2022 = vpop.f32.mrf.mxu0
    %v2023 = vadd.f32 %v1474, %v2022
    %2024 = vmatmul.bf16.gmra.mxu0 %v550
    %v2025 = vpop.f32.mrf.mxu0
    %v2026 = vadd.f32 %v1474, %v2025
    %v2027 = vpop.f32.mrf.mxu0
    %v2028 = vadd.f32 %v1474, %v2027
    %2029 = vmatmul.bf16.gmra.mxu0 %v551
    %v2030 = vpop.f32.mrf.mxu0
    %v2031 = vadd.f32 %v1474, %v2030
    %v2032 = vpop.f32.mrf.mxu0
    %v2033 = vadd.f32 %v1474, %v2032
    %2034 = vmatmul.bf16.gmra.mxu0 %v552
    %v2035 = vpop.f32.mrf.mxu0
    %v2036 = vadd.f32 %v1474, %v2035
    %v2037 = vpop.f32.mrf.mxu0
    %v2038 = vadd.f32 %v1474, %v2037
    %2039 = vmatmul.bf16.gmra.mxu0 %v553
    %v2040 = vpop.f32.mrf.mxu0
    %v2041 = vadd.f32 %v1474, %v2040
    %v2042 = vpop.f32.mrf.mxu0
    %v2043 = vadd.f32 %v1474, %v2042
    %2044 = vdwg.mxu0
    %2045 = vmatpush.bf16.msra.mxu0 %v1734
    %2046 = vmatpush.bf16.msra.mxu0 %v1730
    %2047 = vmatpush.bf16.msra.mxu0 %v1726
    %2048 = vmatpush.bf16.msra.mxu0 %v1722
    %2049 = vmatpush.bf16.msra.mxu0 %v1718
    %2050 = vmatpush.bf16.msra.mxu0 %v1714
    %2051 = vmatpush.bf16.msra.mxu0 %v1710
    %2052 = vmatpush.bf16.msra.mxu0 %v1706
    %2053 = vmatmul.bf16.gmra.mxu0 %v1455
    %v2054 = vpop.f32.mrf.mxu0
    %v2055 = vadd.f32 %v2006, %v2054
    %v2056 = vpop.f32.mrf.mxu0
    %v2057 = vadd.f32 %v2008, %v2056
    %2058 = vmatmul.bf16.gmra.mxu0 %v1456
    %v2059 = vpop.f32.mrf.mxu0
    %v2060 = vadd.f32 %v2011, %v2059
    %v2061 = vpop.f32.mrf.mxu0
    %v2062 = vadd.f32 %v2013, %v2061
    %2063 = vmatmul.bf16.gmra.mxu0 %v1457
    %v2064 = vpop.f32.mrf.mxu0
    %v2065 = vadd.f32 %v2016, %v2064
    %v2066 = vpop.f32.mrf.mxu0
    %v2067 = vadd.f32 %v2018, %v2066
    %2068 = vmatmul.bf16.gmra.mxu0 %v1458
    %v2069 = vpop.f32.mrf.mxu0
    %v2070 = vadd.f32 %v2021, %v2069
    %v2071 = vpop.f32.mrf.mxu0
    %v2072 = vadd.f32 %v2023, %v2071
    %2073 = vmatmul.bf16.gmra.mxu0 %v1459
    %v2074 = vpop.f32.mrf.mxu0
    %v2075 = vadd.f32 %v2026, %v2074
    %v2076 = vpop.f32.mrf.mxu0
    %v2077 = vadd.f32 %v2028, %v2076
    %2078 = vmatmul.bf16.gmra.mxu0 %v1460
    %v2079 = vpop.f32.mrf.mxu0
    %v2080 = vadd.f32 %v2031, %v2079
    %v2081 = vpop.f32.mrf.mxu0
    %v2082 = vadd.f32 %v2033, %v2081
    %2083 = vmatmul.bf16.gmra.mxu0 %v1461
    %v2084 = vpop.f32.mrf.mxu0
    %v2085 = vadd.f32 %v2036, %v2084
    %v2086 = vpop.f32.mrf.mxu0
    %v2087 = vadd.f32 %v2038, %v2086
    %2088 = vmatmul.bf16.gmra.mxu0 %v1462
    %v2089 = vpop.f32.mrf.mxu0
    %v2090 = vadd.f32 %v2041, %v2089
    %v2091 = vpop.f32.mrf.mxu0
    %v2092 = vadd.f32 %v2043, %v2091
    %2093 = vdwg.mxu0
    %2094 = vmatpush.bf16.msra.mxu0 %v1703
    %2095 = vmatpush.bf16.msra.mxu0 %v1699
    %2096 = vmatpush.bf16.msra.mxu0 %v1695
    %2097 = vmatpush.bf16.msra.mxu0 %v1691
    %2098 = vmatpush.bf16.msra.mxu0 %v1687
    %2099 = vmatpush.bf16.msra.mxu0 %v1683
    %2100 = vmatpush.bf16.msra.mxu0 %v1679
    %2101 = vmatpush.bf16.msra.mxu0 %v1675
    %2102 = vmatmul.bf16.gmra.mxu0 %v546
    %v2103 = vpop.f32.mrf.mxu0
    %v2104 = vadd.f32 %v1475, %v2103
    %v2105 = vpop.f32.mrf.mxu0
    %v2106 = vadd.f32 %v1475, %v2105
    %2107 = vmatmul.bf16.gmra.mxu0 %v547
    %v2108 = vpop.f32.mrf.mxu0
    %v2109 = vadd.f32 %v1475, %v2108
    %v2110 = vpop.f32.mrf.mxu0
    %v2111 = vadd.f32 %v1475, %v2110
    %2112 = vmatmul.bf16.gmra.mxu0 %v548
    %v2113 = vpop.f32.mrf.mxu0
    %v2114 = vadd.f32 %v1475, %v2113
    %v2115 = vpop.f32.mrf.mxu0
    %v2116 = vadd.f32 %v1475, %v2115
    %2117 = vmatmul.bf16.gmra.mxu0 %v549
    %v2118 = vpop.f32.mrf.mxu0
    %v2119 = vadd.f32 %v1475, %v2118
    %v2120 = vpop.f32.mrf.mxu0
    %v2121 = vadd.f32 %v1475, %v2120
    %2122 = vmatmul.bf16.gmra.mxu0 %v550
    %v2123 = vpop.f32.mrf.mxu0
    %v2124 = vadd.f32 %v1475, %v2123
    %v2125 = vpop.f32.mrf.mxu0
    %v2126 = vadd.f32 %v1475, %v2125
    %2127 = vmatmul.bf16.gmra.mxu0 %v551
    %v2128 = vpop.f32.mrf.mxu0
    %v2129 = vadd.f32 %v1475, %v2128
    %v2130 = vpop.f32.mrf.mxu0
    %v2131 = vadd.f32 %v1475, %v2130
    %2132 = vmatmul.bf16.gmra.mxu0 %v552
    %v2133 = vpop.f32.mrf.mxu0
    %v2134 = vadd.f32 %v1475, %v2133
    %v2135 = vpop.f32.mrf.mxu0
    %v2136 = vadd.f32 %v1475, %v2135
    %2137 = vmatmul.bf16.gmra.mxu0 %v553
    %v2138 = vpop.f32.mrf.mxu0
    %v2139 = vadd.f32 %v1475, %v2138
    %v2140 = vpop.f32.mrf.mxu0
    %v2141 = vadd.f32 %v1475, %v2140
    %2142 = vdwg.mxu0
    %2143 = vmatpush.bf16.msra.mxu0 %v1735
    %2144 = vmatpush.bf16.msra.mxu0 %v1731
    %2145 = vmatpush.bf16.msra.mxu0 %v1727
    %2146 = vmatpush.bf16.msra.mxu0 %v1723
    %2147 = vmatpush.bf16.msra.mxu0 %v1719
    %2148 = vmatpush.bf16.msra.mxu0 %v1715
    %2149 = vmatpush.bf16.msra.mxu0 %v1711
    %2150 = vmatpush.bf16.msra.mxu0 %v1707
    %2151 = vmatmul.bf16.gmra.mxu0 %v1455
    %v2152 = vpop.f32.mrf.mxu0
    %v2153 = vadd.f32 %v2104, %v2152
    %v2154 = vpop.f32.mrf.mxu0
    %v2155 = vadd.f32 %v2106, %v2154
    %2156 = vmatmul.bf16.gmra.mxu0 %v1456
    %v2157 = vpop.f32.mrf.mxu0
    %v2158 = vadd.f32 %v2109, %v2157
    %v2159 = vpop.f32.mrf.mxu0
    %v2160 = vadd.f32 %v2111, %v2159
    %2161 = vmatmul.bf16.gmra.mxu0 %v1457
    %v2162 = vpop.f32.mrf.mxu0
    %v2163 = vadd.f32 %v2114, %v2162
    %v2164 = vpop.f32.mrf.mxu0
    %v2165 = vadd.f32 %v2116, %v2164
    %2166 = vmatmul.bf16.gmra.mxu0 %v1458
    %v2167 = vpop.f32.mrf.mxu0
    %v2168 = vadd.f32 %v2119, %v2167
    %v2169 = vpop.f32.mrf.mxu0
    %v2170 = vadd.f32 %v2121, %v2169
    %2171 = vmatmul.bf16.gmra.mxu0 %v1459
    %v2172 = vpop.f32.mrf.mxu0
    %v2173 = vadd.f32 %v2124, %v2172
    %v2174 = vpop.f32.mrf.mxu0
    %v2175 = vadd.f32 %v2126, %v2174
    %2176 = vmatmul.bf16.gmra.mxu0 %v1460
    %v2177 = vpop.f32.mrf.mxu0
    %v2178 = vadd.f32 %v2129, %v2177
    %v2179 = vpop.f32.mrf.mxu0
    %v2180 = vadd.f32 %v2131, %v2179
    %2181 = vmatmul.bf16.gmra.mxu0 %v1461
    %v2182 = vpop.f32.mrf.mxu0
    %v2183 = vadd.f32 %v2134, %v2182
    %v2184 = vpop.f32.mrf.mxu0
    %v2185 = vadd.f32 %v2136, %v2184
    %2186 = vmatmul.bf16.gmra.mxu0 %v1462
    %v2187 = vpop.f32.mrf.mxu0
    %v2188 = vadd.f32 %v2139, %v2187
    %v2189 = vpop.f32.mrf.mxu0
    %v2190 = vadd.f32 %v2141, %v2189
    %2191 = vdwg.mxu0
    %v2192 = vmax.f32 %v1859, 0.0
    %v2193 = vmax.f32 %v1957, 0.0
    %v2194 = vmax.f32 %v2055, 0.0
    %v2195 = vmax.f32 %v2153, 0.0
    %v2196 = vmax.f32 %v1861, 0.0
    %v2197 = vmax.f32 %v1959, 0.0
    %v2198 = vmax.f32 %v2057, 0.0
    %v2199 = vmax.f32 %v2155, 0.0
    %v2200 = vmax.f32 %v1864, 0.0
    %v2201 = vmax.f32 %v1962, 0.0
    %v2202 = vmax.f32 %v2060, 0.0
    %v2203 = vmax.f32 %v2158, 0.0
    %v2204 = vmax.f32 %v1866, 0.0
    %v2205 = vmax.f32 %v1964, 0.0
    %v2206 = vmax.f32 %v2062, 0.0
    %v2207 = vmax.f32 %v2160, 0.0
    %v2208 = vmax.f32 %v1869, 0.0
    %v2209 = vmax.f32 %v1967, 0.0
    %v2210 = vmax.f32 %v2065, 0.0
    %v2211 = vmax.f32 %v2163, 0.0
    %v2212 = vmax.f32 %v1871, 0.0
    %v2213 = vmax.f32 %v1969, 0.0
    %v2214 = vmax.f32 %v2067, 0.0
    %v2215 = vmax.f32 %v2165, 0.0
    %v2216 = vmax.f32 %v1874, 0.0
    %v2217 = vmax.f32 %v1972, 0.0
    %v2218 = vmax.f32 %v2070, 0.0
    %v2219 = vmax.f32 %v2168, 0.0
    %v2220 = vmax.f32 %v1876, 0.0
    %v2221 = vmax.f32 %v1974, 0.0
    %v2222 = vmax.f32 %v2072, 0.0
    %v2223 = vmax.f32 %v2170, 0.0
    %v2224 = vmax.f32 %v1879, 0.0
    %v2225 = vmax.f32 %v1977, 0.0
    %v2226 = vmax.f32 %v2075, 0.0
    %v2227 = vmax.f32 %v2173, 0.0
    %v2228 = vmax.f32 %v1881, 0.0
    %v2229 = vmax.f32 %v1979, 0.0
    %v2230 = vmax.f32 %v2077, 0.0
    %v2231 = vmax.f32 %v2175, 0.0
    %v2232 = vmax.f32 %v1884, 0.0
    %v2233 = vmax.f32 %v1982, 0.0
    %v2234 = vmax.f32 %v2080, 0.0
    %v2235 = vmax.f32 %v2178, 0.0
    %v2236 = vmax.f32 %v1886, 0.0
    %v2237 = vmax.f32 %v1984, 0.0
    %v2238 = vmax.f32 %v2082, 0.0
    %v2239 = vmax.f32 %v2180, 0.0
    %v2240 = vmax.f32 %v1889, 0.0
    %v2241 = vmax.f32 %v1987, 0.0
    %v2242 = vmax.f32 %v2085, 0.0
    %v2243 = vmax.f32 %v2183, 0.0
    %v2244 = vmax.f32 %v1891, 0.0
    %v2245 = vmax.f32 %v1989, 0.0
    %v2246 = vmax.f32 %v2087, 0.0
    %v2247 = vmax.f32 %v2185, 0.0
    %v2248 = vmax.f32 %v1894, 0.0
    %v2249 = vmax.f32 %v1992, 0.0
    %v2250 = vmax.f32 %v2090, 0.0
    %v2251 = vmax.f32 %v2188, 0.0
    %v2252 = vmax.f32 %v1896, 0.0
    %v2253 = vmax.f32 %v1994, 0.0
    %v2254 = vmax.f32 %v2092, 0.0
    %v2255 = vmax.f32 %v2190, 0.0
    %v2256 = vpack.c.bf16 %v2196, %v2192
    %v2257 = vpack.c.bf16 %v2197, %v2193
    %v2258 = vpack.c.bf16 %v2198, %v2194
    %v2259 = vpack.c.bf16 %v2199, %v2195
    %v2260 = vpack.c.bf16 %v2204, %v2200
    %v2261 = vpack.c.bf16 %v2205, %v2201
    %v2262 = vpack.c.bf16 %v2206, %v2202
    %v2263 = vpack.c.bf16 %v2207, %v2203
    %v2264 = vpack.c.bf16 %v2212, %v2208
    %v2265 = vpack.c.bf16 %v2213, %v2209
    %v2266 = vpack.c.bf16 %v2214, %v2210
    %v2267 = vpack.c.bf16 %v2215, %v2211
    %v2268 = vpack.c.bf16 %v2220, %v2216
    %v2269 = vpack.c.bf16 %v2221, %v2217
    %v2270 = vpack.c.bf16 %v2222, %v2218
    %v2271 = vpack.c.bf16 %v2223, %v2219
    %v2272 = vpack.c.bf16 %v2228, %v2224
    %v2273 = vpack.c.bf16 %v2229, %v2225
    %v2274 = vpack.c.bf16 %v2230, %v2226
    %v2275 = vpack.c.bf16 %v2231, %v2227
    %v2276 = vpack.c.bf16 %v2236, %v2232
    %v2277 = vpack.c.bf16 %v2237, %v2233
    %v2278 = vpack.c.bf16 %v2238, %v2234
    %v2279 = vpack.c.bf16 %v2239, %v2235
    %v2280 = vpack.c.bf16 %v2244, %v2240
    %v2281 = vpack.c.bf16 %v2245, %v2241
    %v2282 = vpack.c.bf16 %v2246, %v2242
    %v2283 = vpack.c.bf16 %v2247, %v2243
    %v2284 = vpack.c.bf16 %v2252, %v2248
    %v2285 = vpack.c.bf16 %v2253, %v2249
    %v2286 = vpack.c.bf16 %v2254, %v2250
    %v2287 = vpack.c.bf16 %v2255, %v2251
    %v2289 = vperm.slane %v506, 0
    %v2290 = vperm.slane %v506, 1
    %v2291 = vperm.slane %v506, 2
    %v2292 = vperm.slane %v506, 3
    %v2425 = vunpack.c.l.b16 %v243
    %v2426 = vunpack.c.h.b16 %v243
    %v2427 = vunpack.c.l.b16 %v244
    %v2428 = vunpack.c.h.b16 %v244
    %v2429 = vunpack.c.l.b16 %v245
    %v2430 = vunpack.c.h.b16 %v245
    %v2431 = vunpack.c.l.b16 %v246
    %v2432 = vunpack.c.h.b16 %v246
    %v2433 = vunpack.c.l.b16 %v247
    %v2434 = vunpack.c.h.b16 %v247
    %v2435 = vunpack.c.l.b16 %v248
    %v2436 = vunpack.c.h.b16 %v248
    %v2437 = vunpack.c.l.b16 %v249
    %v2438 = vunpack.c.h.b16 %v249
    %v2439 = vunpack.c.l.b16 %v250
    %v2440 = vunpack.c.h.b16 %v250
    %v2441 = vunpack.c.l.b16 %v251
    %v2442 = vunpack.c.h.b16 %v251
    %v2443 = vunpack.c.l.b16 %v252
    %v2444 = vunpack.c.h.b16 %v252
    %v2445 = vunpack.c.l.b16 %v253
    %v2446 = vunpack.c.h.b16 %v253
    %v2447 = vunpack.c.l.b16 %v254
    %v2448 = vunpack.c.h.b16 %v254
    %v2449 = vunpack.c.l.b16 %v255
    %v2450 = vunpack.c.h.b16 %v255
    %v2451 = vunpack.c.l.b16 %v256
    %v2452 = vunpack.c.h.b16 %v256
    %v2453 = vunpack.c.l.b16 %v257
    %v2454 = vunpack.c.h.b16 %v257
    %v2455 = vunpack.c.l.b16 %v258
    %v2456 = vunpack.c.h.b16 %v258
    %v2457 = vunpack.c.l.b16 %v259
    %v2458 = vunpack.c.h.b16 %v259
    %v2459 = vunpack.c.l.b16 %v260
    %v2460 = vunpack.c.h.b16 %v260
    %v2461 = vunpack.c.l.b16 %v261
    %v2462 = vunpack.c.h.b16 %v261
    %v2463 = vunpack.c.l.b16 %v262
    %v2464 = vunpack.c.h.b16 %v262
    %v2465 = vunpack.c.l.b16 %v263
    %v2466 = vunpack.c.h.b16 %v263
    %v2467 = vunpack.c.l.b16 %v264
    %v2468 = vunpack.c.h.b16 %v264
    %v2469 = vunpack.c.l.b16 %v265
    %v2470 = vunpack.c.h.b16 %v265
    %v2471 = vunpack.c.l.b16 %v266
    %v2472 = vunpack.c.h.b16 %v266
    %v2473 = vunpack.c.l.b16 %v267
    %v2474 = vunpack.c.h.b16 %v267
    %v2475 = vunpack.c.l.b16 %v268
    %v2476 = vunpack.c.h.b16 %v268
    %v2477 = vunpack.c.l.b16 %v269
    %v2478 = vunpack.c.h.b16 %v269
    %v2479 = vunpack.c.l.b16 %v270
    %v2480 = vunpack.c.h.b16 %v270
    %v2481 = vunpack.c.l.b16 %v271
    %v2482 = vunpack.c.h.b16 %v271
    %v2483 = vunpack.c.l.b16 %v272
    %v2484 = vunpack.c.h.b16 %v272
    %v2485 = vunpack.c.l.b16 %v273
    %v2486 = vunpack.c.h.b16 %v273
    %v2487 = vunpack.c.l.b16 %v274
    %v2488 = vunpack.c.h.b16 %v274
    %v2489 = vunpack.c.l.b16 %v275
    %v2490 = vunpack.c.h.b16 %v275
    %v2491 = vunpack.c.l.b16 %v276
    %v2492 = vunpack.c.h.b16 %v276
    %v2493 = vunpack.c.l.b16 %v277
    %v2494 = vunpack.c.h.b16 %v277
    %v2495 = vunpack.c.l.b16 %v278
    %v2496 = vunpack.c.h.b16 %v278
    %v2497 = vunpack.c.l.b16 %v279
    %v2498 = vunpack.c.h.b16 %v279
    %v2499 = vunpack.c.l.b16 %v280
    %v2500 = vunpack.c.h.b16 %v280
    %v2501 = vunpack.c.l.b16 %v281
    %v2502 = vunpack.c.h.b16 %v281
    %v2503 = vunpack.c.l.b16 %v282
    %v2504 = vunpack.c.h.b16 %v282
    %v2505 = vunpack.c.l.b16 %v283
    %v2506 = vunpack.c.h.b16 %v283
    %v2507 = vunpack.c.l.b16 %v284
    %v2508 = vunpack.c.h.b16 %v284
    %v2509 = vunpack.c.l.b16 %v285
    %v2510 = vunpack.c.h.b16 %v285
    %v2511 = vunpack.c.l.b16 %v286
    %v2512 = vunpack.c.h.b16 %v286
    %v2513 = vunpack.c.l.b16 %v287
    %v2514 = vunpack.c.h.b16 %v287
    %v2515 = vunpack.c.l.b16 %v288
    %v2516 = vunpack.c.h.b16 %v288
    %v2517 = vunpack.c.l.b16 %v289
    %v2518 = vunpack.c.h.b16 %v289
    %v2519 = vunpack.c.l.b16 %v290
    %v2520 = vunpack.c.h.b16 %v290
    %v2521 = vunpack.c.l.b16 %v291
    %v2522 = vunpack.c.h.b16 %v291
    %v2523 = vunpack.c.l.b16 %v292
    %v2524 = vunpack.c.h.b16 %v292
    %v2525 = vunpack.c.l.b16 %v293
    %v2526 = vunpack.c.h.b16 %v293
    %v2527 = vunpack.c.l.b16 %v294
    %v2528 = vunpack.c.h.b16 %v294
    %v2529 = vunpack.c.l.b16 %v295
    %v2530 = vunpack.c.h.b16 %v295
    %v2531 = vunpack.c.l.b16 %v296
    %v2532 = vunpack.c.h.b16 %v296
    %v2533 = vunpack.c.l.b16 %v297
    %v2534 = vunpack.c.h.b16 %v297
    %v2535 = vunpack.c.l.b16 %v298
    %v2536 = vunpack.c.h.b16 %v298
    %v2537 = vunpack.c.l.b16 %v299
    %v2538 = vunpack.c.h.b16 %v299
    %v2539 = vunpack.c.l.b16 %v300
    %v2540 = vunpack.c.h.b16 %v300
    %v2541 = vunpack.c.l.b16 %v301
    %v2542 = vunpack.c.h.b16 %v301
    %v2543 = vunpack.c.l.b16 %v302
    %v2544 = vunpack.c.h.b16 %v302
    %v2545 = vunpack.c.l.b16 %v303
    %v2546 = vunpack.c.h.b16 %v303
    %v2547 = vunpack.c.l.b16 %v304
    %v2548 = vunpack.c.h.b16 %v304
    %v2549 = vunpack.c.l.b16 %v305
    %v2550 = vunpack.c.h.b16 %v305
    %v2551 = vunpack.c.l.b16 %v306
    %v2552 = vunpack.c.h.b16 %v306
    %v2553 = vunpack.c.l.b16 %v307
    %v2554 = vunpack.c.h.b16 %v307
    %v2555 = vunpack.c.l.b16 %v308
    %v2556 = vunpack.c.h.b16 %v308
    %v2557 = vunpack.c.l.b16 %v309
    %v2558 = vunpack.c.h.b16 %v309
    %v2559 = vunpack.c.l.b16 %v310
    %v2560 = vunpack.c.h.b16 %v310
    %v2561 = vunpack.c.l.b16 %v311
    %v2562 = vunpack.c.h.b16 %v311
    %v2563 = vunpack.c.l.b16 %v312
    %v2564 = vunpack.c.h.b16 %v312
    %v2565 = vunpack.c.l.b16 %v313
    %v2566 = vunpack.c.h.b16 %v313
    %v2567 = vunpack.c.l.b16 %v314
    %v2568 = vunpack.c.h.b16 %v314
    %v2569 = vunpack.c.l.b16 %v315
    %v2570 = vunpack.c.h.b16 %v315
    %v2571 = vunpack.c.l.b16 %v316
    %v2572 = vunpack.c.h.b16 %v316
    %v2573 = vunpack.c.l.b16 %v317
    %v2574 = vunpack.c.h.b16 %v317
    %v2575 = vunpack.c.l.b16 %v318
    %v2576 = vunpack.c.h.b16 %v318
    %v2577 = vunpack.c.l.b16 %v319
    %v2578 = vunpack.c.h.b16 %v319
    %v2579 = vunpack.c.l.b16 %v320
    %v2580 = vunpack.c.h.b16 %v320
    %v2581 = vunpack.c.l.b16 %v321
    %v2582 = vunpack.c.h.b16 %v321
    %v2583 = vunpack.c.l.b16 %v322
    %v2584 = vunpack.c.h.b16 %v322
    %v2585 = vunpack.c.l.b16 %v323
    %v2586 = vunpack.c.h.b16 %v323
    %v2587 = vunpack.c.l.b16 %v324
    %v2588 = vunpack.c.h.b16 %v324
    %v2589 = vunpack.c.l.b16 %v325
    %v2590 = vunpack.c.h.b16 %v325
    %v2591 = vunpack.c.l.b16 %v326
    %v2592 = vunpack.c.h.b16 %v326
    %v2593 = vunpack.c.l.b16 %v327
    %v2594 = vunpack.c.h.b16 %v327
    %v2595 = vunpack.c.l.b16 %v328
    %v2596 = vunpack.c.h.b16 %v328
    %v2597 = vunpack.c.l.b16 %v329
    %v2598 = vunpack.c.h.b16 %v329
    %v2599 = vunpack.c.l.b16 %v330
    %v2600 = vunpack.c.h.b16 %v330
    %v2601 = vunpack.c.l.b16 %v331
    %v2602 = vunpack.c.h.b16 %v331
    %v2603 = vunpack.c.l.b16 %v332
    %v2604 = vunpack.c.h.b16 %v332
    %v2605 = vunpack.c.l.b16 %v333
    %v2606 = vunpack.c.h.b16 %v333
    %v2607 = vunpack.c.l.b16 %v334
    %v2608 = vunpack.c.h.b16 %v334
    %v2609 = vunpack.c.l.b16 %v335
    %v2610 = vunpack.c.h.b16 %v335
    %v2611 = vunpack.c.l.b16 %v336
    %v2612 = vunpack.c.h.b16 %v336
    %v2613 = vunpack.c.l.b16 %v337
    %v2614 = vunpack.c.h.b16 %v337
    %v2615 = vunpack.c.l.b16 %v338
    %v2616 = vunpack.c.h.b16 %v338
    %v2617 = vunpack.c.l.b16 %v339
    %v2618 = vunpack.c.h.b16 %v339
    %v2619 = vunpack.c.l.b16 %v340
    %v2620 = vunpack.c.h.b16 %v340
    %v2621 = vunpack.c.l.b16 %v341
    %v2622 = vunpack.c.h.b16 %v341
    %v2623 = vunpack.c.l.b16 %v342
    %v2624 = vunpack.c.h.b16 %v342
    %v2625 = vunpack.c.l.b16 %v343
    %v2626 = vunpack.c.h.b16 %v343
    %v2627 = vunpack.c.l.b16 %v344
    %v2628 = vunpack.c.h.b16 %v344
    %v2629 = vunpack.c.l.b16 %v345
    %v2630 = vunpack.c.h.b16 %v345
    %v2631 = vunpack.c.l.b16 %v346
    %v2632 = vunpack.c.h.b16 %v346
    %v2633 = vunpack.c.l.b16 %v347
    %v2634 = vunpack.c.h.b16 %v347
    %v2635 = vunpack.c.l.b16 %v348
    %v2636 = vunpack.c.h.b16 %v348
    %v2637 = vunpack.c.l.b16 %v349
    %v2638 = vunpack.c.h.b16 %v349
    %v2639 = vunpack.c.l.b16 %v350
    %v2640 = vunpack.c.h.b16 %v350
    %v2641 = vunpack.c.l.b16 %v351
    %v2642 = vunpack.c.h.b16 %v351
    %v2643 = vunpack.c.l.b16 %v352
    %v2644 = vunpack.c.h.b16 %v352
    %v2645 = vunpack.c.l.b16 %v353
    %v2646 = vunpack.c.h.b16 %v353
    %v2647 = vunpack.c.l.b16 %v354
    %v2648 = vunpack.c.h.b16 %v354
    %v2649 = vunpack.c.l.b16 %v355
    %v2650 = vunpack.c.h.b16 %v355
    %v2651 = vunpack.c.l.b16 %v356
    %v2652 = vunpack.c.h.b16 %v356
    %v2653 = vunpack.c.l.b16 %v357
    %v2654 = vunpack.c.h.b16 %v357
    %v2655 = vunpack.c.l.b16 %v358
    %v2656 = vunpack.c.h.b16 %v358
    %v2657 = vunpack.c.l.b16 %v359
    %v2658 = vunpack.c.h.b16 %v359
    %v2659 = vunpack.c.l.b16 %v360
    %v2660 = vunpack.c.h.b16 %v360
    %v2661 = vunpack.c.l.b16 %v361
    %v2662 = vunpack.c.h.b16 %v361
    %v2663 = vunpack.c.l.b16 %v362
    %v2664 = vunpack.c.h.b16 %v362
    %v2665 = vunpack.c.l.b16 %v363
    %v2666 = vunpack.c.h.b16 %v363
    %v2667 = vunpack.c.l.b16 %v364
    %v2668 = vunpack.c.h.b16 %v364
    %v2669 = vunpack.c.l.b16 %v365
    %v2670 = vunpack.c.h.b16 %v365
    %v2671 = vunpack.c.l.b16 %v366
    %v2672 = vunpack.c.h.b16 %v366
    %v2673 = vunpack.c.l.b16 %v367
    %v2674 = vunpack.c.h.b16 %v367
    %v2675 = vunpack.c.l.b16 %v368
    %v2676 = vunpack.c.h.b16 %v368
    %v2677 = vunpack.c.l.b16 %v369
    %v2678 = vunpack.c.h.b16 %v369
    %v2679 = vunpack.c.l.b16 %v370
    %v2680 = vunpack.c.h.b16 %v370
    %v2681 = vpack.c.b16 %v2429, %v2425
    %v2682 = vpack.c.b16 %v2430, %v2426
    %v2683 = vpack.c.b16 %v2431, %v2427
    %v2684 = vpack.c.b16 %v2432, %v2428
    %v2685 = vpack.c.b16 %v2437, %v2433
    %v2686 = vpack.c.b16 %v2438, %v2434
    %v2687 = vpack.c.b16 %v2439, %v2435
    %v2688 = vpack.c.b16 %v2440, %v2436
    %v2689 = vpack.c.b16 %v2445, %v2441
    %v2690 = vpack.c.b16 %v2446, %v2442
    %v2691 = vpack.c.b16 %v2447, %v2443
    %v2692 = vpack.c.b16 %v2448, %v2444
    %v2693 = vpack.c.b16 %v2453, %v2449
    %v2694 = vpack.c.b16 %v2454, %v2450
    %v2695 = vpack.c.b16 %v2455, %v2451
    %v2696 = vpack.c.b16 %v2456, %v2452
    %v2697 = vpack.c.b16 %v2461, %v2457
    %v2698 = vpack.c.b16 %v2462, %v2458
    %v2699 = vpack.c.b16 %v2463, %v2459
    %v2700 = vpack.c.b16 %v2464, %v2460
    %v2701 = vpack.c.b16 %v2469, %v2465
    %v2702 = vpack.c.b16 %v2470, %v2466
    %v2703 = vpack.c.b16 %v2471, %v2467
    %v2704 = vpack.c.b16 %v2472, %v2468
    %v2705 = vpack.c.b16 %v2477, %v2473
    %v2706 = vpack.c.b16 %v2478, %v2474
    %v2707 = vpack.c.b16 %v2479, %v2475
    %v2708 = vpack.c.b16 %v2480, %v2476
    %v2709 = vpack.c.b16 %v2485, %v2481
    %v2710 = vpack.c.b16 %v2486, %v2482
    %v2711 = vpack.c.b16 %v2487, %v2483
    %v2712 = vpack.c.b16 %v2488, %v2484
    %v2713 = vpack.c.b16 %v2493, %v2489
    %v2714 = vpack.c.b16 %v2494, %v2490
    %v2715 = vpack.c.b16 %v2495, %v2491
    %v2716 = vpack.c.b16 %v2496, %v2492
    %v2717 = vpack.c.b16 %v2501, %v2497
    %v2718 = vpack.c.b16 %v2502, %v2498
    %v2719 = vpack.c.b16 %v2503, %v2499
    %v2720 = vpack.c.b16 %v2504, %v2500
    %v2721 = vpack.c.b16 %v2509, %v2505
    %v2722 = vpack.c.b16 %v2510, %v2506
    %v2723 = vpack.c.b16 %v2511, %v2507
    %v2724 = vpack.c.b16 %v2512, %v2508
    %v2725 = vpack.c.b16 %v2517, %v2513
    %v2726 = vpack.c.b16 %v2518, %v2514
    %v2727 = vpack.c.b16 %v2519, %v2515
    %v2728 = vpack.c.b16 %v2520, %v2516
    %v2729 = vpack.c.b16 %v2525, %v2521
    %v2730 = vpack.c.b16 %v2526, %v2522
    %v2731 = vpack.c.b16 %v2527, %v2523
    %v2732 = vpack.c.b16 %v2528, %v2524
    %v2733 = vpack.c.b16 %v2533, %v2529
    %v2734 = vpack.c.b16 %v2534, %v2530
    %v2735 = vpack.c.b16 %v2535, %v2531
    %v2736 = vpack.c.b16 %v2536, %v2532
    %v2737 = vpack.c.b16 %v2541, %v2537
    %v2738 = vpack.c.b16 %v2542, %v2538
    %v2739 = vpack.c.b16 %v2543, %v2539
    %v2740 = vpack.c.b16 %v2544, %v2540
    %v2741 = vpack.c.b16 %v2549, %v2545
    %v2742 = vpack.c.b16 %v2550, %v2546
    %v2743 = vpack.c.b16 %v2551, %v2547
    %v2744 = vpack.c.b16 %v2552, %v2548
    %v2745 = vpack.c.b16 %v2557, %v2553
    %v2746 = vpack.c.b16 %v2558, %v2554
    %v2747 = vpack.c.b16 %v2559, %v2555
    %v2748 = vpack.c.b16 %v2560, %v2556
    %v2749 = vpack.c.b16 %v2565, %v2561
    %v2750 = vpack.c.b16 %v2566, %v2562
    %v2751 = vpack.c.b16 %v2567, %v2563
    %v2752 = vpack.c.b16 %v2568, %v2564
    %v2753 = vpack.c.b16 %v2573, %v2569
    %v2754 = vpack.c.b16 %v2574, %v2570
    %v2755 = vpack.c.b16 %v2575, %v2571
    %v2756 = vpack.c.b16 %v2576, %v2572
    %v2757 = vpack.c.b16 %v2581, %v2577
    %v2758 = vpack.c.b16 %v2582, %v2578
    %v2759 = vpack.c.b16 %v2583, %v2579
    %v2760 = vpack.c.b16 %v2584, %v2580
    %v2761 = vpack.c.b16 %v2589, %v2585
    %v2762 = vpack.c.b16 %v2590, %v2586
    %v2763 = vpack.c.b16 %v2591, %v2587
    %v2764 = vpack.c.b16 %v2592, %v2588
    %v2765 = vpack.c.b16 %v2597, %v2593
    %v2766 = vpack.c.b16 %v2598, %v2594
    %v2767 = vpack.c.b16 %v2599, %v2595
    %v2768 = vpack.c.b16 %v2600, %v2596
    %v2769 = vpack.c.b16 %v2605, %v2601
    %v2770 = vpack.c.b16 %v2606, %v2602
    %v2771 = vpack.c.b16 %v2607, %v2603
    %v2772 = vpack.c.b16 %v2608, %v2604
    %v2773 = vpack.c.b16 %v2613, %v2609
    %v2774 = vpack.c.b16 %v2614, %v2610
    %v2775 = vpack.c.b16 %v2615, %v2611
    %v2776 = vpack.c.b16 %v2616, %v2612
    %v2777 = vpack.c.b16 %v2621, %v2617
    %v2778 = vpack.c.b16 %v2622, %v2618
    %v2779 = vpack.c.b16 %v2623, %v2619
    %v2780 = vpack.c.b16 %v2624, %v2620
    %v2781 = vpack.c.b16 %v2629, %v2625
    %v2782 = vpack.c.b16 %v2630, %v2626
    %v2783 = vpack.c.b16 %v2631, %v2627
    %v2784 = vpack.c.b16 %v2632, %v2628
    %v2785 = vpack.c.b16 %v2637, %v2633
    %v2786 = vpack.c.b16 %v2638, %v2634
    %v2787 = vpack.c.b16 %v2639, %v2635
    %v2788 = vpack.c.b16 %v2640, %v2636
    %v2789 = vpack.c.b16 %v2645, %v2641
    %v2790 = vpack.c.b16 %v2646, %v2642
    %v2791 = vpack.c.b16 %v2647, %v2643
    %v2792 = vpack.c.b16 %v2648, %v2644
    %v2793 = vpack.c.b16 %v2653, %v2649
    %v2794 = vpack.c.b16 %v2654, %v2650
    %v2795 = vpack.c.b16 %v2655, %v2651
    %v2796 = vpack.c.b16 %v2656, %v2652
    %v2797 = vpack.c.b16 %v2661, %v2657
    %v2798 = vpack.c.b16 %v2662, %v2658
    %v2799 = vpack.c.b16 %v2663, %v2659
    %v2800 = vpack.c.b16 %v2664, %v2660
    %v2801 = vpack.c.b16 %v2669, %v2665
    %v2802 = vpack.c.b16 %v2670, %v2666
    %v2803 = vpack.c.b16 %v2671, %v2667
    %v2804 = vpack.c.b16 %v2672, %v2668
    %v2805 = vpack.c.b16 %v2677, %v2673
    %v2806 = vpack.c.b16 %v2678, %v2674
    %v2807 = vpack.c.b16 %v2679, %v2675
    %v2808 = vpack.c.b16 %v2680, %v2676
    %2937 = vmatpush.bf16.msra.mxu0 %v2709
    %2938 = vmatpush.bf16.msra.mxu0 %v2705
    %2939 = vmatpush.bf16.msra.mxu0 %v2701
    %2940 = vmatpush.bf16.msra.mxu0 %v2697
    %2941 = vmatpush.bf16.msra.mxu0 %v2693
    %2942 = vmatpush.bf16.msra.mxu0 %v2689
    %2943 = vmatpush.bf16.msra.mxu0 %v2685
    %2944 = vmatpush.bf16.msra.mxu0 %v2681
    %2945 = vmatmul.bf16.gmra.mxu0 %v2256
    %v2946 = vpop.f32.mrf.mxu0
    %v2947 = vadd.f32 %v2289, %v2946
    %v2948 = vpop.f32.mrf.mxu0
    %v2949 = vadd.f32 %v2289, %v2948
    %2950 = vmatmul.bf16.gmra.mxu0 %v2260
    %v2951 = vpop.f32.mrf.mxu0
    %v2952 = vadd.f32 %v2289, %v2951
    %v2953 = vpop.f32.mrf.mxu0
    %v2954 = vadd.f32 %v2289, %v2953
    %2955 = vmatmul.bf16.gmra.mxu0 %v2264
    %v2956 = vpop.f32.mrf.mxu0
    %v2957 = vadd.f32 %v2289, %v2956
    %v2958 = vpop.f32.mrf.mxu0
    %v2959 = vadd.f32 %v2289, %v2958
    %2960 = vmatmul.bf16.gmra.mxu0 %v2268
    %v2961 = vpop.f32.mrf.mxu0
    %v2962 = vadd.f32 %v2289, %v2961
    %v2963 = vpop.f32.mrf.mxu0
    %v2964 = vadd.f32 %v2289, %v2963
    %2965 = vmatmul.bf16.gmra.mxu0 %v2272
    %v2966 = vpop.f32.mrf.mxu0
    %v2967 = vadd.f32 %v2289, %v2966
    %v2968 = vpop.f32.mrf.mxu0
    %v2969 = vadd.f32 %v2289, %v2968
    %2970 = vmatmul.bf16.gmra.mxu0 %v2276
    %v2971 = vpop.f32.mrf.mxu0
    %v2972 = vadd.f32 %v2289, %v2971
    %v2973 = vpop.f32.mrf.mxu0
    %v2974 = vadd.f32 %v2289, %v2973
    %2975 = vmatmul.bf16.gmra.mxu0 %v2280
    %v2976 = vpop.f32.mrf.mxu0
    %v2977 = vadd.f32 %v2289, %v2976
    %v2978 = vpop.f32.mrf.mxu0
    %v2979 = vadd.f32 %v2289, %v2978
    %2980 = vmatmul.bf16.gmra.mxu0 %v2284
    %v2981 = vpop.f32.mrf.mxu0
    %v2982 = vadd.f32 %v2289, %v2981
    %v2983 = vpop.f32.mrf.mxu0
    %v2984 = vadd.f32 %v2289, %v2983
    %2985 = vdwg.mxu0
    %2986 = vmatpush.bf16.msra.mxu0 %v2741
    %2987 = vmatpush.bf16.msra.mxu0 %v2737
    %2988 = vmatpush.bf16.msra.mxu0 %v2733
    %2989 = vmatpush.bf16.msra.mxu0 %v2729
    %2990 = vmatpush.bf16.msra.mxu0 %v2725
    %2991 = vmatpush.bf16.msra.mxu0 %v2721
    %2992 = vmatpush.bf16.msra.mxu0 %v2717
    %2993 = vmatpush.bf16.msra.mxu0 %v2713
    %2994 = vmatmul.bf16.gmra.mxu0 %v2257
    %v2995 = vpop.f32.mrf.mxu0
    %v2996 = vadd.f32 %v2947, %v2995
    %v2997 = vpop.f32.mrf.mxu0
    %v2998 = vadd.f32 %v2949, %v2997
    %2999 = vmatmul.bf16.gmra.mxu0 %v2261
    %v3000 = vpop.f32.mrf.mxu0
    %v3001 = vadd.f32 %v2952, %v3000
    %v3002 = vpop.f32.mrf.mxu0
    %v3003 = vadd.f32 %v2954, %v3002
    %3004 = vmatmul.bf16.gmra.mxu0 %v2265
    %v3005 = vpop.f32.mrf.mxu0
    %v3006 = vadd.f32 %v2957, %v3005
    %v3007 = vpop.f32.mrf.mxu0
    %v3008 = vadd.f32 %v2959, %v3007
    %3009 = vmatmul.bf16.gmra.mxu0 %v2269
    %v3010 = vpop.f32.mrf.mxu0
    %v3011 = vadd.f32 %v2962, %v3010
    %v3012 = vpop.f32.mrf.mxu0
    %v3013 = vadd.f32 %v2964, %v3012
    %3014 = vmatmul.bf16.gmra.mxu0 %v2273
    %v3015 = vpop.f32.mrf.mxu0
    %v3016 = vadd.f32 %v2967, %v3015
    %v3017 = vpop.f32.mrf.mxu0
    %v3018 = vadd.f32 %v2969, %v3017
    %3019 = vmatmul.bf16.gmra.mxu0 %v2277
    %v3020 = vpop.f32.mrf.mxu0
    %v3021 = vadd.f32 %v2972, %v3020
    %v3022 = vpop.f32.mrf.mxu0
    %v3023 = vadd.f32 %v2974, %v3022
    %3024 = vmatmul.bf16.gmra.mxu0 %v2281
    %v3025 = vpop.f32.mrf.mxu0
    %v3026 = vadd.f32 %v2977, %v3025
    %v3027 = vpop.f32.mrf.mxu0
    %v3028 = vadd.f32 %v2979, %v3027
    %3029 = vmatmul.bf16.gmra.mxu0 %v2285
    %v3030 = vpop.f32.mrf.mxu0
    %v3031 = vadd.f32 %v2982, %v3030
    %v3032 = vpop.f32.mrf.mxu0
    %v3033 = vadd.f32 %v2984, %v3032
    %3034 = vdwg.mxu0
    %3035 = vmatpush.bf16.msra.mxu0 %v2773
    %3036 = vmatpush.bf16.msra.mxu0 %v2769
    %3037 = vmatpush.bf16.msra.mxu0 %v2765
    %3038 = vmatpush.bf16.msra.mxu0 %v2761
    %3039 = vmatpush.bf16.msra.mxu0 %v2757
    %3040 = vmatpush.bf16.msra.mxu0 %v2753
    %3041 = vmatpush.bf16.msra.mxu0 %v2749
    %3042 = vmatpush.bf16.msra.mxu0 %v2745
    %3043 = vmatmul.bf16.gmra.mxu0 %v2258
    %v3044 = vpop.f32.mrf.mxu0
    %v3045 = vadd.f32 %v2996, %v3044
    %v3046 = vpop.f32.mrf.mxu0
    %v3047 = vadd.f32 %v2998, %v3046
    %3048 = vmatmul.bf16.gmra.mxu0 %v2262
    %v3049 = vpop.f32.mrf.mxu0
    %v3050 = vadd.f32 %v3001, %v3049
    %v3051 = vpop.f32.mrf.mxu0
    %v3052 = vadd.f32 %v3003, %v3051
    %3053 = vmatmul.bf16.gmra.mxu0 %v2266
    %v3054 = vpop.f32.mrf.mxu0
    %v3055 = vadd.f32 %v3006, %v3054
    %v3056 = vpop.f32.mrf.mxu0
    %v3057 = vadd.f32 %v3008, %v3056
    %3058 = vmatmul.bf16.gmra.mxu0 %v2270
    %v3059 = vpop.f32.mrf.mxu0
    %v3060 = vadd.f32 %v3011, %v3059
    %v3061 = vpop.f32.mrf.mxu0
    %v3062 = vadd.f32 %v3013, %v3061
    %3063 = vmatmul.bf16.gmra.mxu0 %v2274
    %v3064 = vpop.f32.mrf.mxu0
    %v3065 = vadd.f32 %v3016, %v3064
    %v3066 = vpop.f32.mrf.mxu0
    %v3067 = vadd.f32 %v3018, %v3066
    %3068 = vmatmul.bf16.gmra.mxu0 %v2278
    %v3069 = vpop.f32.mrf.mxu0
    %v3070 = vadd.f32 %v3021, %v3069
    %v3071 = vpop.f32.mrf.mxu0
    %v3072 = vadd.f32 %v3023, %v3071
    %3073 = vmatmul.bf16.gmra.mxu0 %v2282
    %v3074 = vpop.f32.mrf.mxu0
    %v3075 = vadd.f32 %v3026, %v3074
    %v3076 = vpop.f32.mrf.mxu0
    %v3077 = vadd.f32 %v3028, %v3076
    %3078 = vmatmul.bf16.gmra.mxu0 %v2286
    %v3079 = vpop.f32.mrf.mxu0
    %v3080 = vadd.f32 %v3031, %v3079
    %v3081 = vpop.f32.mrf.mxu0
    %v3082 = vadd.f32 %v3033, %v3081
    %3083 = vdwg.mxu0
    %3084 = vmatpush.bf16.msra.mxu0 %v2805
    %3085 = vmatpush.bf16.msra.mxu0 %v2801
    %3086 = vmatpush.bf16.msra.mxu0 %v2797
    %3087 = vmatpush.bf16.msra.mxu0 %v2793
    %3088 = vmatpush.bf16.msra.mxu0 %v2789
    %3089 = vmatpush.bf16.msra.mxu0 %v2785
    %3090 = vmatpush.bf16.msra.mxu0 %v2781
    %3091 = vmatpush.bf16.msra.mxu0 %v2777
    %3092 = vmatmul.bf16.gmra.mxu0 %v2259
    %v3093 = vpop.f32.mrf.mxu0
    %v3094 = vadd.f32 %v3045, %v3093
    %v3095 = vpop.f32.mrf.mxu0
    %v3096 = vadd.f32 %v3047, %v3095
    %3097 = vmatmul.bf16.gmra.mxu0 %v2263
    %v3098 = vpop.f32.mrf.mxu0
    %v3099 = vadd.f32 %v3050, %v3098
    %v3100 = vpop.f32.mrf.mxu0
    %v3101 = vadd.f32 %v3052, %v3100
    %3102 = vmatmul.bf16.gmra.mxu0 %v2267
    %v3103 = vpop.f32.mrf.mxu0
    %v3104 = vadd.f32 %v3055, %v3103
    %v3105 = vpop.f32.mrf.mxu0
    %v3106 = vadd.f32 %v3057, %v3105
    %3107 = vmatmul.bf16.gmra.mxu0 %v2271
    %v3108 = vpop.f32.mrf.mxu0
    %v3109 = vadd.f32 %v3060, %v3108
    %v3110 = vpop.f32.mrf.mxu0
    %v3111 = vadd.f32 %v3062, %v3110
    %3112 = vmatmul.bf16.gmra.mxu0 %v2275
    %v3113 = vpop.f32.mrf.mxu0
    %v3114 = vadd.f32 %v3065, %v3113
    %v3115 = vpop.f32.mrf.mxu0
    %v3116 = vadd.f32 %v3067, %v3115
    %3117 = vmatmul.bf16.gmra.mxu0 %v2279
    %v3118 = vpop.f32.mrf.mxu0
    %v3119 = vadd.f32 %v3070, %v3118
    %v3120 = vpop.f32.mrf.mxu0
    %v3121 = vadd.f32 %v3072, %v3120
    %3122 = vmatmul.bf16.gmra.mxu0 %v2283
    %v3123 = vpop.f32.mrf.mxu0
    %v3124 = vadd.f32 %v3075, %v3123
    %v3125 = vpop.f32.mrf.mxu0
    %v3126 = vadd.f32 %v3077, %v3125
    %3127 = vmatmul.bf16.gmra.mxu0 %v2287
    %v3128 = vpop.f32.mrf.mxu0
    %v3129 = vadd.f32 %v3080, %v3128
    %v3130 = vpop.f32.mrf.mxu0
    %v3131 = vadd.f32 %v3082, %v3130
    %3132 = vdwg.mxu0
    %3133 = vmatpush.bf16.msra.mxu0 %v2710
    %3134 = vmatpush.bf16.msra.mxu0 %v2706
    %3135 = vmatpush.bf16.msra.mxu0 %v2702
    %3136 = vmatpush.bf16.msra.mxu0 %v2698
    %3137 = vmatpush.bf16.msra.mxu0 %v2694
    %3138 = vmatpush.bf16.msra.mxu0 %v2690
    %3139 = vmatpush.bf16.msra.mxu0 %v2686
    %3140 = vmatpush.bf16.msra.mxu0 %v2682
    %3141 = vmatmul.bf16.gmra.mxu0 %v2256
    %v3142 = vpop.f32.mrf.mxu0
    %v3143 = vadd.f32 %v2290, %v3142
    %v3144 = vpop.f32.mrf.mxu0
    %v3145 = vadd.f32 %v2290, %v3144
    %3146 = vmatmul.bf16.gmra.mxu0 %v2260
    %v3147 = vpop.f32.mrf.mxu0
    %v3148 = vadd.f32 %v2290, %v3147
    %v3149 = vpop.f32.mrf.mxu0
    %v3150 = vadd.f32 %v2290, %v3149
    %3151 = vmatmul.bf16.gmra.mxu0 %v2264
    %v3152 = vpop.f32.mrf.mxu0
    %v3153 = vadd.f32 %v2290, %v3152
    %v3154 = vpop.f32.mrf.mxu0
    %v3155 = vadd.f32 %v2290, %v3154
    %3156 = vmatmul.bf16.gmra.mxu0 %v2268
    %v3157 = vpop.f32.mrf.mxu0
    %v3158 = vadd.f32 %v2290, %v3157
    %v3159 = vpop.f32.mrf.mxu0
    %v3160 = vadd.f32 %v2290, %v3159
    %3161 = vmatmul.bf16.gmra.mxu0 %v2272
    %v3162 = vpop.f32.mrf.mxu0
    %v3163 = vadd.f32 %v2290, %v3162
    %v3164 = vpop.f32.mrf.mxu0
    %v3165 = vadd.f32 %v2290, %v3164
    %3166 = vmatmul.bf16.gmra.mxu0 %v2276
    %v3167 = vpop.f32.mrf.mxu0
    %v3168 = vadd.f32 %v2290, %v3167
    %v3169 = vpop.f32.mrf.mxu0
    %v3170 = vadd.f32 %v2290, %v3169
    %3171 = vmatmul.bf16.gmra.mxu0 %v2280
    %v3172 = vpop.f32.mrf.mxu0
    %v3173 = vadd.f32 %v2290, %v3172
    %v3174 = vpop.f32.mrf.mxu0
    %v3175 = vadd.f32 %v2290, %v3174
    %3176 = vmatmul.bf16.gmra.mxu0 %v2284
    %v3177 = vpop.f32.mrf.mxu0
    %v3178 = vadd.f32 %v2290, %v3177
    %v3179 = vpop.f32.mrf.mxu0
    %v3180 = vadd.f32 %v2290, %v3179
    %3181 = vdwg.mxu0
    %3182 = vmatpush.bf16.msra.mxu0 %v2742
    %3183 = vmatpush.bf16.msra.mxu0 %v2738
    %3184 = vmatpush.bf16.msra.mxu0 %v2734
    %3185 = vmatpush.bf16.msra.mxu0 %v2730
    %3186 = vmatpush.bf16.msra.mxu0 %v2726
    %3187 = vmatpush.bf16.msra.mxu0 %v2722
    %3188 = vmatpush.bf16.msra.mxu0 %v2718
    %3189 = vmatpush.bf16.msra.mxu0 %v2714
    %3190 = vmatmul.bf16.gmra.mxu0 %v2257
    %v3191 = vpop.f32.mrf.mxu0
    %v3192 = vadd.f32 %v3143, %v3191
    %v3193 = vpop.f32.mrf.mxu0
    %v3194 = vadd.f32 %v3145, %v3193
    %3195 = vmatmul.bf16.gmra.mxu0 %v2261
    %v3196 = vpop.f32.mrf.mxu0
    %v3197 = vadd.f32 %v3148, %v3196
    %v3198 = vpop.f32.mrf.mxu0
    %v3199 = vadd.f32 %v3150, %v3198
    %3200 = vmatmul.bf16.gmra.mxu0 %v2265
    %v3201 = vpop.f32.mrf.mxu0
    %v3202 = vadd.f32 %v3153, %v3201
    %v3203 = vpop.f32.mrf.mxu0
    %v3204 = vadd.f32 %v3155, %v3203
    %3205 = vmatmul.bf16.gmra.mxu0 %v2269
    %v3206 = vpop.f32.mrf.mxu0
    %v3207 = vadd.f32 %v3158, %v3206
    %v3208 = vpop.f32.mrf.mxu0
    %v3209 = vadd.f32 %v3160, %v3208
    %3210 = vmatmul.bf16.gmra.mxu0 %v2273
    %v3211 = vpop.f32.mrf.mxu0
    %v3212 = vadd.f32 %v3163, %v3211
    %v3213 = vpop.f32.mrf.mxu0
    %v3214 = vadd.f32 %v3165, %v3213
    %3215 = vmatmul.bf16.gmra.mxu0 %v2277
    %v3216 = vpop.f32.mrf.mxu0
    %v3217 = vadd.f32 %v3168, %v3216
    %v3218 = vpop.f32.mrf.mxu0
    %v3219 = vadd.f32 %v3170, %v3218
    %3220 = vmatmul.bf16.gmra.mxu0 %v2281
    %v3221 = vpop.f32.mrf.mxu0
    %v3222 = vadd.f32 %v3173, %v3221
    %v3223 = vpop.f32.mrf.mxu0
    %v3224 = vadd.f32 %v3175, %v3223
    %3225 = vmatmul.bf16.gmra.mxu0 %v2285
    %v3226 = vpop.f32.mrf.mxu0
    %v3227 = vadd.f32 %v3178, %v3226
    %v3228 = vpop.f32.mrf.mxu0
    %v3229 = vadd.f32 %v3180, %v3228
    %3230 = vdwg.mxu0
    %3231 = vmatpush.bf16.msra.mxu0 %v2774
    %3232 = vmatpush.bf16.msra.mxu0 %v2770
    %3233 = vmatpush.bf16.msra.mxu0 %v2766
    %3234 = vmatpush.bf16.msra.mxu0 %v2762
    %3235 = vmatpush.bf16.msra.mxu0 %v2758
    %3236 = vmatpush.bf16.msra.mxu0 %v2754
    %3237 = vmatpush.bf16.msra.mxu0 %v2750
    %3238 = vmatpush.bf16.msra.mxu0 %v2746
    %3239 = vmatmul.bf16.gmra.mxu0 %v2258
    %v3240 = vpop.f32.mrf.mxu0
    %v3241 = vadd.f32 %v3192, %v3240
    %v3242 = vpop.f32.mrf.mxu0
    %v3243 = vadd.f32 %v3194, %v3242
    %3244 = vmatmul.bf16.gmra.mxu0 %v2262
    %v3245 = vpop.f32.mrf.mxu0
    %v3246 = vadd.f32 %v3197, %v3245
    %v3247 = vpop.f32.mrf.mxu0
    %v3248 = vadd.f32 %v3199, %v3247
    %3249 = vmatmul.bf16.gmra.mxu0 %v2266
    %v3250 = vpop.f32.mrf.mxu0
    %v3251 = vadd.f32 %v3202, %v3250
    %v3252 = vpop.f32.mrf.mxu0
    %v3253 = vadd.f32 %v3204, %v3252
    %3254 = vmatmul.bf16.gmra.mxu0 %v2270
    %v3255 = vpop.f32.mrf.mxu0
    %v3256 = vadd.f32 %v3207, %v3255
    %v3257 = vpop.f32.mrf.mxu0
    %v3258 = vadd.f32 %v3209, %v3257
    %3259 = vmatmul.bf16.gmra.mxu0 %v2274
    %v3260 = vpop.f32.mrf.mxu0
    %v3261 = vadd.f32 %v3212, %v3260
    %v3262 = vpop.f32.mrf.mxu0
    %v3263 = vadd.f32 %v3214, %v3262
    %3264 = vmatmul.bf16.gmra.mxu0 %v2278
    %v3265 = vpop.f32.mrf.mxu0
    %v3266 = vadd.f32 %v3217, %v3265
    %v3267 = vpop.f32.mrf.mxu0
    %v3268 = vadd.f32 %v3219, %v3267
    %3269 = vmatmul.bf16.gmra.mxu0 %v2282
    %v3270 = vpop.f32.mrf.mxu0
    %v3271 = vadd.f32 %v3222, %v3270
    %v3272 = vpop.f32.mrf.mxu0
    %v3273 = vadd.f32 %v3224, %v3272
    %3274 = vmatmul.bf16.gmra.mxu0 %v2286
    %v3275 = vpop.f32.mrf.mxu0
    %v3276 = vadd.f32 %v3227, %v3275
    %v3277 = vpop.f32.mrf.mxu0
    %v3278 = vadd.f32 %v3229, %v3277
    %3279 = vdwg.mxu0
    %3280 = vmatpush.bf16.msra.mxu0 %v2806
    %3281 = vmatpush.bf16.msra.mxu0 %v2802
    %3282 = vmatpush.bf16.msra.mxu0 %v2798
    %3283 = vmatpush.bf16.msra.mxu0 %v2794
    %3284 = vmatpush.bf16.msra.mxu0 %v2790
    %3285 = vmatpush.bf16.msra.mxu0 %v2786
    %3286 = vmatpush.bf16.msra.mxu0 %v2782
    %3287 = vmatpush.bf16.msra.mxu0 %v2778
    %3288 = vmatmul.bf16.gmra.mxu0 %v2259
    %v3289 = vpop.f32.mrf.mxu0
    %v3290 = vadd.f32 %v3241, %v3289
    %v3291 = vpop.f32.mrf.mxu0
    %v3292 = vadd.f32 %v3243, %v3291
    %3293 = vmatmul.bf16.gmra.mxu0 %v2263
    %v3294 = vpop.f32.mrf.mxu0
    %v3295 = vadd.f32 %v3246, %v3294
    %v3296 = vpop.f32.mrf.mxu0
    %v3297 = vadd.f32 %v3248, %v3296
    %3298 = vmatmul.bf16.gmra.mxu0 %v2267
    %v3299 = vpop.f32.mrf.mxu0
    %v3300 = vadd.f32 %v3251, %v3299
    %v3301 = vpop.f32.mrf.mxu0
    %v3302 = vadd.f32 %v3253, %v3301
    %3303 = vmatmul.bf16.gmra.mxu0 %v2271
    %v3304 = vpop.f32.mrf.mxu0
    %v3305 = vadd.f32 %v3256, %v3304
    %v3306 = vpop.f32.mrf.mxu0
    %v3307 = vadd.f32 %v3258, %v3306
    %3308 = vmatmul.bf16.gmra.mxu0 %v2275
    %v3309 = vpop.f32.mrf.mxu0
    %v3310 = vadd.f32 %v3261, %v3309
    %v3311 = vpop.f32.mrf.mxu0
    %v3312 = vadd.f32 %v3263, %v3311
    %3313 = vmatmul.bf16.gmra.mxu0 %v2279
    %v3314 = vpop.f32.mrf.mxu0
    %v3315 = vadd.f32 %v3266, %v3314
    %v3316 = vpop.f32.mrf.mxu0
    %v3317 = vadd.f32 %v3268, %v3316
    %3318 = vmatmul.bf16.gmra.mxu0 %v2283
    %v3319 = vpop.f32.mrf.mxu0
    %v3320 = vadd.f32 %v3271, %v3319
    %v3321 = vpop.f32.mrf.mxu0
    %v3322 = vadd.f32 %v3273, %v3321
    %3323 = vmatmul.bf16.gmra.mxu0 %v2287
    %v3324 = vpop.f32.mrf.mxu0
    %v3325 = vadd.f32 %v3276, %v3324
    %v3326 = vpop.f32.mrf.mxu0
    %v3327 = vadd.f32 %v3278, %v3326
    %3328 = vdwg.mxu0
    %3329 = vmatpush.bf16.msra.mxu0 %v2711
    %3330 = vmatpush.bf16.msra.mxu0 %v2707
    %3331 = vmatpush.bf16.msra.mxu0 %v2703
    %3332 = vmatpush.bf16.msra.mxu0 %v2699
    %3333 = vmatpush.bf16.msra.mxu0 %v2695
    %3334 = vmatpush.bf16.msra.mxu0 %v2691
    %3335 = vmatpush.bf16.msra.mxu0 %v2687
    %3336 = vmatpush.bf16.msra.mxu0 %v2683
    %3337 = vmatmul.bf16.gmra.mxu0 %v2256
    %v3338 = vpop.f32.mrf.mxu0
    %v3339 = vadd.f32 %v2291, %v3338
    %v3340 = vpop.f32.mrf.mxu0
    %v3341 = vadd.f32 %v2291, %v3340
    %3342 = vmatmul.bf16.gmra.mxu0 %v2260
    %v3343 = vpop.f32.mrf.mxu0
    %v3344 = vadd.f32 %v2291, %v3343
    %v3345 = vpop.f32.mrf.mxu0
    %v3346 = vadd.f32 %v2291, %v3345
    %3347 = vmatmul.bf16.gmra.mxu0 %v2264
    %v3348 = vpop.f32.mrf.mxu0
    %v3349 = vadd.f32 %v2291, %v3348
    %v3350 = vpop.f32.mrf.mxu0
    %v3351 = vadd.f32 %v2291, %v3350
    %3352 = vmatmul.bf16.gmra.mxu0 %v2268
    %v3353 = vpop.f32.mrf.mxu0
    %v3354 = vadd.f32 %v2291, %v3353
    %v3355 = vpop.f32.mrf.mxu0
    %v3356 = vadd.f32 %v2291, %v3355
    %3357 = vmatmul.bf16.gmra.mxu0 %v2272
    %v3358 = vpop.f32.mrf.mxu0
    %v3359 = vadd.f32 %v2291, %v3358
    %v3360 = vpop.f32.mrf.mxu0
    %v3361 = vadd.f32 %v2291, %v3360
    %3362 = vmatmul.bf16.gmra.mxu0 %v2276
    %v3363 = vpop.f32.mrf.mxu0
    %v3364 = vadd.f32 %v2291, %v3363
    %v3365 = vpop.f32.mrf.mxu0
    %v3366 = vadd.f32 %v2291, %v3365
    %3367 = vmatmul.bf16.gmra.mxu0 %v2280
    %v3368 = vpop.f32.mrf.mxu0
    %v3369 = vadd.f32 %v2291, %v3368
    %v3370 = vpop.f32.mrf.mxu0
    %v3371 = vadd.f32 %v2291, %v3370
    %3372 = vmatmul.bf16.gmra.mxu0 %v2284
    %v3373 = vpop.f32.mrf.mxu0
    %v3374 = vadd.f32 %v2291, %v3373
    %v3375 = vpop.f32.mrf.mxu0
    %v3376 = vadd.f32 %v2291, %v3375
    %3377 = vdwg.mxu0
    %3378 = vmatpush.bf16.msra.mxu0 %v2743
    %3379 = vmatpush.bf16.msra.mxu0 %v2739
    %3380 = vmatpush.bf16.msra.mxu0 %v2735
    %3381 = vmatpush.bf16.msra.mxu0 %v2731
    %3382 = vmatpush.bf16.msra.mxu0 %v2727
    %3383 = vmatpush.bf16.msra.mxu0 %v2723
    %3384 = vmatpush.bf16.msra.mxu0 %v2719
    %3385 = vmatpush.bf16.msra.mxu0 %v2715
    %3386 = vmatmul.bf16.gmra.mxu0 %v2257
    %v3387 = vpop.f32.mrf.mxu0
    %v3388 = vadd.f32 %v3339, %v3387
    %v3389 = vpop.f32.mrf.mxu0
    %v3390 = vadd.f32 %v3341, %v3389
    %3391 = vmatmul.bf16.gmra.mxu0 %v2261
    %v3392 = vpop.f32.mrf.mxu0
    %v3393 = vadd.f32 %v3344, %v3392
    %v3394 = vpop.f32.mrf.mxu0
    %v3395 = vadd.f32 %v3346, %v3394
    %3396 = vmatmul.bf16.gmra.mxu0 %v2265
    %v3397 = vpop.f32.mrf.mxu0
    %v3398 = vadd.f32 %v3349, %v3397
    %v3399 = vpop.f32.mrf.mxu0
    %v3400 = vadd.f32 %v3351, %v3399
    %3401 = vmatmul.bf16.gmra.mxu0 %v2269
    %v3402 = vpop.f32.mrf.mxu0
    %v3403 = vadd.f32 %v3354, %v3402
    %v3404 = vpop.f32.mrf.mxu0
    %v3405 = vadd.f32 %v3356, %v3404
    %3406 = vmatmul.bf16.gmra.mxu0 %v2273
    %v3407 = vpop.f32.mrf.mxu0
    %v3408 = vadd.f32 %v3359, %v3407
    %v3409 = vpop.f32.mrf.mxu0
    %v3410 = vadd.f32 %v3361, %v3409
    %3411 = vmatmul.bf16.gmra.mxu0 %v2277
    %v3412 = vpop.f32.mrf.mxu0
    %v3413 = vadd.f32 %v3364, %v3412
    %v3414 = vpop.f32.mrf.mxu0
    %v3415 = vadd.f32 %v3366, %v3414
    %3416 = vmatmul.bf16.gmra.mxu0 %v2281
    %v3417 = vpop.f32.mrf.mxu0
    %v3418 = vadd.f32 %v3369, %v3417
    %v3419 = vpop.f32.mrf.mxu0
    %v3420 = vadd.f32 %v3371, %v3419
    %3421 = vmatmul.bf16.gmra.mxu0 %v2285
    %v3422 = vpop.f32.mrf.mxu0
    %v3423 = vadd.f32 %v3374, %v3422
    %v3424 = vpop.f32.mrf.mxu0
    %v3425 = vadd.f32 %v3376, %v3424
    %3426 = vdwg.mxu0
    %3427 = vmatpush.bf16.msra.mxu0 %v2775
    %3428 = vmatpush.bf16.msra.mxu0 %v2771
    %3429 = vmatpush.bf16.msra.mxu0 %v2767
    %3430 = vmatpush.bf16.msra.mxu0 %v2763
    %3431 = vmatpush.bf16.msra.mxu0 %v2759
    %3432 = vmatpush.bf16.msra.mxu0 %v2755
    %3433 = vmatpush.bf16.msra.mxu0 %v2751
    %3434 = vmatpush.bf16.msra.mxu0 %v2747
    %3435 = vmatmul.bf16.gmra.mxu0 %v2258
    %v3436 = vpop.f32.mrf.mxu0
    %v3437 = vadd.f32 %v3388, %v3436
    %v3438 = vpop.f32.mrf.mxu0
    %v3439 = vadd.f32 %v3390, %v3438
    %3440 = vmatmul.bf16.gmra.mxu0 %v2262
    %v3441 = vpop.f32.mrf.mxu0
    %v3442 = vadd.f32 %v3393, %v3441
    %v3443 = vpop.f32.mrf.mxu0
    %v3444 = vadd.f32 %v3395, %v3443
    %3445 = vmatmul.bf16.gmra.mxu0 %v2266
    %v3446 = vpop.f32.mrf.mxu0
    %v3447 = vadd.f32 %v3398, %v3446
    %v3448 = vpop.f32.mrf.mxu0
    %v3449 = vadd.f32 %v3400, %v3448
    %3450 = vmatmul.bf16.gmra.mxu0 %v2270
    %v3451 = vpop.f32.mrf.mxu0
    %v3452 = vadd.f32 %v3403, %v3451
    %v3453 = vpop.f32.mrf.mxu0
    %v3454 = vadd.f32 %v3405, %v3453
    %3455 = vmatmul.bf16.gmra.mxu0 %v2274
    %v3456 = vpop.f32.mrf.mxu0
    %v3457 = vadd.f32 %v3408, %v3456
    %v3458 = vpop.f32.mrf.mxu0
    %v3459 = vadd.f32 %v3410, %v3458
    %3460 = vmatmul.bf16.gmra.mxu0 %v2278
    %v3461 = vpop.f32.mrf.mxu0
    %v3462 = vadd.f32 %v3413, %v3461
    %v3463 = vpop.f32.mrf.mxu0
    %v3464 = vadd.f32 %v3415, %v3463
    %3465 = vmatmul.bf16.gmra.mxu0 %v2282
    %v3466 = vpop.f32.mrf.mxu0
    %v3467 = vadd.f32 %v3418, %v3466
    %v3468 = vpop.f32.mrf.mxu0
    %v3469 = vadd.f32 %v3420, %v3468
    %3470 = vmatmul.bf16.gmra.mxu0 %v2286
    %v3471 = vpop.f32.mrf.mxu0
    %v3472 = vadd.f32 %v3423, %v3471
    %v3473 = vpop.f32.mrf.mxu0
    %v3474 = vadd.f32 %v3425, %v3473
    %3475 = vdwg.mxu0
    %3476 = vmatpush.bf16.msra.mxu0 %v2807
    %3477 = vmatpush.bf16.msra.mxu0 %v2803
    %3478 = vmatpush.bf16.msra.mxu0 %v2799
    %3479 = vmatpush.bf16.msra.mxu0 %v2795
    %3480 = vmatpush.bf16.msra.mxu0 %v2791
    %3481 = vmatpush.bf16.msra.mxu0 %v2787
    %3482 = vmatpush.bf16.msra.mxu0 %v2783
    %3483 = vmatpush.bf16.msra.mxu0 %v2779
    %3484 = vmatmul.bf16.gmra.mxu0 %v2259
    %v3485 = vpop.f32.mrf.mxu0
    %v3486 = vadd.f32 %v3437, %v3485
    %v3487 = vpop.f32.mrf.mxu0
    %v3488 = vadd.f32 %v3439, %v3487
    %3489 = vmatmul.bf16.gmra.mxu0 %v2263
    %v3490 = vpop.f32.mrf.mxu0
    %v3491 = vadd.f32 %v3442, %v3490
    %v3492 = vpop.f32.mrf.mxu0
    %v3493 = vadd.f32 %v3444, %v3492
    %3494 = vmatmul.bf16.gmra.mxu0 %v2267
    %v3495 = vpop.f32.mrf.mxu0
    %v3496 = vadd.f32 %v3447, %v3495
    %v3497 = vpop.f32.mrf.mxu0
    %v3498 = vadd.f32 %v3449, %v3497
    %3499 = vmatmul.bf16.gmra.mxu0 %v2271
    %v3500 = vpop.f32.mrf.mxu0
    %v3501 = vadd.f32 %v3452, %v3500
    %v3502 = vpop.f32.mrf.mxu0
    %v3503 = vadd.f32 %v3454, %v3502
    %3504 = vmatmul.bf16.gmra.mxu0 %v2275
    %v3505 = vpop.f32.mrf.mxu0
    %v3506 = vadd.f32 %v3457, %v3505
    %v3507 = vpop.f32.mrf.mxu0
    %v3508 = vadd.f32 %v3459, %v3507
    %3509 = vmatmul.bf16.gmra.mxu0 %v2279
    %v3510 = vpop.f32.mrf.mxu0
    %v3511 = vadd.f32 %v3462, %v3510
    %v3512 = vpop.f32.mrf.mxu0
    %v3513 = vadd.f32 %v3464, %v3512
    %3514 = vmatmul.bf16.gmra.mxu0 %v2283
    %v3515 = vpop.f32.mrf.mxu0
    %v3516 = vadd.f32 %v3467, %v3515
    %v3517 = vpop.f32.mrf.mxu0
    %v3518 = vadd.f32 %v3469, %v3517
    %3519 = vmatmul.bf16.gmra.mxu0 %v2287
    %v3520 = vpop.f32.mrf.mxu0
    %v3521 = vadd.f32 %v3472, %v3520
    %v3522 = vpop.f32.mrf.mxu0
    %v3523 = vadd.f32 %v3474, %v3522
    %3524 = vdwg.mxu0
    %3525 = vmatpush.bf16.msra.mxu0 %v2712
    %3526 = vmatpush.bf16.msra.mxu0 %v2708
    %3527 = vmatpush.bf16.msra.mxu0 %v2704
    %3528 = vmatpush.bf16.msra.mxu0 %v2700
    %3529 = vmatpush.bf16.msra.mxu0 %v2696
    %3530 = vmatpush.bf16.msra.mxu0 %v2692
    %3531 = vmatpush.bf16.msra.mxu0 %v2688
    %3532 = vmatpush.bf16.msra.mxu0 %v2684
    %3533 = vmatmul.bf16.gmra.mxu0 %v2256
    %v3534 = vpop.f32.mrf.mxu0
    %v3535 = vadd.f32 %v2292, %v3534
    %v3536 = vpop.f32.mrf.mxu0
    %v3537 = vadd.f32 %v2292, %v3536
    %3538 = vmatmul.bf16.gmra.mxu0 %v2260
    %v3539 = vpop.f32.mrf.mxu0
    %v3540 = vadd.f32 %v2292, %v3539
    %v3541 = vpop.f32.mrf.mxu0
    %v3542 = vadd.f32 %v2292, %v3541
    %3543 = vmatmul.bf16.gmra.mxu0 %v2264
    %v3544 = vpop.f32.mrf.mxu0
    %v3545 = vadd.f32 %v2292, %v3544
    %v3546 = vpop.f32.mrf.mxu0
    %v3547 = vadd.f32 %v2292, %v3546
    %3548 = vmatmul.bf16.gmra.mxu0 %v2268
    %v3549 = vpop.f32.mrf.mxu0
    %v3550 = vadd.f32 %v2292, %v3549
    %v3551 = vpop.f32.mrf.mxu0
    %v3552 = vadd.f32 %v2292, %v3551
    %3553 = vmatmul.bf16.gmra.mxu0 %v2272
    %v3554 = vpop.f32.mrf.mxu0
    %v3555 = vadd.f32 %v2292, %v3554
    %v3556 = vpop.f32.mrf.mxu0
    %v3557 = vadd.f32 %v2292, %v3556
    %3558 = vmatmul.bf16.gmra.mxu0 %v2276
    %v3559 = vpop.f32.mrf.mxu0
    %v3560 = vadd.f32 %v2292, %v3559
    %v3561 = vpop.f32.mrf.mxu0
    %v3562 = vadd.f32 %v2292, %v3561
    %3563 = vmatmul.bf16.gmra.mxu0 %v2280
    %v3564 = vpop.f32.mrf.mxu0
    %v3565 = vadd.f32 %v2292, %v3564
    %v3566 = vpop.f32.mrf.mxu0
    %v3567 = vadd.f32 %v2292, %v3566
    %3568 = vmatmul.bf16.gmra.mxu0 %v2284
    %v3569 = vpop.f32.mrf.mxu0
    %v3570 = vadd.f32 %v2292, %v3569
    %v3571 = vpop.f32.mrf.mxu0
    %v3572 = vadd.f32 %v2292, %v3571
    %3573 = vdwg.mxu0
    %3574 = vmatpush.bf16.msra.mxu0 %v2744
    %3575 = vmatpush.bf16.msra.mxu0 %v2740
    %3576 = vmatpush.bf16.msra.mxu0 %v2736
    %3577 = vmatpush.bf16.msra.mxu0 %v2732
    %3578 = vmatpush.bf16.msra.mxu0 %v2728
    %3579 = vmatpush.bf16.msra.mxu0 %v2724
    %3580 = vmatpush.bf16.msra.mxu0 %v2720
    %3581 = vmatpush.bf16.msra.mxu0 %v2716
    %3582 = vmatmul.bf16.gmra.mxu0 %v2257
    %v3583 = vpop.f32.mrf.mxu0
    %v3584 = vadd.f32 %v3535, %v3583
    %v3585 = vpop.f32.mrf.mxu0
    %v3586 = vadd.f32 %v3537, %v3585
    %3587 = vmatmul.bf16.gmra.mxu0 %v2261
    %v3588 = vpop.f32.mrf.mxu0
    %v3589 = vadd.f32 %v3540, %v3588
    %v3590 = vpop.f32.mrf.mxu0
    %v3591 = vadd.f32 %v3542, %v3590
    %3592 = vmatmul.bf16.gmra.mxu0 %v2265
    %v3593 = vpop.f32.mrf.mxu0
    %v3594 = vadd.f32 %v3545, %v3593
    %v3595 = vpop.f32.mrf.mxu0
    %v3596 = vadd.f32 %v3547, %v3595
    %3597 = vmatmul.bf16.gmra.mxu0 %v2269
    %v3598 = vpop.f32.mrf.mxu0
    %v3599 = vadd.f32 %v3550, %v3598
    %v3600 = vpop.f32.mrf.mxu0
    %v3601 = vadd.f32 %v3552, %v3600
    %3602 = vmatmul.bf16.gmra.mxu0 %v2273
    %v3603 = vpop.f32.mrf.mxu0
    %v3604 = vadd.f32 %v3555, %v3603
    %v3605 = vpop.f32.mrf.mxu0
    %v3606 = vadd.f32 %v3557, %v3605
    %3607 = vmatmul.bf16.gmra.mxu0 %v2277
    %v3608 = vpop.f32.mrf.mxu0
    %v3609 = vadd.f32 %v3560, %v3608
    %v3610 = vpop.f32.mrf.mxu0
    %v3611 = vadd.f32 %v3562, %v3610
    %3612 = vmatmul.bf16.gmra.mxu0 %v2281
    %v3613 = vpop.f32.mrf.mxu0
    %v3614 = vadd.f32 %v3565, %v3613
    %v3615 = vpop.f32.mrf.mxu0
    %v3616 = vadd.f32 %v3567, %v3615
    %3617 = vmatmul.bf16.gmra.mxu0 %v2285
    %v3618 = vpop.f32.mrf.mxu0
    %v3619 = vadd.f32 %v3570, %v3618
    %v3620 = vpop.f32.mrf.mxu0
    %v3621 = vadd.f32 %v3572, %v3620
    %3622 = vdwg.mxu0
    %3623 = vmatpush.bf16.msra.mxu0 %v2776
    %3624 = vmatpush.bf16.msra.mxu0 %v2772
    %3625 = vmatpush.bf16.msra.mxu0 %v2768
    %3626 = vmatpush.bf16.msra.mxu0 %v2764
    %3627 = vmatpush.bf16.msra.mxu0 %v2760
    %3628 = vmatpush.bf16.msra.mxu0 %v2756
    %3629 = vmatpush.bf16.msra.mxu0 %v2752
    %3630 = vmatpush.bf16.msra.mxu0 %v2748
    %3631 = vmatmul.bf16.gmra.mxu0 %v2258
    %v3632 = vpop.f32.mrf.mxu0
    %v3633 = vadd.f32 %v3584, %v3632
    %v3634 = vpop.f32.mrf.mxu0
    %v3635 = vadd.f32 %v3586, %v3634
    %3636 = vmatmul.bf16.gmra.mxu0 %v2262
    %v3637 = vpop.f32.mrf.mxu0
    %v3638 = vadd.f32 %v3589, %v3637
    %v3639 = vpop.f32.mrf.mxu0
    %v3640 = vadd.f32 %v3591, %v3639
    %3641 = vmatmul.bf16.gmra.mxu0 %v2266
    %v3642 = vpop.f32.mrf.mxu0
    %v3643 = vadd.f32 %v3594, %v3642
    %v3644 = vpop.f32.mrf.mxu0
    %v3645 = vadd.f32 %v3596, %v3644
    %3646 = vmatmul.bf16.gmra.mxu0 %v2270
    %v3647 = vpop.f32.mrf.mxu0
    %v3648 = vadd.f32 %v3599, %v3647
    %v3649 = vpop.f32.mrf.mxu0
    %v3650 = vadd.f32 %v3601, %v3649
    %3651 = vmatmul.bf16.gmra.mxu0 %v2274
    %v3652 = vpop.f32.mrf.mxu0
    %v3653 = vadd.f32 %v3604, %v3652
    %v3654 = vpop.f32.mrf.mxu0
    %v3655 = vadd.f32 %v3606, %v3654
    %3656 = vmatmul.bf16.gmra.mxu0 %v2278
    %v3657 = vpop.f32.mrf.mxu0
    %v3658 = vadd.f32 %v3609, %v3657
    %v3659 = vpop.f32.mrf.mxu0
    %v3660 = vadd.f32 %v3611, %v3659
    %3661 = vmatmul.bf16.gmra.mxu0 %v2282
    %v3662 = vpop.f32.mrf.mxu0
    %v3663 = vadd.f32 %v3614, %v3662
    %v3664 = vpop.f32.mrf.mxu0
    %v3665 = vadd.f32 %v3616, %v3664
    %3666 = vmatmul.bf16.gmra.mxu0 %v2286
    %v3667 = vpop.f32.mrf.mxu0
    %v3668 = vadd.f32 %v3619, %v3667
    %v3669 = vpop.f32.mrf.mxu0
    %v3670 = vadd.f32 %v3621, %v3669
    %3671 = vdwg.mxu0
    %3672 = vmatpush.bf16.msra.mxu0 %v2808
    %3673 = vmatpush.bf16.msra.mxu0 %v2804
    %3674 = vmatpush.bf16.msra.mxu0 %v2800
    %3675 = vmatpush.bf16.msra.mxu0 %v2796
    %3676 = vmatpush.bf16.msra.mxu0 %v2792
    %3677 = vmatpush.bf16.msra.mxu0 %v2788
    %3678 = vmatpush.bf16.msra.mxu0 %v2784
    %3679 = vmatpush.bf16.msra.mxu0 %v2780
    %3680 = vmatmul.bf16.gmra.mxu0 %v2259
    %v3681 = vpop.f32.mrf.mxu0
    %v3682 = vadd.f32 %v3633, %v3681
    %v3683 = vpop.f32.mrf.mxu0
    %v3684 = vadd.f32 %v3635, %v3683
    %3685 = vmatmul.bf16.gmra.mxu0 %v2263
    %v3686 = vpop.f32.mrf.mxu0
    %v3687 = vadd.f32 %v3638, %v3686
    %v3688 = vpop.f32.mrf.mxu0
    %v3689 = vadd.f32 %v3640, %v3688
    %3690 = vmatmul.bf16.gmra.mxu0 %v2267
    %v3691 = vpop.f32.mrf.mxu0
    %v3692 = vadd.f32 %v3643, %v3691
    %v3693 = vpop.f32.mrf.mxu0
    %v3694 = vadd.f32 %v3645, %v3693
    %3695 = vmatmul.bf16.gmra.mxu0 %v2271
    %v3696 = vpop.f32.mrf.mxu0
    %v3697 = vadd.f32 %v3648, %v3696
    %v3698 = vpop.f32.mrf.mxu0
    %v3699 = vadd.f32 %v3650, %v3698
    %3700 = vmatmul.bf16.gmra.mxu0 %v2275
    %v3701 = vpop.f32.mrf.mxu0
    %v3702 = vadd.f32 %v3653, %v3701
    %v3703 = vpop.f32.mrf.mxu0
    %v3704 = vadd.f32 %v3655, %v3703
    %3705 = vmatmul.bf16.gmra.mxu0 %v2279
    %v3706 = vpop.f32.mrf.mxu0
    %v3707 = vadd.f32 %v3658, %v3706
    %v3708 = vpop.f32.mrf.mxu0
    %v3709 = vadd.f32 %v3660, %v3708
    %3710 = vmatmul.bf16.gmra.mxu0 %v2283
    %v3711 = vpop.f32.mrf.mxu0
    %v3712 = vadd.f32 %v3663, %v3711
    %v3713 = vpop.f32.mrf.mxu0
    %v3714 = vadd.f32 %v3665, %v3713
    %3715 = vmatmul.bf16.gmra.mxu0 %v2287
    %v3716 = vpop.f32.mrf.mxu0
    %v3717 = vadd.f32 %v3668, %v3716
    %v3718 = vpop.f32.mrf.mxu0
    %v3719 = vadd.f32 %v3670, %v3718
    %3720 = vdwg.mxu0
    %v3721 = vmax.f32 %v3094, 0.0
    %v3722 = vmax.f32 %v3290, 0.0
    %v3723 = vmax.f32 %v3486, 0.0
    %v3724 = vmax.f32 %v3682, 0.0
    %v3725 = vmax.f32 %v3096, 0.0
    %v3726 = vmax.f32 %v3292, 0.0
    %v3727 = vmax.f32 %v3488, 0.0
    %v3728 = vmax.f32 %v3684, 0.0
    %v3729 = vmax.f32 %v3099, 0.0
    %v3730 = vmax.f32 %v3295, 0.0
    %v3731 = vmax.f32 %v3491, 0.0
    %v3732 = vmax.f32 %v3687, 0.0
    %v3733 = vmax.f32 %v3101, 0.0
    %v3734 = vmax.f32 %v3297, 0.0
    %v3735 = vmax.f32 %v3493, 0.0
    %v3736 = vmax.f32 %v3689, 0.0
    %v3737 = vmax.f32 %v3104, 0.0
    %v3738 = vmax.f32 %v3300, 0.0
    %v3739 = vmax.f32 %v3496, 0.0
    %v3740 = vmax.f32 %v3692, 0.0
    %v3741 = vmax.f32 %v3106, 0.0
    %v3742 = vmax.f32 %v3302, 0.0
    %v3743 = vmax.f32 %v3498, 0.0
    %v3744 = vmax.f32 %v3694, 0.0
    %v3745 = vmax.f32 %v3109, 0.0
    %v3746 = vmax.f32 %v3305, 0.0
    %v3747 = vmax.f32 %v3501, 0.0
    %v3748 = vmax.f32 %v3697, 0.0
    %v3749 = vmax.f32 %v3111, 0.0
    %v3750 = vmax.f32 %v3307, 0.0
    %v3751 = vmax.f32 %v3503, 0.0
    %v3752 = vmax.f32 %v3699, 0.0
    %v3753 = vmax.f32 %v3114, 0.0
    %v3754 = vmax.f32 %v3310, 0.0
    %v3755 = vmax.f32 %v3506, 0.0
    %v3756 = vmax.f32 %v3702, 0.0
    %v3757 = vmax.f32 %v3116, 0.0
    %v3758 = vmax.f32 %v3312, 0.0
    %v3759 = vmax.f32 %v3508, 0.0
    %v3760 = vmax.f32 %v3704, 0.0
    %v3761 = vmax.f32 %v3119, 0.0
    %v3762 = vmax.f32 %v3315, 0.0
    %v3763 = vmax.f32 %v3511, 0.0
    %v3764 = vmax.f32 %v3707, 0.0
    %v3765 = vmax.f32 %v3121, 0.0
    %v3766 = vmax.f32 %v3317, 0.0
    %v3767 = vmax.f32 %v3513, 0.0
    %v3768 = vmax.f32 %v3709, 0.0
    %v3769 = vmax.f32 %v3124, 0.0
    %v3770 = vmax.f32 %v3320, 0.0
    %v3771 = vmax.f32 %v3516, 0.0
    %v3772 = vmax.f32 %v3712, 0.0
    %v3773 = vmax.f32 %v3126, 0.0
    %v3774 = vmax.f32 %v3322, 0.0
    %v3775 = vmax.f32 %v3518, 0.0
    %v3776 = vmax.f32 %v3714, 0.0
    %v3777 = vmax.f32 %v3129, 0.0
    %v3778 = vmax.f32 %v3325, 0.0
    %v3779 = vmax.f32 %v3521, 0.0
    %v3780 = vmax.f32 %v3717, 0.0
    %v3781 = vmax.f32 %v3131, 0.0
    %v3782 = vmax.f32 %v3327, 0.0
    %v3783 = vmax.f32 %v3523, 0.0
    %v3784 = vmax.f32 %v3719, 0.0
    %v3785 = vpack.c.bf16 %v3725, %v3721
    %v3786 = vpack.c.bf16 %v3726, %v3722
    %v3787 = vpack.c.bf16 %v3727, %v3723
    %v3788 = vpack.c.bf16 %v3728, %v3724
    %v3789 = vpack.c.bf16 %v3733, %v3729
    %v3790 = vpack.c.bf16 %v3734, %v3730
    %v3791 = vpack.c.bf16 %v3735, %v3731
    %v3792 = vpack.c.bf16 %v3736, %v3732
    %v3793 = vpack.c.bf16 %v3741, %v3737
    %v3794 = vpack.c.bf16 %v3742, %v3738
    %v3795 = vpack.c.bf16 %v3743, %v3739
    %v3796 = vpack.c.bf16 %v3744, %v3740
    %v3797 = vpack.c.bf16 %v3749, %v3745
    %v3798 = vpack.c.bf16 %v3750, %v3746
    %v3799 = vpack.c.bf16 %v3751, %v3747
    %v3800 = vpack.c.bf16 %v3752, %v3748
    %v3801 = vpack.c.bf16 %v3757, %v3753
    %v3802 = vpack.c.bf16 %v3758, %v3754
    %v3803 = vpack.c.bf16 %v3759, %v3755
    %v3804 = vpack.c.bf16 %v3760, %v3756
    %v3805 = vpack.c.bf16 %v3765, %v3761
    %v3806 = vpack.c.bf16 %v3766, %v3762
    %v3807 = vpack.c.bf16 %v3767, %v3763
    %v3808 = vpack.c.bf16 %v3768, %v3764
    %v3809 = vpack.c.bf16 %v3773, %v3769
    %v3810 = vpack.c.bf16 %v3774, %v3770
    %v3811 = vpack.c.bf16 %v3775, %v3771
    %v3812 = vpack.c.bf16 %v3776, %v3772
    %v3813 = vpack.c.bf16 %v3781, %v3777
    %v3814 = vpack.c.bf16 %v3782, %v3778
    %v3815 = vpack.c.bf16 %v3783, %v3779
    %v3816 = vpack.c.bf16 %v3784, %v3780
    %v3818 = vperm.slane %v508, 0
    %v3819 = vperm.slane %v508, 1
    %v3820 = vperm.slane %v508, 2
    %v3821 = vperm.slane %v508, 3
    %v3954 = vunpack.c.l.b16 %v371
    %v3955 = vunpack.c.h.b16 %v371
    %v3956 = vunpack.c.l.b16 %v372
    %v3957 = vunpack.c.h.b16 %v372
    %v3958 = vunpack.c.l.b16 %v373
    %v3959 = vunpack.c.h.b16 %v373
    %v3960 = vunpack.c.l.b16 %v374
    %v3961 = vunpack.c.h.b16 %v374
    %v3962 = vunpack.c.l.b16 %v375
    %v3963 = vunpack.c.h.b16 %v375
    %v3964 = vunpack.c.l.b16 %v376
    %v3965 = vunpack.c.h.b16 %v376
    %v3966 = vunpack.c.l.b16 %v377
    %v3967 = vunpack.c.h.b16 %v377
    %v3968 = vunpack.c.l.b16 %v378
    %v3969 = vunpack.c.h.b16 %v378
    %v3970 = vunpack.c.l.b16 %v379
    %v3971 = vunpack.c.h.b16 %v379
    %v3972 = vunpack.c.l.b16 %v380
    %v3973 = vunpack.c.h.b16 %v380
    %v3974 = vunpack.c.l.b16 %v381
    %v3975 = vunpack.c.h.b16 %v381
    %v3976 = vunpack.c.l.b16 %v382
    %v3977 = vunpack.c.h.b16 %v382
    %v3978 = vunpack.c.l.b16 %v383
    %v3979 = vunpack.c.h.b16 %v383
    %v3980 = vunpack.c.l.b16 %v384
    %v3981 = vunpack.c.h.b16 %v384
    %v3982 = vunpack.c.l.b16 %v385
    %v3983 = vunpack.c.h.b16 %v385
    %v3984 = vunpack.c.l.b16 %v386
    %v3985 = vunpack.c.h.b16 %v386
    %v3986 = vunpack.c.l.b16 %v387
    %v3987 = vunpack.c.h.b16 %v387
    %v3988 = vunpack.c.l.b16 %v388
    %v3989 = vunpack.c.h.b16 %v388
    %v3990 = vunpack.c.l.b16 %v389
    %v3991 = vunpack.c.h.b16 %v389
    %v3992 = vunpack.c.l.b16 %v390
    %v3993 = vunpack.c.h.b16 %v390
    %v3994 = vunpack.c.l.b16 %v391
    %v3995 = vunpack.c.h.b16 %v391
    %v3996 = vunpack.c.l.b16 %v392
    %v3997 = vunpack.c.h.b16 %v392
    %v3998 = vunpack.c.l.b16 %v393
    %v3999 = vunpack.c.h.b16 %v393
    %v4000 = vunpack.c.l.b16 %v394
    %v4001 = vunpack.c.h.b16 %v394
    %v4002 = vunpack.c.l.b16 %v395
    %v4003 = vunpack.c.h.b16 %v395
    %v4004 = vunpack.c.l.b16 %v396
    %v4005 = vunpack.c.h.b16 %v396
    %v4006 = vunpack.c.l.b16 %v397
    %v4007 = vunpack.c.h.b16 %v397
    %v4008 = vunpack.c.l.b16 %v398
    %v4009 = vunpack.c.h.b16 %v398
    %v4010 = vunpack.c.l.b16 %v399
    %v4011 = vunpack.c.h.b16 %v399
    %v4012 = vunpack.c.l.b16 %v400
    %v4013 = vunpack.c.h.b16 %v400
    %v4014 = vunpack.c.l.b16 %v401
    %v4015 = vunpack.c.h.b16 %v401
    %v4016 = vunpack.c.l.b16 %v402
    %v4017 = vunpack.c.h.b16 %v402
    %v4018 = vunpack.c.l.b16 %v403
    %v4019 = vunpack.c.h.b16 %v403
    %v4020 = vunpack.c.l.b16 %v404
    %v4021 = vunpack.c.h.b16 %v404
    %v4022 = vunpack.c.l.b16 %v405
    %v4023 = vunpack.c.h.b16 %v405
    %v4024 = vunpack.c.l.b16 %v406
    %v4025 = vunpack.c.h.b16 %v406
    %v4026 = vunpack.c.l.b16 %v407
    %v4027 = vunpack.c.h.b16 %v407
    %v4028 = vunpack.c.l.b16 %v408
    %v4029 = vunpack.c.h.b16 %v408
    %v4030 = vunpack.c.l.b16 %v409
    %v4031 = vunpack.c.h.b16 %v409
    %v4032 = vunpack.c.l.b16 %v410
    %v4033 = vunpack.c.h.b16 %v410
    %v4034 = vunpack.c.l.b16 %v411
    %v4035 = vunpack.c.h.b16 %v411
    %v4036 = vunpack.c.l.b16 %v412
    %v4037 = vunpack.c.h.b16 %v412
    %v4038 = vunpack.c.l.b16 %v413
    %v4039 = vunpack.c.h.b16 %v413
    %v4040 = vunpack.c.l.b16 %v414
    %v4041 = vunpack.c.h.b16 %v414
    %v4042 = vunpack.c.l.b16 %v415
    %v4043 = vunpack.c.h.b16 %v415
    %v4044 = vunpack.c.l.b16 %v416
    %v4045 = vunpack.c.h.b16 %v416
    %v4046 = vunpack.c.l.b16 %v417
    %v4047 = vunpack.c.h.b16 %v417
    %v4048 = vunpack.c.l.b16 %v418
    %v4049 = vunpack.c.h.b16 %v418
    %v4050 = vunpack.c.l.b16 %v419
    %v4051 = vunpack.c.h.b16 %v419
    %v4052 = vunpack.c.l.b16 %v420
    %v4053 = vunpack.c.h.b16 %v420
    %v4054 = vunpack.c.l.b16 %v421
    %v4055 = vunpack.c.h.b16 %v421
    %v4056 = vunpack.c.l.b16 %v422
    %v4057 = vunpack.c.h.b16 %v422
    %v4058 = vunpack.c.l.b16 %v423
    %v4059 = vunpack.c.h.b16 %v423
    %v4060 = vunpack.c.l.b16 %v424
    %v4061 = vunpack.c.h.b16 %v424
    %v4062 = vunpack.c.l.b16 %v425
    %v4063 = vunpack.c.h.b16 %v425
    %v4064 = vunpack.c.l.b16 %v426
    %v4065 = vunpack.c.h.b16 %v426
    %v4066 = vunpack.c.l.b16 %v427
    %v4067 = vunpack.c.h.b16 %v427
    %v4068 = vunpack.c.l.b16 %v428
    %v4069 = vunpack.c.h.b16 %v428
    %v4070 = vunpack.c.l.b16 %v429
    %v4071 = vunpack.c.h.b16 %v429
    %v4072 = vunpack.c.l.b16 %v430
    %v4073 = vunpack.c.h.b16 %v430
    %v4074 = vunpack.c.l.b16 %v431
    %v4075 = vunpack.c.h.b16 %v431
    %v4076 = vunpack.c.l.b16 %v432
    %v4077 = vunpack.c.h.b16 %v432
    %v4078 = vunpack.c.l.b16 %v433
    %v4079 = vunpack.c.h.b16 %v433
    %v4080 = vunpack.c.l.b16 %v434
    %v4081 = vunpack.c.h.b16 %v434
    %v4082 = vunpack.c.l.b16 %v435
    %v4083 = vunpack.c.h.b16 %v435
    %v4084 = vunpack.c.l.b16 %v436
    %v4085 = vunpack.c.h.b16 %v436
    %v4086 = vunpack.c.l.b16 %v437
    %v4087 = vunpack.c.h.b16 %v437
    %v4088 = vunpack.c.l.b16 %v438
    %v4089 = vunpack.c.h.b16 %v438
    %v4090 = vunpack.c.l.b16 %v439
    %v4091 = vunpack.c.h.b16 %v439
    %v4092 = vunpack.c.l.b16 %v440
    %v4093 = vunpack.c.h.b16 %v440
    %v4094 = vunpack.c.l.b16 %v441
    %v4095 = vunpack.c.h.b16 %v441
    %v4096 = vunpack.c.l.b16 %v442
    %v4097 = vunpack.c.h.b16 %v442
    %v4098 = vunpack.c.l.b16 %v443
    %v4099 = vunpack.c.h.b16 %v443
    %v4100 = vunpack.c.l.b16 %v444
    %v4101 = vunpack.c.h.b16 %v444
    %v4102 = vunpack.c.l.b16 %v445
    %v4103 = vunpack.c.h.b16 %v445
    %v4104 = vunpack.c.l.b16 %v446
    %v4105 = vunpack.c.h.b16 %v446
    %v4106 = vunpack.c.l.b16 %v447
    %v4107 = vunpack.c.h.b16 %v447
    %v4108 = vunpack.c.l.b16 %v448
    %v4109 = vunpack.c.h.b16 %v448
    %v4110 = vunpack.c.l.b16 %v449
    %v4111 = vunpack.c.h.b16 %v449
    %v4112 = vunpack.c.l.b16 %v450
    %v4113 = vunpack.c.h.b16 %v450
    %v4114 = vunpack.c.l.b16 %v451
    %v4115 = vunpack.c.h.b16 %v451
    %v4116 = vunpack.c.l.b16 %v452
    %v4117 = vunpack.c.h.b16 %v452
    %v4118 = vunpack.c.l.b16 %v453
    %v4119 = vunpack.c.h.b16 %v453
    %v4120 = vunpack.c.l.b16 %v454
    %v4121 = vunpack.c.h.b16 %v454
    %v4122 = vunpack.c.l.b16 %v455
    %v4123 = vunpack.c.h.b16 %v455
    %v4124 = vunpack.c.l.b16 %v456
    %v4125 = vunpack.c.h.b16 %v456
    %v4126 = vunpack.c.l.b16 %v457
    %v4127 = vunpack.c.h.b16 %v457
    %v4128 = vunpack.c.l.b16 %v458
    %v4129 = vunpack.c.h.b16 %v458
    %v4130 = vunpack.c.l.b16 %v459
    %v4131 = vunpack.c.h.b16 %v459
    %v4132 = vunpack.c.l.b16 %v460
    %v4133 = vunpack.c.h.b16 %v460
    %v4134 = vunpack.c.l.b16 %v461
    %v4135 = vunpack.c.h.b16 %v461
    %v4136 = vunpack.c.l.b16 %v462
    %v4137 = vunpack.c.h.b16 %v462
    %v4138 = vunpack.c.l.b16 %v463
    %v4139 = vunpack.c.h.b16 %v463
    %v4140 = vunpack.c.l.b16 %v464
    %v4141 = vunpack.c.h.b16 %v464
    %v4142 = vunpack.c.l.b16 %v465
    %v4143 = vunpack.c.h.b16 %v465
    %v4144 = vunpack.c.l.b16 %v466
    %v4145 = vunpack.c.h.b16 %v466
    %v4146 = vunpack.c.l.b16 %v467
    %v4147 = vunpack.c.h.b16 %v467
    %v4148 = vunpack.c.l.b16 %v468
    %v4149 = vunpack.c.h.b16 %v468
    %v4150 = vunpack.c.l.b16 %v469
    %v4151 = vunpack.c.h.b16 %v469
    %v4152 = vunpack.c.l.b16 %v470
    %v4153 = vunpack.c.h.b16 %v470
    %v4154 = vunpack.c.l.b16 %v471
    %v4155 = vunpack.c.h.b16 %v471
    %v4156 = vunpack.c.l.b16 %v472
    %v4157 = vunpack.c.h.b16 %v472
    %v4158 = vunpack.c.l.b16 %v473
    %v4159 = vunpack.c.h.b16 %v473
    %v4160 = vunpack.c.l.b16 %v474
    %v4161 = vunpack.c.h.b16 %v474
    %v4162 = vunpack.c.l.b16 %v475
    %v4163 = vunpack.c.h.b16 %v475
    %v4164 = vunpack.c.l.b16 %v476
    %v4165 = vunpack.c.h.b16 %v476
    %v4166 = vunpack.c.l.b16 %v477
    %v4167 = vunpack.c.h.b16 %v477
    %v4168 = vunpack.c.l.b16 %v478
    %v4169 = vunpack.c.h.b16 %v478
    %v4170 = vunpack.c.l.b16 %v479
    %v4171 = vunpack.c.h.b16 %v479
    %v4172 = vunpack.c.l.b16 %v480
    %v4173 = vunpack.c.h.b16 %v480
    %v4174 = vunpack.c.l.b16 %v481
    %v4175 = vunpack.c.h.b16 %v481
    %v4176 = vunpack.c.l.b16 %v482
    %v4177 = vunpack.c.h.b16 %v482
    %v4178 = vunpack.c.l.b16 %v483
    %v4179 = vunpack.c.h.b16 %v483
    %v4180 = vunpack.c.l.b16 %v484
    %v4181 = vunpack.c.h.b16 %v484
    %v4182 = vunpack.c.l.b16 %v485
    %v4183 = vunpack.c.h.b16 %v485
    %v4184 = vunpack.c.l.b16 %v486
    %v4185 = vunpack.c.h.b16 %v486
    %v4186 = vunpack.c.l.b16 %v487
    %v4187 = vunpack.c.h.b16 %v487
    %v4188 = vunpack.c.l.b16 %v488
    %v4189 = vunpack.c.h.b16 %v488
    %v4190 = vunpack.c.l.b16 %v489
    %v4191 = vunpack.c.h.b16 %v489
    %v4192 = vunpack.c.l.b16 %v490
    %v4193 = vunpack.c.h.b16 %v490
    %v4194 = vunpack.c.l.b16 %v491
    %v4195 = vunpack.c.h.b16 %v491
    %v4196 = vunpack.c.l.b16 %v492
    %v4197 = vunpack.c.h.b16 %v492
    %v4198 = vunpack.c.l.b16 %v493
    %v4199 = vunpack.c.h.b16 %v493
    %v4200 = vunpack.c.l.b16 %v494
    %v4201 = vunpack.c.h.b16 %v494
    %v4202 = vunpack.c.l.b16 %v495
    %v4203 = vunpack.c.h.b16 %v495
    %v4204 = vunpack.c.l.b16 %v496
    %v4205 = vunpack.c.h.b16 %v496
    %v4206 = vunpack.c.l.b16 %v497
    %v4207 = vunpack.c.h.b16 %v497
    %v4208 = vunpack.c.l.b16 %v498
    %v4209 = vunpack.c.h.b16 %v498
    %v4210 = vpack.c.b16 %v3958, %v3954
    %v4211 = vpack.c.b16 %v3959, %v3955
    %v4212 = vpack.c.b16 %v3960, %v3956
    %v4213 = vpack.c.b16 %v3961, %v3957
    %v4214 = vpack.c.b16 %v3966, %v3962
    %v4215 = vpack.c.b16 %v3967, %v3963
    %v4216 = vpack.c.b16 %v3968, %v3964
    %v4217 = vpack.c.b16 %v3969, %v3965
    %v4218 = vpack.c.b16 %v3974, %v3970
    %v4219 = vpack.c.b16 %v3975, %v3971
    %v4220 = vpack.c.b16 %v3976, %v3972
    %v4221 = vpack.c.b16 %v3977, %v3973
    %v4222 = vpack.c.b16 %v3982, %v3978
    %v4223 = vpack.c.b16 %v3983, %v3979
    %v4224 = vpack.c.b16 %v3984, %v3980
    %v4225 = vpack.c.b16 %v3985, %v3981
    %v4226 = vpack.c.b16 %v3990, %v3986
    %v4227 = vpack.c.b16 %v3991, %v3987
    %v4228 = vpack.c.b16 %v3992, %v3988
    %v4229 = vpack.c.b16 %v3993, %v3989
    %v4230 = vpack.c.b16 %v3998, %v3994
    %v4231 = vpack.c.b16 %v3999, %v3995
    %v4232 = vpack.c.b16 %v4000, %v3996
    %v4233 = vpack.c.b16 %v4001, %v3997
    %v4234 = vpack.c.b16 %v4006, %v4002
    %v4235 = vpack.c.b16 %v4007, %v4003
    %v4236 = vpack.c.b16 %v4008, %v4004
    %v4237 = vpack.c.b16 %v4009, %v4005
    %v4238 = vpack.c.b16 %v4014, %v4010
    %v4239 = vpack.c.b16 %v4015, %v4011
    %v4240 = vpack.c.b16 %v4016, %v4012
    %v4241 = vpack.c.b16 %v4017, %v4013
    %v4242 = vpack.c.b16 %v4022, %v4018
    %v4243 = vpack.c.b16 %v4023, %v4019
    %v4244 = vpack.c.b16 %v4024, %v4020
    %v4245 = vpack.c.b16 %v4025, %v4021
    %v4246 = vpack.c.b16 %v4030, %v4026
    %v4247 = vpack.c.b16 %v4031, %v4027
    %v4248 = vpack.c.b16 %v4032, %v4028
    %v4249 = vpack.c.b16 %v4033, %v4029
    %v4250 = vpack.c.b16 %v4038, %v4034
    %v4251 = vpack.c.b16 %v4039, %v4035
    %v4252 = vpack.c.b16 %v4040, %v4036
    %v4253 = vpack.c.b16 %v4041, %v4037
    %v4254 = vpack.c.b16 %v4046, %v4042
    %v4255 = vpack.c.b16 %v4047, %v4043
    %v4256 = vpack.c.b16 %v4048, %v4044
    %v4257 = vpack.c.b16 %v4049, %v4045
    %v4258 = vpack.c.b16 %v4054, %v4050
    %v4259 = vpack.c.b16 %v4055, %v4051
    %v4260 = vpack.c.b16 %v4056, %v4052
    %v4261 = vpack.c.b16 %v4057, %v4053
    %v4262 = vpack.c.b16 %v4062, %v4058
    %v4263 = vpack.c.b16 %v4063, %v4059
    %v4264 = vpack.c.b16 %v4064, %v4060
    %v4265 = vpack.c.b16 %v4065, %v4061
    %v4266 = vpack.c.b16 %v4070, %v4066
    %v4267 = vpack.c.b16 %v4071, %v4067
    %v4268 = vpack.c.b16 %v4072, %v4068
    %v4269 = vpack.c.b16 %v4073, %v4069
    %v4270 = vpack.c.b16 %v4078, %v4074
    %v4271 = vpack.c.b16 %v4079, %v4075
    %v4272 = vpack.c.b16 %v4080, %v4076
    %v4273 = vpack.c.b16 %v4081, %v4077
    %v4274 = vpack.c.b16 %v4086, %v4082
    %v4275 = vpack.c.b16 %v4087, %v4083
    %v4276 = vpack.c.b16 %v4088, %v4084
    %v4277 = vpack.c.b16 %v4089, %v4085
    %v4278 = vpack.c.b16 %v4094, %v4090
    %v4279 = vpack.c.b16 %v4095, %v4091
    %v4280 = vpack.c.b16 %v4096, %v4092
    %v4281 = vpack.c.b16 %v4097, %v4093
    %v4282 = vpack.c.b16 %v4102, %v4098
    %v4283 = vpack.c.b16 %v4103, %v4099
    %v4284 = vpack.c.b16 %v4104, %v4100
    %v4285 = vpack.c.b16 %v4105, %v4101
    %v4286 = vpack.c.b16 %v4110, %v4106
    %v4287 = vpack.c.b16 %v4111, %v4107
    %v4288 = vpack.c.b16 %v4112, %v4108
    %v4289 = vpack.c.b16 %v4113, %v4109
    %v4290 = vpack.c.b16 %v4118, %v4114
    %v4291 = vpack.c.b16 %v4119, %v4115
    %v4292 = vpack.c.b16 %v4120, %v4116
    %v4293 = vpack.c.b16 %v4121, %v4117
    %v4294 = vpack.c.b16 %v4126, %v4122
    %v4295 = vpack.c.b16 %v4127, %v4123
    %v4296 = vpack.c.b16 %v4128, %v4124
    %v4297 = vpack.c.b16 %v4129, %v4125
    %v4298 = vpack.c.b16 %v4134, %v4130
    %v4299 = vpack.c.b16 %v4135, %v4131
    %v4300 = vpack.c.b16 %v4136, %v4132
    %v4301 = vpack.c.b16 %v4137, %v4133
    %v4302 = vpack.c.b16 %v4142, %v4138
    %v4303 = vpack.c.b16 %v4143, %v4139
    %v4304 = vpack.c.b16 %v4144, %v4140
    %v4305 = vpack.c.b16 %v4145, %v4141
    %v4306 = vpack.c.b16 %v4150, %v4146
    %v4307 = vpack.c.b16 %v4151, %v4147
    %v4308 = vpack.c.b16 %v4152, %v4148
    %v4309 = vpack.c.b16 %v4153, %v4149
    %v4310 = vpack.c.b16 %v4158, %v4154
    %v4311 = vpack.c.b16 %v4159, %v4155
    %v4312 = vpack.c.b16 %v4160, %v4156
    %v4313 = vpack.c.b16 %v4161, %v4157
    %v4314 = vpack.c.b16 %v4166, %v4162
    %v4315 = vpack.c.b16 %v4167, %v4163
    %v4316 = vpack.c.b16 %v4168, %v4164
    %v4317 = vpack.c.b16 %v4169, %v4165
    %v4318 = vpack.c.b16 %v4174, %v4170
    %v4319 = vpack.c.b16 %v4175, %v4171
    %v4320 = vpack.c.b16 %v4176, %v4172
    %v4321 = vpack.c.b16 %v4177, %v4173
    %v4322 = vpack.c.b16 %v4182, %v4178
    %v4323 = vpack.c.b16 %v4183, %v4179
    %v4324 = vpack.c.b16 %v4184, %v4180
    %v4325 = vpack.c.b16 %v4185, %v4181
    %v4326 = vpack.c.b16 %v4190, %v4186
    %v4327 = vpack.c.b16 %v4191, %v4187
    %v4328 = vpack.c.b16 %v4192, %v4188
    %v4329 = vpack.c.b16 %v4193, %v4189
    %v4330 = vpack.c.b16 %v4198, %v4194
    %v4331 = vpack.c.b16 %v4199, %v4195
    %v4332 = vpack.c.b16 %v4200, %v4196
    %v4333 = vpack.c.b16 %v4201, %v4197
    %v4334 = vpack.c.b16 %v4206, %v4202
    %v4335 = vpack.c.b16 %v4207, %v4203
    %v4336 = vpack.c.b16 %v4208, %v4204
    %v4337 = vpack.c.b16 %v4209, %v4205
    %4466 = vmatpush.bf16.msra.mxu0 %v4238
    %4467 = vmatpush.bf16.msra.mxu0 %v4234
    %4468 = vmatpush.bf16.msra.mxu0 %v4230
    %4469 = vmatpush.bf16.msra.mxu0 %v4226
    %4470 = vmatpush.bf16.msra.mxu0 %v4222
    %4471 = vmatpush.bf16.msra.mxu0 %v4218
    %4472 = vmatpush.bf16.msra.mxu0 %v4214
    %4473 = vmatpush.bf16.msra.mxu0 %v4210
    %4474 = vmatmul.bf16.gmra.mxu0 %v3785
    %v4475 = vpop.f32.mrf.mxu0
    %v4476 = vadd.f32 %v3818, %v4475
    %v4477 = vpop.f32.mrf.mxu0
    %v4478 = vadd.f32 %v3818, %v4477
    %4479 = vmatmul.bf16.gmra.mxu0 %v3789
    %v4480 = vpop.f32.mrf.mxu0
    %v4481 = vadd.f32 %v3818, %v4480
    %v4482 = vpop.f32.mrf.mxu0
    %v4483 = vadd.f32 %v3818, %v4482
    %4484 = vmatmul.bf16.gmra.mxu0 %v3793
    %v4485 = vpop.f32.mrf.mxu0
    %v4486 = vadd.f32 %v3818, %v4485
    %v4487 = vpop.f32.mrf.mxu0
    %v4488 = vadd.f32 %v3818, %v4487
    %4489 = vmatmul.bf16.gmra.mxu0 %v3797
    %v4490 = vpop.f32.mrf.mxu0
    %v4491 = vadd.f32 %v3818, %v4490
    %v4492 = vpop.f32.mrf.mxu0
    %v4493 = vadd.f32 %v3818, %v4492
    %4494 = vmatmul.bf16.gmra.mxu0 %v3801
    %v4495 = vpop.f32.mrf.mxu0
    %v4496 = vadd.f32 %v3818, %v4495
    %v4497 = vpop.f32.mrf.mxu0
    %v4498 = vadd.f32 %v3818, %v4497
    %4499 = vmatmul.bf16.gmra.mxu0 %v3805
    %v4500 = vpop.f32.mrf.mxu0
    %v4501 = vadd.f32 %v3818, %v4500
    %v4502 = vpop.f32.mrf.mxu0
    %v4503 = vadd.f32 %v3818, %v4502
    %4504 = vmatmul.bf16.gmra.mxu0 %v3809
    %v4505 = vpop.f32.mrf.mxu0
    %v4506 = vadd.f32 %v3818, %v4505
    %v4507 = vpop.f32.mrf.mxu0
    %v4508 = vadd.f32 %v3818, %v4507
    %4509 = vmatmul.bf16.gmra.mxu0 %v3813
    %v4510 = vpop.f32.mrf.mxu0
    %v4511 = vadd.f32 %v3818, %v4510
    %v4512 = vpop.f32.mrf.mxu0
    %v4513 = vadd.f32 %v3818, %v4512
    %4514 = vdwg.mxu0
    %4515 = vmatpush.bf16.msra.mxu0 %v4270
    %4516 = vmatpush.bf16.msra.mxu0 %v4266
    %4517 = vmatpush.bf16.msra.mxu0 %v4262
    %4518 = vmatpush.bf16.msra.mxu0 %v4258
    %4519 = vmatpush.bf16.msra.mxu0 %v4254
    %4520 = vmatpush.bf16.msra.mxu0 %v4250
    %4521 = vmatpush.bf16.msra.mxu0 %v4246
    %4522 = vmatpush.bf16.msra.mxu0 %v4242
    %4523 = vmatmul.bf16.gmra.mxu0 %v3786
    %v4524 = vpop.f32.mrf.mxu0
    %v4525 = vadd.f32 %v4476, %v4524
    %v4526 = vpop.f32.mrf.mxu0
    %v4527 = vadd.f32 %v4478, %v4526
    %4528 = vmatmul.bf16.gmra.mxu0 %v3790
    %v4529 = vpop.f32.mrf.mxu0
    %v4530 = vadd.f32 %v4481, %v4529
    %v4531 = vpop.f32.mrf.mxu0
    %v4532 = vadd.f32 %v4483, %v4531
    %4533 = vmatmul.bf16.gmra.mxu0 %v3794
    %v4534 = vpop.f32.mrf.mxu0
    %v4535 = vadd.f32 %v4486, %v4534
    %v4536 = vpop.f32.mrf.mxu0
    %v4537 = vadd.f32 %v4488, %v4536
    %4538 = vmatmul.bf16.gmra.mxu0 %v3798
    %v4539 = vpop.f32.mrf.mxu0
    %v4540 = vadd.f32 %v4491, %v4539
    %v4541 = vpop.f32.mrf.mxu0
    %v4542 = vadd.f32 %v4493, %v4541
    %4543 = vmatmul.bf16.gmra.mxu0 %v3802
    %v4544 = vpop.f32.mrf.mxu0
    %v4545 = vadd.f32 %v4496, %v4544
    %v4546 = vpop.f32.mrf.mxu0
    %v4547 = vadd.f32 %v4498, %v4546
    %4548 = vmatmul.bf16.gmra.mxu0 %v3806
    %v4549 = vpop.f32.mrf.mxu0
    %v4550 = vadd.f32 %v4501, %v4549
    %v4551 = vpop.f32.mrf.mxu0
    %v4552 = vadd.f32 %v4503, %v4551
    %4553 = vmatmul.bf16.gmra.mxu0 %v3810
    %v4554 = vpop.f32.mrf.mxu0
    %v4555 = vadd.f32 %v4506, %v4554
    %v4556 = vpop.f32.mrf.mxu0
    %v4557 = vadd.f32 %v4508, %v4556
    %4558 = vmatmul.bf16.gmra.mxu0 %v3814
    %v4559 = vpop.f32.mrf.mxu0
    %v4560 = vadd.f32 %v4511, %v4559
    %v4561 = vpop.f32.mrf.mxu0
    %v4562 = vadd.f32 %v4513, %v4561
    %4563 = vdwg.mxu0
    %4564 = vmatpush.bf16.msra.mxu0 %v4302
    %4565 = vmatpush.bf16.msra.mxu0 %v4298
    %4566 = vmatpush.bf16.msra.mxu0 %v4294
    %4567 = vmatpush.bf16.msra.mxu0 %v4290
    %4568 = vmatpush.bf16.msra.mxu0 %v4286
    %4569 = vmatpush.bf16.msra.mxu0 %v4282
    %4570 = vmatpush.bf16.msra.mxu0 %v4278
    %4571 = vmatpush.bf16.msra.mxu0 %v4274
    %4572 = vmatmul.bf16.gmra.mxu0 %v3787
    %v4573 = vpop.f32.mrf.mxu0
    %v4574 = vadd.f32 %v4525, %v4573
    %v4575 = vpop.f32.mrf.mxu0
    %v4576 = vadd.f32 %v4527, %v4575
    %4577 = vmatmul.bf16.gmra.mxu0 %v3791
    %v4578 = vpop.f32.mrf.mxu0
    %v4579 = vadd.f32 %v4530, %v4578
    %v4580 = vpop.f32.mrf.mxu0
    %v4581 = vadd.f32 %v4532, %v4580
    %4582 = vmatmul.bf16.gmra.mxu0 %v3795
    %v4583 = vpop.f32.mrf.mxu0
    %v4584 = vadd.f32 %v4535, %v4583
    %v4585 = vpop.f32.mrf.mxu0
    %v4586 = vadd.f32 %v4537, %v4585
    %4587 = vmatmul.bf16.gmra.mxu0 %v3799
    %v4588 = vpop.f32.mrf.mxu0
    %v4589 = vadd.f32 %v4540, %v4588
    %v4590 = vpop.f32.mrf.mxu0
    %v4591 = vadd.f32 %v4542, %v4590
    %4592 = vmatmul.bf16.gmra.mxu0 %v3803
    %v4593 = vpop.f32.mrf.mxu0
    %v4594 = vadd.f32 %v4545, %v4593
    %v4595 = vpop.f32.mrf.mxu0
    %v4596 = vadd.f32 %v4547, %v4595
    %4597 = vmatmul.bf16.gmra.mxu0 %v3807
    %v4598 = vpop.f32.mrf.mxu0
    %v4599 = vadd.f32 %v4550, %v4598
    %v4600 = vpop.f32.mrf.mxu0
    %v4601 = vadd.f32 %v4552, %v4600
    %4602 = vmatmul.bf16.gmra.mxu0 %v3811
    %v4603 = vpop.f32.mrf.mxu0
    %v4604 = vadd.f32 %v4555, %v4603
    %v4605 = vpop.f32.mrf.mxu0
    %v4606 = vadd.f32 %v4557, %v4605
    %4607 = vmatmul.bf16.gmra.mxu0 %v3815
    %v4608 = vpop.f32.mrf.mxu0
    %v4609 = vadd.f32 %v4560, %v4608
    %v4610 = vpop.f32.mrf.mxu0
    %v4611 = vadd.f32 %v4562, %v4610
    %4612 = vdwg.mxu0
    %4613 = vmatpush.bf16.msra.mxu0 %v4334
    %4614 = vmatpush.bf16.msra.mxu0 %v4330
    %4615 = vmatpush.bf16.msra.mxu0 %v4326
    %4616 = vmatpush.bf16.msra.mxu0 %v4322
    %4617 = vmatpush.bf16.msra.mxu0 %v4318
    %4618 = vmatpush.bf16.msra.mxu0 %v4314
    %4619 = vmatpush.bf16.msra.mxu0 %v4310
    %4620 = vmatpush.bf16.msra.mxu0 %v4306
    %4621 = vmatmul.bf16.gmra.mxu0 %v3788
    %v4622 = vpop.f32.mrf.mxu0
    %v4623 = vadd.f32 %v4574, %v4622
    %v4624 = vpop.f32.mrf.mxu0
    %v4625 = vadd.f32 %v4576, %v4624
    %4626 = vmatmul.bf16.gmra.mxu0 %v3792
    %v4627 = vpop.f32.mrf.mxu0
    %v4628 = vadd.f32 %v4579, %v4627
    %v4629 = vpop.f32.mrf.mxu0
    %v4630 = vadd.f32 %v4581, %v4629
    %4631 = vmatmul.bf16.gmra.mxu0 %v3796
    %v4632 = vpop.f32.mrf.mxu0
    %v4633 = vadd.f32 %v4584, %v4632
    %v4634 = vpop.f32.mrf.mxu0
    %v4635 = vadd.f32 %v4586, %v4634
    %4636 = vmatmul.bf16.gmra.mxu0 %v3800
    %v4637 = vpop.f32.mrf.mxu0
    %v4638 = vadd.f32 %v4589, %v4637
    %v4639 = vpop.f32.mrf.mxu0
    %v4640 = vadd.f32 %v4591, %v4639
    %4641 = vmatmul.bf16.gmra.mxu0 %v3804
    %v4642 = vpop.f32.mrf.mxu0
    %v4643 = vadd.f32 %v4594, %v4642
    %v4644 = vpop.f32.mrf.mxu0
    %v4645 = vadd.f32 %v4596, %v4644
    %4646 = vmatmul.bf16.gmra.mxu0 %v3808
    %v4647 = vpop.f32.mrf.mxu0
    %v4648 = vadd.f32 %v4599, %v4647
    %v4649 = vpop.f32.mrf.mxu0
    %v4650 = vadd.f32 %v4601, %v4649
    %4651 = vmatmul.bf16.gmra.mxu0 %v3812
    %v4652 = vpop.f32.mrf.mxu0
    %v4653 = vadd.f32 %v4604, %v4652
    %v4654 = vpop.f32.mrf.mxu0
    %v4655 = vadd.f32 %v4606, %v4654
    %4656 = vmatmul.bf16.gmra.mxu0 %v3816
    %v4657 = vpop.f32.mrf.mxu0
    %v4658 = vadd.f32 %v4609, %v4657
    %v4659 = vpop.f32.mrf.mxu0
    %v4660 = vadd.f32 %v4611, %v4659
    %4661 = vdwg.mxu0
    %4662 = vmatpush.bf16.msra.mxu0 %v4239
    %4663 = vmatpush.bf16.msra.mxu0 %v4235
    %4664 = vmatpush.bf16.msra.mxu0 %v4231
    %4665 = vmatpush.bf16.msra.mxu0 %v4227
    %4666 = vmatpush.bf16.msra.mxu0 %v4223
    %4667 = vmatpush.bf16.msra.mxu0 %v4219
    %4668 = vmatpush.bf16.msra.mxu0 %v4215
    %4669 = vmatpush.bf16.msra.mxu0 %v4211
    %4670 = vmatmul.bf16.gmra.mxu0 %v3785
    %v4671 = vpop.f32.mrf.mxu0
    %v4672 = vadd.f32 %v3819, %v4671
    %v4673 = vpop.f32.mrf.mxu0
    %v4674 = vadd.f32 %v3819, %v4673
    %4675 = vmatmul.bf16.gmra.mxu0 %v3789
    %v4676 = vpop.f32.mrf.mxu0
    %v4677 = vadd.f32 %v3819, %v4676
    %v4678 = vpop.f32.mrf.mxu0
    %v4679 = vadd.f32 %v3819, %v4678
    %4680 = vmatmul.bf16.gmra.mxu0 %v3793
    %v4681 = vpop.f32.mrf.mxu0
    %v4682 = vadd.f32 %v3819, %v4681
    %v4683 = vpop.f32.mrf.mxu0
    %v4684 = vadd.f32 %v3819, %v4683
    %4685 = vmatmul.bf16.gmra.mxu0 %v3797
    %v4686 = vpop.f32.mrf.mxu0
    %v4687 = vadd.f32 %v3819, %v4686
    %v4688 = vpop.f32.mrf.mxu0
    %v4689 = vadd.f32 %v3819, %v4688
    %4690 = vmatmul.bf16.gmra.mxu0 %v3801
    %v4691 = vpop.f32.mrf.mxu0
    %v4692 = vadd.f32 %v3819, %v4691
    %v4693 = vpop.f32.mrf.mxu0
    %v4694 = vadd.f32 %v3819, %v4693
    %4695 = vmatmul.bf16.gmra.mxu0 %v3805
    %v4696 = vpop.f32.mrf.mxu0
    %v4697 = vadd.f32 %v3819, %v4696
    %v4698 = vpop.f32.mrf.mxu0
    %v4699 = vadd.f32 %v3819, %v4698
    %4700 = vmatmul.bf16.gmra.mxu0 %v3809
    %v4701 = vpop.f32.mrf.mxu0
    %v4702 = vadd.f32 %v3819, %v4701
    %v4703 = vpop.f32.mrf.mxu0
    %v4704 = vadd.f32 %v3819, %v4703
    %4705 = vmatmul.bf16.gmra.mxu0 %v3813
    %v4706 = vpop.f32.mrf.mxu0
    %v4707 = vadd.f32 %v3819, %v4706
    %v4708 = vpop.f32.mrf.mxu0
    %v4709 = vadd.f32 %v3819, %v4708
    %4710 = vdwg.mxu0
    %4711 = vmatpush.bf16.msra.mxu0 %v4271
    %4712 = vmatpush.bf16.msra.mxu0 %v4267
    %4713 = vmatpush.bf16.msra.mxu0 %v4263
    %4714 = vmatpush.bf16.msra.mxu0 %v4259
    %4715 = vmatpush.bf16.msra.mxu0 %v4255
    %4716 = vmatpush.bf16.msra.mxu0 %v4251
    %4717 = vmatpush.bf16.msra.mxu0 %v4247
    %4718 = vmatpush.bf16.msra.mxu0 %v4243
    %4719 = vmatmul.bf16.gmra.mxu0 %v3786
    %v4720 = vpop.f32.mrf.mxu0
    %v4721 = vadd.f32 %v4672, %v4720
    %v4722 = vpop.f32.mrf.mxu0
    %v4723 = vadd.f32 %v4674, %v4722
    %4724 = vmatmul.bf16.gmra.mxu0 %v3790
    %v4725 = vpop.f32.mrf.mxu0
    %v4726 = vadd.f32 %v4677, %v4725
    %v4727 = vpop.f32.mrf.mxu0
    %v4728 = vadd.f32 %v4679, %v4727
    %4729 = vmatmul.bf16.gmra.mxu0 %v3794
    %v4730 = vpop.f32.mrf.mxu0
    %v4731 = vadd.f32 %v4682, %v4730
    %v4732 = vpop.f32.mrf.mxu0
    %v4733 = vadd.f32 %v4684, %v4732
    %4734 = vmatmul.bf16.gmra.mxu0 %v3798
    %v4735 = vpop.f32.mrf.mxu0
    %v4736 = vadd.f32 %v4687, %v4735
    %v4737 = vpop.f32.mrf.mxu0
    %v4738 = vadd.f32 %v4689, %v4737
    %4739 = vmatmul.bf16.gmra.mxu0 %v3802
    %v4740 = vpop.f32.mrf.mxu0
    %v4741 = vadd.f32 %v4692, %v4740
    %v4742 = vpop.f32.mrf.mxu0
    %v4743 = vadd.f32 %v4694, %v4742
    %4744 = vmatmul.bf16.gmra.mxu0 %v3806
    %v4745 = vpop.f32.mrf.mxu0
    %v4746 = vadd.f32 %v4697, %v4745
    %v4747 = vpop.f32.mrf.mxu0
    %v4748 = vadd.f32 %v4699, %v4747
    %4749 = vmatmul.bf16.gmra.mxu0 %v3810
    %v4750 = vpop.f32.mrf.mxu0
    %v4751 = vadd.f32 %v4702, %v4750
    %v4752 = vpop.f32.mrf.mxu0
    %v4753 = vadd.f32 %v4704, %v4752
    %4754 = vmatmul.bf16.gmra.mxu0 %v3814
    %v4755 = vpop.f32.mrf.mxu0
    %v4756 = vadd.f32 %v4707, %v4755
    %v4757 = vpop.f32.mrf.mxu0
    %v4758 = vadd.f32 %v4709, %v4757
    %4759 = vdwg.mxu0
    %4760 = vmatpush.bf16.msra.mxu0 %v4303
    %4761 = vmatpush.bf16.msra.mxu0 %v4299
    %4762 = vmatpush.bf16.msra.mxu0 %v4295
    %4763 = vmatpush.bf16.msra.mxu0 %v4291
    %4764 = vmatpush.bf16.msra.mxu0 %v4287
    %4765 = vmatpush.bf16.msra.mxu0 %v4283
    %4766 = vmatpush.bf16.msra.mxu0 %v4279
    %4767 = vmatpush.bf16.msra.mxu0 %v4275
    %4768 = vmatmul.bf16.gmra.mxu0 %v3787
    %v4769 = vpop.f32.mrf.mxu0
    %v4770 = vadd.f32 %v4721, %v4769
    %v4771 = vpop.f32.mrf.mxu0
    %v4772 = vadd.f32 %v4723, %v4771
    %4773 = vmatmul.bf16.gmra.mxu0 %v3791
    %v4774 = vpop.f32.mrf.mxu0
    %v4775 = vadd.f32 %v4726, %v4774
    %v4776 = vpop.f32.mrf.mxu0
    %v4777 = vadd.f32 %v4728, %v4776
    %4778 = vmatmul.bf16.gmra.mxu0 %v3795
    %v4779 = vpop.f32.mrf.mxu0
    %v4780 = vadd.f32 %v4731, %v4779
    %v4781 = vpop.f32.mrf.mxu0
    %v4782 = vadd.f32 %v4733, %v4781
    %4783 = vmatmul.bf16.gmra.mxu0 %v3799
    %v4784 = vpop.f32.mrf.mxu0
    %v4785 = vadd.f32 %v4736, %v4784
    %v4786 = vpop.f32.mrf.mxu0
    %v4787 = vadd.f32 %v4738, %v4786
    %4788 = vmatmul.bf16.gmra.mxu0 %v3803
    %v4789 = vpop.f32.mrf.mxu0
    %v4790 = vadd.f32 %v4741, %v4789
    %v4791 = vpop.f32.mrf.mxu0
    %v4792 = vadd.f32 %v4743, %v4791
    %4793 = vmatmul.bf16.gmra.mxu0 %v3807
    %v4794 = vpop.f32.mrf.mxu0
    %v4795 = vadd.f32 %v4746, %v4794
    %v4796 = vpop.f32.mrf.mxu0
    %v4797 = vadd.f32 %v4748, %v4796
    %4798 = vmatmul.bf16.gmra.mxu0 %v3811
    %v4799 = vpop.f32.mrf.mxu0
    %v4800 = vadd.f32 %v4751, %v4799
    %v4801 = vpop.f32.mrf.mxu0
    %v4802 = vadd.f32 %v4753, %v4801
    %4803 = vmatmul.bf16.gmra.mxu0 %v3815
    %v4804 = vpop.f32.mrf.mxu0
    %v4805 = vadd.f32 %v4756, %v4804
    %v4806 = vpop.f32.mrf.mxu0
    %v4807 = vadd.f32 %v4758, %v4806
    %4808 = vdwg.mxu0
    %4809 = vmatpush.bf16.msra.mxu0 %v4335
    %4810 = vmatpush.bf16.msra.mxu0 %v4331
    %4811 = vmatpush.bf16.msra.mxu0 %v4327
    %4812 = vmatpush.bf16.msra.mxu0 %v4323
    %4813 = vmatpush.bf16.msra.mxu0 %v4319
    %4814 = vmatpush.bf16.msra.mxu0 %v4315
    %4815 = vmatpush.bf16.msra.mxu0 %v4311
    %4816 = vmatpush.bf16.msra.mxu0 %v4307
    %4817 = vmatmul.bf16.gmra.mxu0 %v3788
    %v4818 = vpop.f32.mrf.mxu0
    %v4819 = vadd.f32 %v4770, %v4818
    %v4820 = vpop.f32.mrf.mxu0
    %v4821 = vadd.f32 %v4772, %v4820
    %4822 = vmatmul.bf16.gmra.mxu0 %v3792
    %v4823 = vpop.f32.mrf.mxu0
    %v4824 = vadd.f32 %v4775, %v4823
    %v4825 = vpop.f32.mrf.mxu0
    %v4826 = vadd.f32 %v4777, %v4825
    %4827 = vmatmul.bf16.gmra.mxu0 %v3796
    %v4828 = vpop.f32.mrf.mxu0
    %v4829 = vadd.f32 %v4780, %v4828
    %v4830 = vpop.f32.mrf.mxu0
    %v4831 = vadd.f32 %v4782, %v4830
    %4832 = vmatmul.bf16.gmra.mxu0 %v3800
    %v4833 = vpop.f32.mrf.mxu0
    %v4834 = vadd.f32 %v4785, %v4833
    %v4835 = vpop.f32.mrf.mxu0
    %v4836 = vadd.f32 %v4787, %v4835
    %4837 = vmatmul.bf16.gmra.mxu0 %v3804
    %v4838 = vpop.f32.mrf.mxu0
    %v4839 = vadd.f32 %v4790, %v4838
    %v4840 = vpop.f32.mrf.mxu0
    %v4841 = vadd.f32 %v4792, %v4840
    %4842 = vmatmul.bf16.gmra.mxu0 %v3808
    %v4843 = vpop.f32.mrf.mxu0
    %v4844 = vadd.f32 %v4795, %v4843
    %v4845 = vpop.f32.mrf.mxu0
    %v4846 = vadd.f32 %v4797, %v4845
    %4847 = vmatmul.bf16.gmra.mxu0 %v3812
    %v4848 = vpop.f32.mrf.mxu0
    %v4849 = vadd.f32 %v4800, %v4848
    %v4850 = vpop.f32.mrf.mxu0
    %v4851 = vadd.f32 %v4802, %v4850
    %4852 = vmatmul.bf16.gmra.mxu0 %v3816
    %v4853 = vpop.f32.mrf.mxu0
    %v4854 = vadd.f32 %v4805, %v4853
    %v4855 = vpop.f32.mrf.mxu0
    %v4856 = vadd.f32 %v4807, %v4855
    %4857 = vdwg.mxu0
    %4858 = vmatpush.bf16.msra.mxu0 %v4240
    %4859 = vmatpush.bf16.msra.mxu0 %v4236
    %4860 = vmatpush.bf16.msra.mxu0 %v4232
    %4861 = vmatpush.bf16.msra.mxu0 %v4228
    %4862 = vmatpush.bf16.msra.mxu0 %v4224
    %4863 = vmatpush.bf16.msra.mxu0 %v4220
    %4864 = vmatpush.bf16.msra.mxu0 %v4216
    %4865 = vmatpush.bf16.msra.mxu0 %v4212
    %4866 = vmatmul.bf16.gmra.mxu0 %v3785
    %v4867 = vpop.f32.mrf.mxu0
    %v4868 = vadd.f32 %v3820, %v4867
    %v4869 = vpop.f32.mrf.mxu0
    %v4870 = vadd.f32 %v3820, %v4869
    %4871 = vmatmul.bf16.gmra.mxu0 %v3789
    %v4872 = vpop.f32.mrf.mxu0
    %v4873 = vadd.f32 %v3820, %v4872
    %v4874 = vpop.f32.mrf.mxu0
    %v4875 = vadd.f32 %v3820, %v4874
    %4876 = vmatmul.bf16.gmra.mxu0 %v3793
    %v4877 = vpop.f32.mrf.mxu0
    %v4878 = vadd.f32 %v3820, %v4877
    %v4879 = vpop.f32.mrf.mxu0
    %v4880 = vadd.f32 %v3820, %v4879
    %4881 = vmatmul.bf16.gmra.mxu0 %v3797
    %v4882 = vpop.f32.mrf.mxu0
    %v4883 = vadd.f32 %v3820, %v4882
    %v4884 = vpop.f32.mrf.mxu0
    %v4885 = vadd.f32 %v3820, %v4884
    %4886 = vmatmul.bf16.gmra.mxu0 %v3801
    %v4887 = vpop.f32.mrf.mxu0
    %v4888 = vadd.f32 %v3820, %v4887
    %v4889 = vpop.f32.mrf.mxu0
    %v4890 = vadd.f32 %v3820, %v4889
    %4891 = vmatmul.bf16.gmra.mxu0 %v3805
    %v4892 = vpop.f32.mrf.mxu0
    %v4893 = vadd.f32 %v3820, %v4892
    %v4894 = vpop.f32.mrf.mxu0
    %v4895 = vadd.f32 %v3820, %v4894
    %4896 = vmatmul.bf16.gmra.mxu0 %v3809
    %v4897 = vpop.f32.mrf.mxu0
    %v4898 = vadd.f32 %v3820, %v4897
    %v4899 = vpop.f32.mrf.mxu0
    %v4900 = vadd.f32 %v3820, %v4899
    %4901 = vmatmul.bf16.gmra.mxu0 %v3813
    %v4902 = vpop.f32.mrf.mxu0
    %v4903 = vadd.f32 %v3820, %v4902
    %v4904 = vpop.f32.mrf.mxu0
    %v4905 = vadd.f32 %v3820, %v4904
    %4906 = vdwg.mxu0
    %4907 = vmatpush.bf16.msra.mxu0 %v4272
    %4908 = vmatpush.bf16.msra.mxu0 %v4268
    %4909 = vmatpush.bf16.msra.mxu0 %v4264
    %4910 = vmatpush.bf16.msra.mxu0 %v4260
    %4911 = vmatpush.bf16.msra.mxu0 %v4256
    %4912 = vmatpush.bf16.msra.mxu0 %v4252
    %4913 = vmatpush.bf16.msra.mxu0 %v4248
    %4914 = vmatpush.bf16.msra.mxu0 %v4244
    %4915 = vmatmul.bf16.gmra.mxu0 %v3786
    %v4916 = vpop.f32.mrf.mxu0
    %v4917 = vadd.f32 %v4868, %v4916
    %v4918 = vpop.f32.mrf.mxu0
    %v4919 = vadd.f32 %v4870, %v4918
    %4920 = vmatmul.bf16.gmra.mxu0 %v3790
    %v4921 = vpop.f32.mrf.mxu0
    %v4922 = vadd.f32 %v4873, %v4921
    %v4923 = vpop.f32.mrf.mxu0
    %v4924 = vadd.f32 %v4875, %v4923
    %4925 = vmatmul.bf16.gmra.mxu0 %v3794
    %v4926 = vpop.f32.mrf.mxu0
    %v4927 = vadd.f32 %v4878, %v4926
    %v4928 = vpop.f32.mrf.mxu0
    %v4929 = vadd.f32 %v4880, %v4928
    %4930 = vmatmul.bf16.gmra.mxu0 %v3798
    %v4931 = vpop.f32.mrf.mxu0
    %v4932 = vadd.f32 %v4883, %v4931
    %v4933 = vpop.f32.mrf.mxu0
    %v4934 = vadd.f32 %v4885, %v4933
    %4935 = vmatmul.bf16.gmra.mxu0 %v3802
    %v4936 = vpop.f32.mrf.mxu0
    %v4937 = vadd.f32 %v4888, %v4936
    %v4938 = vpop.f32.mrf.mxu0
    %v4939 = vadd.f32 %v4890, %v4938
    %4940 = vmatmul.bf16.gmra.mxu0 %v3806
    %v4941 = vpop.f32.mrf.mxu0
    %v4942 = vadd.f32 %v4893, %v4941
    %v4943 = vpop.f32.mrf.mxu0
    %v4944 = vadd.f32 %v4895, %v4943
    %4945 = vmatmul.bf16.gmra.mxu0 %v3810
    %v4946 = vpop.f32.mrf.mxu0
    %v4947 = vadd.f32 %v4898, %v4946
    %v4948 = vpop.f32.mrf.mxu0
    %v4949 = vadd.f32 %v4900, %v4948
    %4950 = vmatmul.bf16.gmra.mxu0 %v3814
    %v4951 = vpop.f32.mrf.mxu0
    %v4952 = vadd.f32 %v4903, %v4951
    %v4953 = vpop.f32.mrf.mxu0
    %v4954 = vadd.f32 %v4905, %v4953
    %4955 = vdwg.mxu0
    %4956 = vmatpush.bf16.msra.mxu0 %v4304
    %4957 = vmatpush.bf16.msra.mxu0 %v4300
    %4958 = vmatpush.bf16.msra.mxu0 %v4296
    %4959 = vmatpush.bf16.msra.mxu0 %v4292
    %4960 = vmatpush.bf16.msra.mxu0 %v4288
    %4961 = vmatpush.bf16.msra.mxu0 %v4284
    %4962 = vmatpush.bf16.msra.mxu0 %v4280
    %4963 = vmatpush.bf16.msra.mxu0 %v4276
    %4964 = vmatmul.bf16.gmra.mxu0 %v3787
    %v4965 = vpop.f32.mrf.mxu0
    %v4966 = vadd.f32 %v4917, %v4965
    %v4967 = vpop.f32.mrf.mxu0
    %v4968 = vadd.f32 %v4919, %v4967
    %4969 = vmatmul.bf16.gmra.mxu0 %v3791
    %v4970 = vpop.f32.mrf.mxu0
    %v4971 = vadd.f32 %v4922, %v4970
    %v4972 = vpop.f32.mrf.mxu0
    %v4973 = vadd.f32 %v4924, %v4972
    %4974 = vmatmul.bf16.gmra.mxu0 %v3795
    %v4975 = vpop.f32.mrf.mxu0
    %v4976 = vadd.f32 %v4927, %v4975
    %v4977 = vpop.f32.mrf.mxu0
    %v4978 = vadd.f32 %v4929, %v4977
    %4979 = vmatmul.bf16.gmra.mxu0 %v3799
    %v4980 = vpop.f32.mrf.mxu0
    %v4981 = vadd.f32 %v4932, %v4980
    %v4982 = vpop.f32.mrf.mxu0
    %v4983 = vadd.f32 %v4934, %v4982
    %4984 = vmatmul.bf16.gmra.mxu0 %v3803
    %v4985 = vpop.f32.mrf.mxu0
    %v4986 = vadd.f32 %v4937, %v4985
    %v4987 = vpop.f32.mrf.mxu0
    %v4988 = vadd.f32 %v4939, %v4987
    %4989 = vmatmul.bf16.gmra.mxu0 %v3807
    %v4990 = vpop.f32.mrf.mxu0
    %v4991 = vadd.f32 %v4942, %v4990
    %v4992 = vpop.f32.mrf.mxu0
    %v4993 = vadd.f32 %v4944, %v4992
    %4994 = vmatmul.bf16.gmra.mxu0 %v3811
    %v4995 = vpop.f32.mrf.mxu0
    %v4996 = vadd.f32 %v4947, %v4995
    %v4997 = vpop.f32.mrf.mxu0
    %v4998 = vadd.f32 %v4949, %v4997
    %4999 = vmatmul.bf16.gmra.mxu0 %v3815
    %v5000 = vpop.f32.mrf.mxu0
    %v5001 = vadd.f32 %v4952, %v5000
    %v5002 = vpop.f32.mrf.mxu0
    %v5003 = vadd.f32 %v4954, %v5002
    %5004 = vdwg.mxu0
    %5005 = vmatpush.bf16.msra.mxu0 %v4336
    %5006 = vmatpush.bf16.msra.mxu0 %v4332
    %5007 = vmatpush.bf16.msra.mxu0 %v4328
    %5008 = vmatpush.bf16.msra.mxu0 %v4324
    %5009 = vmatpush.bf16.msra.mxu0 %v4320
    %5010 = vmatpush.bf16.msra.mxu0 %v4316
    %5011 = vmatpush.bf16.msra.mxu0 %v4312
    %5012 = vmatpush.bf16.msra.mxu0 %v4308
    %5013 = vmatmul.bf16.gmra.mxu0 %v3788
    %v5014 = vpop.f32.mrf.mxu0
    %v5015 = vadd.f32 %v4966, %v5014
    %v5016 = vpop.f32.mrf.mxu0
    %v5017 = vadd.f32 %v4968, %v5016
    %5018 = vmatmul.bf16.gmra.mxu0 %v3792
    %v5019 = vpop.f32.mrf.mxu0
    %v5020 = vadd.f32 %v4971, %v5019
    %v5021 = vpop.f32.mrf.mxu0
    %v5022 = vadd.f32 %v4973, %v5021
    %5023 = vmatmul.bf16.gmra.mxu0 %v3796
    %v5024 = vpop.f32.mrf.mxu0
    %v5025 = vadd.f32 %v4976, %v5024
    %v5026 = vpop.f32.mrf.mxu0
    %v5027 = vadd.f32 %v4978, %v5026
    %5028 = vmatmul.bf16.gmra.mxu0 %v3800
    %v5029 = vpop.f32.mrf.mxu0
    %v5030 = vadd.f32 %v4981, %v5029
    %v5031 = vpop.f32.mrf.mxu0
    %v5032 = vadd.f32 %v4983, %v5031
    %5033 = vmatmul.bf16.gmra.mxu0 %v3804
    %v5034 = vpop.f32.mrf.mxu0
    %v5035 = vadd.f32 %v4986, %v5034
    %v5036 = vpop.f32.mrf.mxu0
    %v5037 = vadd.f32 %v4988, %v5036
    %5038 = vmatmul.bf16.gmra.mxu0 %v3808
    %v5039 = vpop.f32.mrf.mxu0
    %v5040 = vadd.f32 %v4991, %v5039
    %v5041 = vpop.f32.mrf.mxu0
    %v5042 = vadd.f32 %v4993, %v5041
    %5043 = vmatmul.bf16.gmra.mxu0 %v3812
    %v5044 = vpop.f32.mrf.mxu0
    %v5045 = vadd.f32 %v4996, %v5044
    %v5046 = vpop.f32.mrf.mxu0
    %v5047 = vadd.f32 %v4998, %v5046
    %5048 = vmatmul.bf16.gmra.mxu0 %v3816
    %v5049 = vpop.f32.mrf.mxu0
    %v5050 = vadd.f32 %v5001, %v5049
    %v5051 = vpop.f32.mrf.mxu0
    %v5052 = vadd.f32 %v5003, %v5051
    %5053 = vdwg.mxu0
    %5054 = vmatpush.bf16.msra.mxu0 %v4241
    %5055 = vmatpush.bf16.msra.mxu0 %v4237
    %5056 = vmatpush.bf16.msra.mxu0 %v4233
    %5057 = vmatpush.bf16.msra.mxu0 %v4229
    %5058 = vmatpush.bf16.msra.mxu0 %v4225
    %5059 = vmatpush.bf16.msra.mxu0 %v4221
    %5060 = vmatpush.bf16.msra.mxu0 %v4217
    %5061 = vmatpush.bf16.msra.mxu0 %v4213
    %5062 = vmatmul.bf16.gmra.mxu0 %v3785
    %v5063 = vpop.f32.mrf.mxu0
    %v5064 = vadd.f32 %v3821, %v5063
    %v5065 = vpop.f32.mrf.mxu0
    %v5066 = vadd.f32 %v3821, %v5065
    %5067 = vmatmul.bf16.gmra.mxu0 %v3789
    %v5068 = vpop.f32.mrf.mxu0
    %v5069 = vadd.f32 %v3821, %v5068
    %v5070 = vpop.f32.mrf.mxu0
    %v5071 = vadd.f32 %v3821, %v5070
    %5072 = vmatmul.bf16.gmra.mxu0 %v3793
    %v5073 = vpop.f32.mrf.mxu0
    %v5074 = vadd.f32 %v3821, %v5073
    %v5075 = vpop.f32.mrf.mxu0
    %v5076 = vadd.f32 %v3821, %v5075
    %5077 = vmatmul.bf16.gmra.mxu0 %v3797
    %v5078 = vpop.f32.mrf.mxu0
    %v5079 = vadd.f32 %v3821, %v5078
    %v5080 = vpop.f32.mrf.mxu0
    %v5081 = vadd.f32 %v3821, %v5080
    %5082 = vmatmul.bf16.gmra.mxu0 %v3801
    %v5083 = vpop.f32.mrf.mxu0
    %v5084 = vadd.f32 %v3821, %v5083
    %v5085 = vpop.f32.mrf.mxu0
    %v5086 = vadd.f32 %v3821, %v5085
    %5087 = vmatmul.bf16.gmra.mxu0 %v3805
    %v5088 = vpop.f32.mrf.mxu0
    %v5089 = vadd.f32 %v3821, %v5088
    %v5090 = vpop.f32.mrf.mxu0
    %v5091 = vadd.f32 %v3821, %v5090
    %5092 = vmatmul.bf16.gmra.mxu0 %v3809
    %v5093 = vpop.f32.mrf.mxu0
    %v5094 = vadd.f32 %v3821, %v5093
    %v5095 = vpop.f32.mrf.mxu0
    %v5096 = vadd.f32 %v3821, %v5095
    %5097 = vmatmul.bf16.gmra.mxu0 %v3813
    %v5098 = vpop.f32.mrf.mxu0
    %v5099 = vadd.f32 %v3821, %v5098
    %v5100 = vpop.f32.mrf.mxu0
    %v5101 = vadd.f32 %v3821, %v5100
    %5102 = vdwg.mxu0
    %5103 = vmatpush.bf16.msra.mxu0 %v4273
    %5104 = vmatpush.bf16.msra.mxu0 %v4269
    %5105 = vmatpush.bf16.msra.mxu0 %v4265
    %5106 = vmatpush.bf16.msra.mxu0 %v4261
    %5107 = vmatpush.bf16.msra.mxu0 %v4257
    %5108 = vmatpush.bf16.msra.mxu0 %v4253
    %5109 = vmatpush.bf16.msra.mxu0 %v4249
    %5110 = vmatpush.bf16.msra.mxu0 %v4245
    %5111 = vmatmul.bf16.gmra.mxu0 %v3786
    %v5112 = vpop.f32.mrf.mxu0
    %v5113 = vadd.f32 %v5064, %v5112
    %v5114 = vpop.f32.mrf.mxu0
    %v5115 = vadd.f32 %v5066, %v5114
    %5116 = vmatmul.bf16.gmra.mxu0 %v3790
    %v5117 = vpop.f32.mrf.mxu0
    %v5118 = vadd.f32 %v5069, %v5117
    %v5119 = vpop.f32.mrf.mxu0
    %v5120 = vadd.f32 %v5071, %v5119
    %5121 = vmatmul.bf16.gmra.mxu0 %v3794
    %v5122 = vpop.f32.mrf.mxu0
    %v5123 = vadd.f32 %v5074, %v5122
    %v5124 = vpop.f32.mrf.mxu0
    %v5125 = vadd.f32 %v5076, %v5124
    %5126 = vmatmul.bf16.gmra.mxu0 %v3798
    %v5127 = vpop.f32.mrf.mxu0
    %v5128 = vadd.f32 %v5079, %v5127
    %v5129 = vpop.f32.mrf.mxu0
    %v5130 = vadd.f32 %v5081, %v5129
    %5131 = vmatmul.bf16.gmra.mxu0 %v3802
    %v5132 = vpop.f32.mrf.mxu0
    %v5133 = vadd.f32 %v5084, %v5132
    %v5134 = vpop.f32.mrf.mxu0
    %v5135 = vadd.f32 %v5086, %v5134
    %5136 = vmatmul.bf16.gmra.mxu0 %v3806
    %v5137 = vpop.f32.mrf.mxu0
    %v5138 = vadd.f32 %v5089, %v5137
    %v5139 = vpop.f32.mrf.mxu0
    %v5140 = vadd.f32 %v5091, %v5139
    %5141 = vmatmul.bf16.gmra.mxu0 %v3810
    %v5142 = vpop.f32.mrf.mxu0
    %v5143 = vadd.f32 %v5094, %v5142
    %v5144 = vpop.f32.mrf.mxu0
    %v5145 = vadd.f32 %v5096, %v5144
    %5146 = vmatmul.bf16.gmra.mxu0 %v3814
    %v5147 = vpop.f32.mrf.mxu0
    %v5148 = vadd.f32 %v5099, %v5147
    %v5149 = vpop.f32.mrf.mxu0
    %v5150 = vadd.f32 %v5101, %v5149
    %5151 = vdwg.mxu0
    %5152 = vmatpush.bf16.msra.mxu0 %v4305
    %5153 = vmatpush.bf16.msra.mxu0 %v4301
    %5154 = vmatpush.bf16.msra.mxu0 %v4297
    %5155 = vmatpush.bf16.msra.mxu0 %v4293
    %5156 = vmatpush.bf16.msra.mxu0 %v4289
    %5157 = vmatpush.bf16.msra.mxu0 %v4285
    %5158 = vmatpush.bf16.msra.mxu0 %v4281
    %5159 = vmatpush.bf16.msra.mxu0 %v4277
    %5160 = vmatmul.bf16.gmra.mxu0 %v3787
    %v5161 = vpop.f32.mrf.mxu0
    %v5162 = vadd.f32 %v5113, %v5161
    %v5163 = vpop.f32.mrf.mxu0
    %v5164 = vadd.f32 %v5115, %v5163
    %5165 = vmatmul.bf16.gmra.mxu0 %v3791
    %v5166 = vpop.f32.mrf.mxu0
    %v5167 = vadd.f32 %v5118, %v5166
    %v5168 = vpop.f32.mrf.mxu0
    %v5169 = vadd.f32 %v5120, %v5168
    %5170 = vmatmul.bf16.gmra.mxu0 %v3795
    %v5171 = vpop.f32.mrf.mxu0
    %v5172 = vadd.f32 %v5123, %v5171
    %v5173 = vpop.f32.mrf.mxu0
    %v5174 = vadd.f32 %v5125, %v5173
    %5175 = vmatmul.bf16.gmra.mxu0 %v3799
    %v5176 = vpop.f32.mrf.mxu0
    %v5177 = vadd.f32 %v5128, %v5176
    %v5178 = vpop.f32.mrf.mxu0
    %v5179 = vadd.f32 %v5130, %v5178
    %5180 = vmatmul.bf16.gmra.mxu0 %v3803
    %v5181 = vpop.f32.mrf.mxu0
    %v5182 = vadd.f32 %v5133, %v5181
    %v5183 = vpop.f32.mrf.mxu0
    %v5184 = vadd.f32 %v5135, %v5183
    %5185 = vmatmul.bf16.gmra.mxu0 %v3807
    %v5186 = vpop.f32.mrf.mxu0
    %v5187 = vadd.f32 %v5138, %v5186
    %v5188 = vpop.f32.mrf.mxu0
    %v5189 = vadd.f32 %v5140, %v5188
    %5190 = vmatmul.bf16.gmra.mxu0 %v3811
    %v5191 = vpop.f32.mrf.mxu0
    %v5192 = vadd.f32 %v5143, %v5191
    %v5193 = vpop.f32.mrf.mxu0
    %v5194 = vadd.f32 %v5145, %v5193
    %5195 = vmatmul.bf16.gmra.mxu0 %v3815
    %v5196 = vpop.f32.mrf.mxu0
    %v5197 = vadd.f32 %v5148, %v5196
    %v5198 = vpop.f32.mrf.mxu0
    %v5199 = vadd.f32 %v5150, %v5198
    %5200 = vdwg.mxu0
    %5201 = vmatpush.bf16.msra.mxu0 %v4337
    %5202 = vmatpush.bf16.msra.mxu0 %v4333
    %5203 = vmatpush.bf16.msra.mxu0 %v4329
    %5204 = vmatpush.bf16.msra.mxu0 %v4325
    %5205 = vmatpush.bf16.msra.mxu0 %v4321
    %5206 = vmatpush.bf16.msra.mxu0 %v4317
    %5207 = vmatpush.bf16.msra.mxu0 %v4313
    %5208 = vmatpush.bf16.msra.mxu0 %v4309
    %5209 = vmatmul.bf16.gmra.mxu0 %v3788
    %v5210 = vpop.f32.mrf.mxu0
    %v5211 = vadd.f32 %v5162, %v5210
    %v5212 = vpop.f32.mrf.mxu0
    %v5213 = vadd.f32 %v5164, %v5212
    %5214 = vmatmul.bf16.gmra.mxu0 %v3792
    %v5215 = vpop.f32.mrf.mxu0
    %v5216 = vadd.f32 %v5167, %v5215
    %v5217 = vpop.f32.mrf.mxu0
    %v5218 = vadd.f32 %v5169, %v5217
    %5219 = vmatmul.bf16.gmra.mxu0 %v3796
    %v5220 = vpop.f32.mrf.mxu0
    %v5221 = vadd.f32 %v5172, %v5220
    %v5222 = vpop.f32.mrf.mxu0
    %v5223 = vadd.f32 %v5174, %v5222
    %5224 = vmatmul.bf16.gmra.mxu0 %v3800
    %v5225 = vpop.f32.mrf.mxu0
    %v5226 = vadd.f32 %v5177, %v5225
    %v5227 = vpop.f32.mrf.mxu0
    %v5228 = vadd.f32 %v5179, %v5227
    %5229 = vmatmul.bf16.gmra.mxu0 %v3804
    %v5230 = vpop.f32.mrf.mxu0
    %v5231 = vadd.f32 %v5182, %v5230
    %v5232 = vpop.f32.mrf.mxu0
    %v5233 = vadd.f32 %v5184, %v5232
    %5234 = vmatmul.bf16.gmra.mxu0 %v3808
    %v5235 = vpop.f32.mrf.mxu0
    %v5236 = vadd.f32 %v5187, %v5235
    %v5237 = vpop.f32.mrf.mxu0
    %v5238 = vadd.f32 %v5189, %v5237
    %5239 = vmatmul.bf16.gmra.mxu0 %v3812
    %v5240 = vpop.f32.mrf.mxu0
    %v5241 = vadd.f32 %v5192, %v5240
    %v5242 = vpop.f32.mrf.mxu0
    %v5243 = vadd.f32 %v5194, %v5242
    %5244 = vmatmul.bf16.gmra.mxu0 %v3816
    %v5245 = vpop.f32.mrf.mxu0
    %v5246 = vadd.f32 %v5197, %v5245
    %v5247 = vpop.f32.mrf.mxu0
    %v5248 = vadd.f32 %v5199, %v5247
    %5249 = vdwg.mxu0
    %5250 = vst [vmem:[%s5] sm:$0xff] %v4623
    %5251 = vst [vmem:[%s5 + $0x8] sm:$0xff] %v4819
    %5252 = vst [vmem:[%s5 + $0x10] sm:$0xff] %v5015
    %5253 = vst [vmem:[%s5 + $0x18] sm:$0xff] %v5211
    %5254 = vst [vmem:[%s5 + $0x20] sm:$0xff] %v4625
    %5255 = vst [vmem:[%s5 + $0x28] sm:$0xff] %v4821
    %5256 = vst [vmem:[%s5 + $0x30] sm:$0xff] %v5017
    %5257 = vst [vmem:[%s5 + $0x38] sm:$0xff] %v5213
    %5258 = vst [vmem:[%s5 + $0x40] sm:$0xff] %v4628
    %5259 = vst [vmem:[%s5 + $0x48] sm:$0xff] %v4824
    %5260 = vst [vmem:[%s5 + $0x50] sm:$0xff] %v5020
    %5261 = vst [vmem:[%s5 + $0x58] sm:$0xff] %v5216
    %5262 = vst [vmem:[%s5 + $0x60] sm:$0xff] %v4630
    %5263 = vst [vmem:[%s5 + $0x68] sm:$0xff] %v4826
    %5264 = vst [vmem:[%s5 + $0x70] sm:$0xff] %v5022
    %5265 = vst [vmem:[%s5 + $0x78] sm:$0xff] %v5218
    %5266 = vst [vmem:[%s5 + $0x80] sm:$0xff] %v4633
    %5267 = vst [vmem:[%s5 + $0x88] sm:$0xff] %v4829
    %5268 = vst [vmem:[%s5 + $0x90] sm:$0xff] %v5025
    %5269 = vst [vmem:[%s5 + $0x98] sm:$0xff] %v5221
    %5270 = vst [vmem:[%s5 + $0xa0] sm:$0xff] %v4635
    %5271 = vst [vmem:[%s5 + $0xa8] sm:$0xff] %v4831
    %5272 = vst [vmem:[%s5 + $0xb0] sm:$0xff] %v5027
    %5273 = vst [vmem:[%s5 + $0xb8] sm:$0xff] %v5223
    %5274 = vst [vmem:[%s5 + $0xc0] sm:$0xff] %v4638
    %5275 = vst [vmem:[%s5 + $0xc8] sm:$0xff] %v4834
    %5276 = vst [vmem:[%s5 + $0xd0] sm:$0xff] %v5030
    %5277 = vst [vmem:[%s5 + $0xd8] sm:$0xff] %v5226
    %5278 = vst [vmem:[%s5 + $0xe0] sm:$0xff] %v4640
    %5279 = vst [vmem:[%s5 + $0xe8] sm:$0xff] %v4836
    %5280 = vst [vmem:[%s5 + $0xf0] sm:$0xff] %v5032
    %5281 = vst [vmem:[%s5 + $0xf8] sm:$0xff] %v5228
    %5282 = vst [vmem:[%s5 + $0x100] sm:$0xff] %v4643
    %5283 = vst [vmem:[%s5 + $0x108] sm:$0xff] %v4839
    %5284 = vst [vmem:[%s5 + $0x110] sm:$0xff] %v5035
    %5285 = vst [vmem:[%s5 + $0x118] sm:$0xff] %v5231
    %5286 = vst [vmem:[%s5 + $0x120] sm:$0xff] %v4645
    %5287 = vst [vmem:[%s5 + $0x128] sm:$0xff] %v4841
    %5288 = vst [vmem:[%s5 + $0x130] sm:$0xff] %v5037
    %5289 = vst [vmem:[%s5 + $0x138] sm:$0xff] %v5233
    %5290 = vst [vmem:[%s5 + $0x140] sm:$0xff] %v4648
    %5291 = vst [vmem:[%s5 + $0x148] sm:$0xff] %v4844
    %5292 = vst [vmem:[%s5 + $0x150] sm:$0xff] %v5040
    %5293 = vst [vmem:[%s5 + $0x158] sm:$0xff] %v5236
    %5294 = vst [vmem:[%s5 + $0x160] sm:$0xff] %v4650
    %5295 = vst [vmem:[%s5 + $0x168] sm:$0xff] %v4846
    %5296 = vst [vmem:[%s5 + $0x170] sm:$0xff] %v5042
    %5297 = vst [vmem:[%s5 + $0x178] sm:$0xff] %v5238
    %5298 = vst [vmem:[%s5 + $0x180] sm:$0xff] %v4653
    %5299 = vst [vmem:[%s5 + $0x188] sm:$0xff] %v4849
    %5300 = vst [vmem:[%s5 + $0x190] sm:$0xff] %v5045
    %5301 = vst [vmem:[%s5 + $0x198] sm:$0xff] %v5241
    %5302 = vst [vmem:[%s5 + $0x1a0] sm:$0xff] %v4655
    %5303 = vst [vmem:[%s5 + $0x1a8] sm:$0xff] %v4851
    %5304 = vst [vmem:[%s5 + $0x1b0] sm:$0xff] %v5047
    %5305 = vst [vmem:[%s5 + $0x1b8] sm:$0xff] %v5243
    %5306 = vst [vmem:[%s5 + $0x1c0] sm:$0xff] %v4658
    %5307 = vst [vmem:[%s5 + $0x1c8] sm:$0xff] %v4854
    %5308 = vst [vmem:[%s5 + $0x1d0] sm:$0xff] %v5050
    %5309 = vst [vmem:[%s5 + $0x1d8] sm:$0xff] %v5246
    %5310 = vst [vmem:[%s5 + $0x1e0] sm:$0xff] %v4660
    %5311 = vst [vmem:[%s5 + $0x1e8] sm:$0xff] %v4856
    %5312 = vst [vmem:[%s5 + $0x1f0] sm:$0xff] %v5052
    %5313 = vst [vmem:[%s5 + $0x1f8] sm:$0xff] %v5248
    // Predicated region
    $region38: #{action_predictor_forward.1} parent=1 // pred_check
      _
    $region39: #{action_predictor_forward.1} parent=1 // pred_check_branch
      %5315 = sbr.rel (0) target = $region41
    $region40: #{action_predictor_forward.1} parent=1 // pred_region
      _
    $region41: #{action_predictor_forward.1} parent=1 // pred_fallthru
      _
    // Predicated region
    $region42: #{action_predictor_forward.1} parent=1 // pred_check
      _
    $region43: #{action_predictor_forward.1} parent=1 // pred_check_branch
      %5317 = sbr.rel (0) target = $region45
    $region44: #{action_predictor_forward.1} parent=1 // pred_region
      _
    $region45: #{action_predictor_forward.1} parent=1 // pred_fallthru
      _
    // Predicated region
    $region46: #{action_predictor_forward.1} parent=1 // pred_check
      _
    $region47: #{action_predictor_forward.1} parent=1 // pred_check_branch
      %5319 = sbr.rel (0) target = $region49
    $region48: #{action_predictor_forward.1} parent=1 // pred_region
      _
    $region49: #{action_predictor_forward.1} parent=1 // pred_fallthru
      _
    // Predicated region
    $region50: #{action_predictor_forward.1} parent=1 // pred_check
      _
    $region51: #{action_predictor_forward.1} parent=1 // pred_check_branch
      %5321 = sbr.rel (0) target = $region53
    $region52: #{action_predictor_forward.1} parent=1 // pred_region
      _
    $region53: #{action_predictor_forward.1} parent=1 // pred_fallthru
      _
    %5322 = vsyncpa [#allocation3], 1
    %5323 = vsyncpa [#allocation5], 1
    %5324 = vsyncpa [#allocation8], 1

</llo_original>
